<compile_context>
chip_gen: v6e
topology: v6e:2x2x1
jax: 0.10.0
libtpu: 0.0.40
codegen_flags: <defaults>
</compile_context>

<pallas_src>
import functools

import jax
import jax.numpy as jnp
from jax.experimental import pallas as pl
from jax.experimental.pallas import tpu as pltpu


# ----------------------------------------------------------------------------
# Pallas kernel: 4 shifted MXU matmuls (space-to-depth conv) + BN shift + ReLU
# ----------------------------------------------------------------------------
def _conv_bn_relu_kernel(zf_ref, w_ref, shift_ref, out_ref, *, mrow, wop1, cout):
    # zf_ref   : (1, (Ho+1)*(Wo+1)+1, 4*Cin)  one image, flattened s2d input
    # w_ref    : (4, 4*Cin, Cout)             BN-scale-folded weights, 4 taps
    # shift_ref: (1, Cout)                    folded BN shift
    # out_ref  : (1, Ho*(Wo+1), Cout)         (extra wrap column dropped outside)
    acc = jnp.zeros((mrow, cout), jnp.float32)
    for t in range(4):                       # unrolled 2x2 tap reduction (full K)
        da, db = divmod(t, 2)
        off = da * wop1 + db                 # static shift into the s2d input
        lhs = zf_ref[0, off:off + mrow, :]
        acc = acc + jnp.dot(lhs, w_ref[t], preferred_element_type=jnp.float32)
    y = jnp.maximum(acc + shift_ref[...], 0.0)   # epilogue: BN shift + ReLU
    out_ref[0] = y.astype(out_ref.dtype)


def _conv_bn_relu(x_nhwc, wz, shift):
    """3x3 / stride-2 / pad-1 conv + folded BN + ReLU.  x_nhwc: (N, H, W, Cin)."""
    n, h, w, cin = x_nhwc.shape
    cout = wz.shape[-1]
    ho, wo = (h + 1) // 2, (w + 1) // 2

    # Zero-pad (1 top/left, rest bottom/right) up to an even (2*Ho+2, 2*Wo+2)
    # extent, then space-to-depth: the 4 stride-2 phases go on the channel axis.
    xp = jnp.pad(
        x_nhwc, ((0, 0), (1, 2 * ho + 1 - h), (1, 2 * wo + 1 - w), (0, 0)))
    z = xp.reshape(n, ho + 1, 2, wo + 1, 2, cin)
    z = jnp.transpose(z, (0, 1, 3, 2, 4, 5))
    z = z.reshape(n, (ho + 1) * (wo + 1), 4 * cin)
    # One extra zero row so all four shifted tap windows stay in-bounds.
    zf = jnp.pad(z, ((0, 0), (0, 1), (0, 0)))

    p1 = (ho + 1) * (wo + 1) + 1
    mrow = ho * (wo + 1)       # kernel computes Wo+1 cols per row; last dropped
    k4 = 4 * cin

    out = pl.pallas_call(
        functools.partial(_conv_bn_relu_kernel,
                          mrow=mrow, wop1=wo + 1, cout=cout),
        out_shape=jax.ShapeDtypeStruct((n, mrow, cout), jnp.float32),
        grid=(n,),                                   # pipeline / megacore over batch
        in_specs=[
            pl.BlockSpec((1, p1, k4), lambda b: (b, 0, 0)),
            pl.BlockSpec((4, k4, cout), lambda b: (0, 0, 0)),   # fetched once
            pl.BlockSpec((1, cout), lambda b: (0, 0)),          # fetched once
        ],
        out_specs=pl.BlockSpec((1, mrow, cout), lambda b: (b, 0, 0)),
        compiler_params=pltpu.CompilerParams(
            dimension_semantics=("parallel",),
            vmem_limit_bytes=32 * 1024 * 1024,
        ),
        cost_estimate=pl.CostEstimate(
            flops=2 * n * mrow * k4 * cout * 4,
            transcendentals=0,
            bytes_accessed=4 * (n * p1 * k4 + 4 * k4 * cout + cout
                                + n * mrow * cout),
        ),
    )(zf, wz, shift)

    # Drop the wrap-around column produced by the flattened-row formulation.
    return out.reshape(n, ho, wo + 1, cout)[:, :, :wo, :]


# ----------------------------------------------------------------------------
# Deterministic parameter construction (no checkpoint loading) + BN folding
# ----------------------------------------------------------------------------
_CHANNELS = [(3, 16), (16, 32), (32, 64), (64, 128), (128, 256)]
_BN_EPS = 1e-5


def _fold_block_params(w, gamma, beta, mean, var):
    """Fold eval-mode BN into the conv and re-layout weights for the s2d kernel."""
    cout, cin = w.shape[0], w.shape[1]
    scale = gamma / jnp.sqrt(var + _BN_EPS)
    shift = beta - mean * scale
    # wz[da, db, a, b, cin, cout] <- W[cout, cin, 2*da+a, 2*db+b]  (0 if tap >= 3)
    wz = jnp.zeros((2, 2, 2, 2, cin, cout), jnp.float32)
    for da in range(2):
        for db in range(2):
            for a in range(2):
                for b in range(2):
                    dh, dw = 2 * da + a, 2 * db + b
                    if dh < 3 and dw < 3:
                        wz = wz.at[da, db, a, b].set(w[:, :, dh, dw].T)
    wz = wz * scale                              # fold BN scale into the weights
    return wz.reshape(4, 4 * cin, cout), shift.reshape(1, cout)


def init_encoder_params(key):
    params = []
    for i, (cin, cout) in enumerate(_CHANNELS):
        kw, kg, kb = jax.random.split(jax.random.fold_in(key, i), 3)
        std = (2.0 / (cin * 9)) ** 0.5
        w = jax.random.normal(kw, (cout, cin, 3, 3), jnp.float32) * std
        gamma = 1.0 + 0.1 * jax.random.normal(kg, (cout,), jnp.float32)
        beta = 0.1 * jax.random.normal(kb, (cout,), jnp.float32)
        mean = jnp.zeros((cout,), jnp.float32)
        var = jnp.ones((cout,), jnp.float32)
        wz, shift = _fold_block_params(w, gamma, beta, mean, var)
        params.append(dict(w=w, gamma=gamma, beta=beta, mean=mean, var=var,
                           wz=wz, shift=shift))
    return params


# ----------------------------------------------------------------------------
# encoder.forward equivalent: returns [x1, x2, x3, x4, x5] in NCHW
# ----------------------------------------------------------------------------
@jax.jit
def encoder_forward(x_nchw, params):
    x = jnp.transpose(x_nchw, (0, 2, 3, 1))          # NCHW -> NHWC once
    feats = []
    for p in params:
        x = _conv_bn_relu(x, p["wz"], p["shift"])
        feats.append(x)
    # NHWC -> NCHW only once, for the returned feature maps.
    return [jnp.transpose(f, (0, 3, 1, 2)) for f in feats]


# ----------------------------------------------------------------------------
# Pure-JAX reference (for correctness check)
# ----------------------------------------------------------------------------
def encoder_reference(x_nchw, params):
    x = x_nchw
    outs = []
    for p in params:
        y = jax.lax.conv_general_dilated(
            x, p["w"], window_strides=(2, 2), padding=((1, 1), (1, 1)),
            dimension_numbers=("NCHW", "OIHW", "NCHW"),
        )
        scale = p["gamma"] / jnp.sqrt(p["var"] + _BN_EPS)
        shift = p["beta"] - p["mean"] * scale
        y = y * scale.reshape(1, -1, 1, 1) + shift.reshape(1, -1, 1, 1)
        x = jnp.maximum(y, 0.0)
        outs.append(x)
    return outs


if __name__ == "__main__":
    key = jax.random.PRNGKey(0)
    params = init_encoder_params(key)

    x = jax.random.normal(jax.random.fold_in(key, 99), (2, 3, 16, 16), jnp.float32)

    outs = encoder_forward(x, params)
    outs = [jax.block_until_ready(o) for o in outs]

    refs = encoder_reference(x, params)
    expected_shapes = [(2, 16, 8, 8), (2, 32, 4, 4), (2, 64, 2, 2),
                       (2, 128, 1, 1), (2, 256, 1, 1)]
    for o, r, s in zip(outs, refs, expected_shapes):
        assert o.shape == s, (o.shape, s)
        assert jnp.allclose(o, r, atol=1e-4, rtol=1e-4), "mismatch vs reference"

    print("KERNEL_OK")
</pallas_src>

<mosaic_0001>
module attributes {stable_mosaic.version = 11 : i64} {
  func.func @_conv_bn_relu_kernel(%arg0: i32, %arg1: memref<1x82x12xf32, #tpu.memory_space<vmem>>, %arg2: memref<4x12x16xf32, #tpu.memory_space<vmem>>, %arg3: memref<1x16xf32, #tpu.memory_space<vmem>>, %arg4: memref<1x72x16xf32, #tpu.memory_space<vmem>>) attributes {dimension_semantics = [#tpu.dimension_semantics<parallel>], iteration_bounds = array<i64: 2>, scalar_prefetch = 0 : i64, scratch_operands = 0 : i64, tpu.core_type = #tpu.core_type<tc>, window_params = [{transform_indices = @transform_0, window_bounds = array<i64: 1, 82, 12>}, {pipeline_mode = #tpu.pipeline_mode<synchronous>, transform_indices = @transform_1, window_bounds = array<i64: 4, 12, 16>}, {pipeline_mode = #tpu.pipeline_mode<synchronous>, transform_indices = @transform_2, window_bounds = array<i64: 1, 16>}, {transform_indices = @transform_3, window_bounds = array<i64: 1, 72, 16>}]} {
    %cst = arith.constant 0.000000e+00 : f32
    %0 = vector.broadcast %cst : f32 to vector<72x16xf32>
    %c0 = arith.constant 0 : index
    %c0_0 = arith.constant 0 : index
    %c0_1 = arith.constant 0 : index
    %1 = vector.load %arg1[%c0, %c0_0, %c0_1] : memref<1x82x12xf32, #tpu.memory_space<vmem>>, vector<1x72x12xf32>
    %2 = vector.shape_cast %1 : vector<1x72x12xf32> to vector<72x12xf32>
    %c0_2 = arith.constant 0 : index
    %c0_3 = arith.constant 0 : index
    %c0_4 = arith.constant 0 : index
    %3 = vector.load %arg2[%c0_2, %c0_3, %c0_4] : memref<4x12x16xf32, #tpu.memory_space<vmem>>, vector<1x12x16xf32>
    %4 = vector.shape_cast %3 : vector<1x12x16xf32> to vector<12x16xf32>
    %cst_5 = arith.constant dense<0.000000e+00> : vector<72x16xf32>
    %5 = tpu.matmul %2, %4, %cst_5 {dimension_numbers = #tpu.dot_dimension_numbers<[1], [0], [0], [1], [0, 0, 1, 1], [], []>} : vector<72x12xf32>, vector<12x16xf32>, vector<72x16xf32> -> vector<72x16xf32>
    %6 = arith.addf %0, %5 : vector<72x16xf32>
    %c0_6 = arith.constant 0 : index
    %c1 = arith.constant 1 : index
    %c0_7 = arith.constant 0 : index
    %7 = vector.load %arg1[%c0_6, %c1, %c0_7] : memref<1x82x12xf32, #tpu.memory_space<vmem>>, vector<1x72x12xf32>
    %8 = vector.shape_cast %7 : vector<1x72x12xf32> to vector<72x12xf32>
    %c1_8 = arith.constant 1 : index
    %c0_9 = arith.constant 0 : index
    %c0_10 = arith.constant 0 : index
    %9 = vector.load %arg2[%c1_8, %c0_9, %c0_10] : memref<4x12x16xf32, #tpu.memory_space<vmem>>, vector<1x12x16xf32>
    %10 = vector.shape_cast %9 : vector<1x12x16xf32> to vector<12x16xf32>
    %cst_11 = arith.constant dense<0.000000e+00> : vector<72x16xf32>
    %11 = tpu.matmul %8, %10, %cst_11 {dimension_numbers = #tpu.dot_dimension_numbers<[1], [0], [0], [1], [0, 0, 1, 1], [], []>} : vector<72x12xf32>, vector<12x16xf32>, vector<72x16xf32> -> vector<72x16xf32>
    %12 = arith.addf %6, %11 : vector<72x16xf32>
    %c0_12 = arith.constant 0 : index
    %c9 = arith.constant 9 : index
    %c0_13 = arith.constant 0 : index
    %13 = vector.load %arg1[%c0_12, %c9, %c0_13] : memref<1x82x12xf32, #tpu.memory_space<vmem>>, vector<1x72x12xf32>
    %14 = vector.shape_cast %13 : vector<1x72x12xf32> to vector<72x12xf32>
    %c2 = arith.constant 2 : index
    %c0_14 = arith.constant 0 : index
    %c0_15 = arith.constant 0 : index
    %15 = vector.load %arg2[%c2, %c0_14, %c0_15] : memref<4x12x16xf32, #tpu.memory_space<vmem>>, vector<1x12x16xf32>
    %16 = vector.shape_cast %15 : vector<1x12x16xf32> to vector<12x16xf32>
    %cst_16 = arith.constant dense<0.000000e+00> : vector<72x16xf32>
    %17 = tpu.matmul %14, %16, %cst_16 {dimension_numbers = #tpu.dot_dimension_numbers<[1], [0], [0], [1], [0, 0, 1, 1], [], []>} : vector<72x12xf32>, vector<12x16xf32>, vector<72x16xf32> -> vector<72x16xf32>
    %18 = arith.addf %12, %17 : vector<72x16xf32>
    %c0_17 = arith.constant 0 : index
    %c10 = arith.constant 10 : index
    %c0_18 = arith.constant 0 : index
    %19 = vector.load %arg1[%c0_17, %c10, %c0_18] : memref<1x82x12xf32, #tpu.memory_space<vmem>>, vector<1x72x12xf32>
    %20 = vector.shape_cast %19 : vector<1x72x12xf32> to vector<72x12xf32>
    %c3 = arith.constant 3 : index
    %c0_19 = arith.constant 0 : index
    %c0_20 = arith.constant 0 : index
    %21 = vector.load %arg2[%c3, %c0_19, %c0_20] : memref<4x12x16xf32, #tpu.memory_space<vmem>>, vector<1x12x16xf32>
    %22 = vector.shape_cast %21 : vector<1x12x16xf32> to vector<12x16xf32>
    %cst_21 = arith.constant dense<0.000000e+00> : vector<72x16xf32>
    %23 = tpu.matmul %20, %22, %cst_21 {dimension_numbers = #tpu.dot_dimension_numbers<[1], [0], [0], [1], [0, 0, 1, 1], [], []>} : vector<72x12xf32>, vector<12x16xf32>, vector<72x16xf32> -> vector<72x16xf32>
    %24 = arith.addf %18, %23 : vector<72x16xf32>
    %c0_22 = arith.constant 0 : index
    %c0_23 = arith.constant 0 : index
    %25 = vector.load %arg3[%c0_22, %c0_23] : memref<1x16xf32, #tpu.memory_space<vmem>>, vector<1x16xf32>
    %26 = vector.broadcast %25 : vector<1x16xf32> to vector<72x16xf32>
    %27 = arith.addf %24, %26 : vector<72x16xf32>
    %cst_24 = arith.constant 0.000000e+00 : f32
    %28 = vector.broadcast %cst_24 : f32 to vector<72x16xf32>
    %29 = arith.maximumf %27, %28 : vector<72x16xf32>
    %c0_25 = arith.constant 0 : index
    %c0_26 = arith.constant 0 : index
    %c0_27 = arith.constant 0 : index
    %30 = vector.load %arg4[%c0_25, %c0_26, %c0_27] : memref<1x72x16xf32, #tpu.memory_space<vmem>>, vector<1x72x16xf32>
    %31 = vector.shape_cast %30 : vector<1x72x16xf32> to vector<72x16xf32>
    %32 = vector.shape_cast %29 : vector<72x16xf32> to vector<1x72x16xf32>
    tpu.vector_store %arg4[%c0_25, %c0_26, %c0_27], %32 {strides = array<i32>} : memref<1x72x16xf32, #tpu.memory_space<vmem>>, vector<1x72x16xf32>,
    return
  }
  func.func @transform_0(%arg0: i32) -> (i32, i32, i32) {
    %c0_i32 = arith.constant 0 : i32
    %c0_i32_0 = arith.constant 0 : i32
    %c0_i32_1 = arith.constant 0 : i32
    return %arg0, %c0_i32, %c0_i32_0 : i32, i32, i32
  }
  func.func @transform_1(%arg0: i32) -> (i32, i32, i32) {
    %c0_i32 = arith.constant 0 : i32
    %c0_i32_0 = arith.constant 0 : i32
    %c0_i32_1 = arith.constant 0 : i32
    %c0_i32_2 = arith.constant 0 : i32
    return %c0_i32, %c0_i32_0, %c0_i32_1 : i32, i32, i32
  }
  func.func @transform_2(%arg0: i32) -> (i32, i32) {
    %c0_i32 = arith.constant 0 : i32
    %c0_i32_0 = arith.constant 0 : i32
    %c0_i32_1 = arith.constant 0 : i32
    return %c0_i32, %c0_i32_0 : i32, i32
  }
  func.func @transform_3(%arg0: i32) -> (i32, i32, i32) {
    %c0_i32 = arith.constant 0 : i32
    %c0_i32_0 = arith.constant 0 : i32
    %c0_i32_1 = arith.constant 0 : i32
    return %arg0, %c0_i32, %c0_i32_0 : i32, i32, i32
  }
}

module attributes {stable_mosaic.version = 11 : i64} {
  func.func @_conv_bn_relu_kernel(%arg0: i32, %arg1: memref<1x26x64xf32, #tpu.memory_space<vmem>>, %arg2: memref<4x64x32xf32, #tpu.memory_space<vmem>>, %arg3: memref<1x32xf32, #tpu.memory_space<vmem>>, %arg4: memref<1x20x32xf32, #tpu.memory_space<vmem>>) attributes {dimension_semantics = [#tpu.dimension_semantics<parallel>], iteration_bounds = array<i64: 2>, scalar_prefetch = 0 : i64, scratch_operands = 0 : i64, tpu.core_type = #tpu.core_type<tc>, window_params = [{transform_indices = @transform_0, window_bounds = array<i64: 1, 26, 64>}, {pipeline_mode = #tpu.pipeline_mode<synchronous>, transform_indices = @transform_1, window_bounds = array<i64: 4, 64, 32>}, {pipeline_mode = #tpu.pipeline_mode<synchronous>, transform_indices = @transform_2, window_bounds = array<i64: 1, 32>}, {transform_indices = @transform_3, window_bounds = array<i64: 1, 20, 32>}]} {
    %cst = arith.constant 0.000000e+00 : f32
    %0 = vector.broadcast %cst : f32 to vector<20x32xf32>
    %c0 = arith.constant 0 : index
    %c0_0 = arith.constant 0 : index
    %c0_1 = arith.constant 0 : index
    %1 = vector.load %arg1[%c0, %c0_0, %c0_1] : memref<1x26x64xf32, #tpu.memory_space<vmem>>, vector<1x20x64xf32>
    %2 = vector.shape_cast %1 : vector<1x20x64xf32> to vector<20x64xf32>
    %c0_2 = arith.constant 0 : index
    %c0_3 = arith.constant 0 : index
    %c0_4 = arith.constant 0 : index
    %3 = vector.load %arg2[%c0_2, %c0_3, %c0_4] : memref<4x64x32xf32, #tpu.memory_space<vmem>>, vector<1x64x32xf32>
    %4 = vector.shape_cast %3 : vector<1x64x32xf32> to vector<64x32xf32>
    %cst_5 = arith.constant dense<0.000000e+00> : vector<20x32xf32>
    %5 = tpu.matmul %2, %4, %cst_5 {dimension_numbers = #tpu.dot_dimension_numbers<[1], [0], [0], [1], [0, 0, 1, 1], [], []>} : vector<20x64xf32>, vector<64x32xf32>, vector<20x32xf32> -> vector<20x32xf32>
    %6 = arith.addf %0, %5 : vector<20x32xf32>
    %c0_6 = arith.constant 0 : index
    %c1 = arith.constant 1 : index
    %c0_7 = arith.constant 0 : index
    %7 = vector.load %arg1[%c0_6, %c1, %c0_7] : memref<1x26x64xf32, #tpu.memory_space<vmem>>, vector<1x20x64xf32>
    %8 = vector.shape_cast %7 : vector<1x20x64xf32> to vector<20x64xf32>
    %c1_8 = arith.constant 1 : index
    %c0_9 = arith.constant 0 : index
    %c0_10 = arith.constant 0 : index
    %9 = vector.load %arg2[%c1_8, %c0_9, %c0_10] : memref<4x64x32xf32, #tpu.memory_space<vmem>>, vector<1x64x32xf32>
    %10 = vector.shape_cast %9 : vector<1x64x32xf32> to vector<64x32xf32>
    %cst_11 = arith.constant dense<0.000000e+00> : vector<20x32xf32>
    %11 = tpu.matmul %8, %10, %cst_11 {dimension_numbers = #tpu.dot_dimension_numbers<[1], [0], [0], [1], [0, 0, 1, 1], [], []>} : vector<20x64xf32>, vector<64x32xf32>, vector<20x32xf32> -> vector<20x32xf32>
    %12 = arith.addf %6, %11 : vector<20x32xf32>
    %c0_12 = arith.constant 0 : index
    %c5 = arith.constant 5 : index
    %c0_13 = arith.constant 0 : index
    %13 = vector.load %arg1[%c0_12, %c5, %c0_13] : memref<1x26x64xf32, #tpu.memory_space<vmem>>, vector<1x20x64xf32>
    %14 = vector.shape_cast %13 : vector<1x20x64xf32> to vector<20x64xf32>
    %c2 = arith.constant 2 : index
    %c0_14 = arith.constant 0 : index
    %c0_15 = arith.constant 0 : index
    %15 = vector.load %arg2[%c2, %c0_14, %c0_15] : memref<4x64x32xf32, #tpu.memory_space<vmem>>, vector<1x64x32xf32>
    %16 = vector.shape_cast %15 : vector<1x64x32xf32> to vector<64x32xf32>
    %cst_16 = arith.constant dense<0.000000e+00> : vector<20x32xf32>
    %17 = tpu.matmul %14, %16, %cst_16 {dimension_numbers = #tpu.dot_dimension_numbers<[1], [0], [0], [1], [0, 0, 1, 1], [], []>} : vector<20x64xf32>, vector<64x32xf32>, vector<20x32xf32> -> vector<20x32xf32>
    %18 = arith.addf %12, %17 : vector<20x32xf32>
    %c0_17 = arith.constant 0 : index
    %c6 = arith.constant 6 : index
    %c0_18 = arith.constant 0 : index
    %19 = vector.load %arg1[%c0_17, %c6, %c0_18] : memref<1x26x64xf32, #tpu.memory_space<vmem>>, vector<1x20x64xf32>
    %20 = vector.shape_cast %19 : vector<1x20x64xf32> to vector<20x64xf32>
    %c3 = arith.constant 3 : index
    %c0_19 = arith.constant 0 : index
    %c0_20 = arith.constant 0 : index
    %21 = vector.load %arg2[%c3, %c0_19, %c0_20] : memref<4x64x32xf32, #tpu.memory_space<vmem>>, vector<1x64x32xf32>
    %22 = vector.shape_cast %21 : vector<1x64x32xf32> to vector<64x32xf32>
    %cst_21 = arith.constant dense<0.000000e+00> : vector<20x32xf32>
    %23 = tpu.matmul %20, %22, %cst_21 {dimension_numbers = #tpu.dot_dimension_numbers<[1], [0], [0], [1], [0, 0, 1, 1], [], []>} : vector<20x64xf32>, vector<64x32xf32>, vector<20x32xf32> -> vector<20x32xf32>
    %24 = arith.addf %18, %23 : vector<20x32xf32>
    %c0_22 = arith.constant 0 : index
    %c0_23 = arith.constant 0 : index
    %25 = vector.load %arg3[%c0_22, %c0_23] : memref<1x32xf32, #tpu.memory_space<vmem>>, vector<1x32xf32>
    %26 = vector.broadcast %25 : vector<1x32xf32> to vector<20x32xf32>
    %27 = arith.addf %24, %26 : vector<20x32xf32>
    %cst_24 = arith.constant 0.000000e+00 : f32
    %28 = vector.broadcast %cst_24 : f32 to vector<20x32xf32>
    %29 = arith.maximumf %27, %28 : vector<20x32xf32>
    %c0_25 = arith.constant 0 : index
    %c0_26 = arith.constant 0 : index
    %c0_27 = arith.constant 0 : index
    %30 = vector.load %arg4[%c0_25, %c0_26, %c0_27] : memref<1x20x32xf32, #tpu.memory_space<vmem>>, vector<1x20x32xf32>
    %31 = vector.shape_cast %30 : vector<1x20x32xf32> to vector<20x32xf32>
    %32 = vector.shape_cast %29 : vector<20x32xf32> to vector<1x20x32xf32>
    tpu.vector_store %arg4[%c0_25, %c0_26, %c0_27], %32 {strides = array<i32>} : memref<1x20x32xf32, #tpu.memory_space<vmem>>, vector<1x20x32xf32>,
    return
  }
  func.func @transform_0(%arg0: i32) -> (i32, i32, i32) {
    %c0_i32 = arith.constant 0 : i32
    %c0_i32_0 = arith.constant 0 : i32
    %c0_i32_1 = arith.constant 0 : i32
    return %arg0, %c0_i32, %c0_i32_0 : i32, i32, i32
  }
  func.func @transform_1(%arg0: i32) -> (i32, i32, i32) {
    %c0_i32 = arith.constant 0 : i32
    %c0_i32_0 = arith.constant 0 : i32
    %c0_i32_1 = arith.constant 0 : i32
    %c0_i32_2 = arith.constant 0 : i32
    return %c0_i32, %c0_i32_0, %c0_i32_1 : i32, i32, i32
  }
  func.func @transform_2(%arg0: i32) -> (i32, i32) {
    %c0_i32 = arith.constant 0 : i32
    %c0_i32_0 = arith.constant 0 : i32
    %c0_i32_1 = arith.constant 0 : i32
    return %c0_i32, %c0_i32_0 : i32, i32
  }
  func.func @transform_3(%arg0: i32) -> (i32, i32, i32) {
    %c0_i32 = arith.constant 0 : i32
    %c0_i32_0 = arith.constant 0 : i32
    %c0_i32_1 = arith.constant 0 : i32
    return %arg0, %c0_i32, %c0_i32_0 : i32, i32, i32
  }
}

module attributes {stable_mosaic.version = 11 : i64} {
  func.func @_conv_bn_relu_kernel(%arg0: i32, %arg1: memref<1x10x128xf32, #tpu.memory_space<vmem>>, %arg2: memref<4x128x64xf32, #tpu.memory_space<vmem>>, %arg3: memref<1x64xf32, #tpu.memory_space<vmem>>, %arg4: memref<1x6x64xf32, #tpu.memory_space<vmem>>) attributes {dimension_semantics = [#tpu.dimension_semantics<parallel>], iteration_bounds = array<i64: 2>, scalar_prefetch = 0 : i64, scratch_operands = 0 : i64, tpu.core_type = #tpu.core_type<tc>, window_params = [{transform_indices = @transform_0, window_bounds = array<i64: 1, 10, 128>}, {pipeline_mode = #tpu.pipeline_mode<synchronous>, transform_indices = @transform_1, window_bounds = array<i64: 4, 128, 64>}, {pipeline_mode = #tpu.pipeline_mode<synchronous>, transform_indices = @transform_2, window_bounds = array<i64: 1, 64>}, {transform_indices = @transform_3, window_bounds = array<i64: 1, 6, 64>}]} {
    %cst = arith.constant 0.000000e+00 : f32
    %0 = vector.broadcast %cst : f32 to vector<6x64xf32>
    %c0 = arith.constant 0 : index
    %c0_0 = arith.constant 0 : index
    %c0_1 = arith.constant 0 : index
    %1 = vector.load %arg1[%c0, %c0_0, %c0_1] : memref<1x10x128xf32, #tpu.memory_space<vmem>>, vector<1x6x128xf32>
    %2 = vector.shape_cast %1 : vector<1x6x128xf32> to vector<6x128xf32>
    %c0_2 = arith.constant 0 : index
    %c0_3 = arith.constant 0 : index
    %c0_4 = arith.constant 0 : index
    %3 = vector.load %arg2[%c0_2, %c0_3, %c0_4] : memref<4x128x64xf32, #tpu.memory_space<vmem>>, vector<1x128x64xf32>
    %4 = vector.shape_cast %3 : vector<1x128x64xf32> to vector<128x64xf32>
    %cst_5 = arith.constant dense<0.000000e+00> : vector<6x64xf32>
    %5 = tpu.matmul %2, %4, %cst_5 {dimension_numbers = #tpu.dot_dimension_numbers<[1], [0], [0], [1], [0, 0, 1, 1], [], []>} : vector<6x128xf32>, vector<128x64xf32>, vector<6x64xf32> -> vector<6x64xf32>
    %6 = arith.addf %0, %5 : vector<6x64xf32>
    %c0_6 = arith.constant 0 : index
    %c1 = arith.constant 1 : index
    %c0_7 = arith.constant 0 : index
    %7 = vector.load %arg1[%c0_6, %c1, %c0_7] : memref<1x10x128xf32, #tpu.memory_space<vmem>>, vector<1x6x128xf32>
    %8 = vector.shape_cast %7 : vector<1x6x128xf32> to vector<6x128xf32>
    %c1_8 = arith.constant 1 : index
    %c0_9 = arith.constant 0 : index
    %c0_10 = arith.constant 0 : index
    %9 = vector.load %arg2[%c1_8, %c0_9, %c0_10] : memref<4x128x64xf32, #tpu.memory_space<vmem>>, vector<1x128x64xf32>
    %10 = vector.shape_cast %9 : vector<1x128x64xf32> to vector<128x64xf32>
    %cst_11 = arith.constant dense<0.000000e+00> : vector<6x64xf32>
    %11 = tpu.matmul %8, %10, %cst_11 {dimension_numbers = #tpu.dot_dimension_numbers<[1], [0], [0], [1], [0, 0, 1, 1], [], []>} : vector<6x128xf32>, vector<128x64xf32>, vector<6x64xf32> -> vector<6x64xf32>
    %12 = arith.addf %6, %11 : vector<6x64xf32>
    %c0_12 = arith.constant 0 : index
    %c3 = arith.constant 3 : index
    %c0_13 = arith.constant 0 : index
    %13 = vector.load %arg1[%c0_12, %c3, %c0_13] : memref<1x10x128xf32, #tpu.memory_space<vmem>>, vector<1x6x128xf32>
    %14 = vector.shape_cast %13 : vector<1x6x128xf32> to vector<6x128xf32>
    %c2 = arith.constant 2 : index
    %c0_14 = arith.constant 0 : index
    %c0_15 = arith.constant 0 : index
    %15 = vector.load %arg2[%c2, %c0_14, %c0_15] : memref<4x128x64xf32, #tpu.memory_space<vmem>>, vector<1x128x64xf32>
    %16 = vector.shape_cast %15 : vector<1x128x64xf32> to vector<128x64xf32>
    %cst_16 = arith.constant dense<0.000000e+00> : vector<6x64xf32>
    %17 = tpu.matmul %14, %16, %cst_16 {dimension_numbers = #tpu.dot_dimension_numbers<[1], [0], [0], [1], [0, 0, 1, 1], [], []>} : vector<6x128xf32>, vector<128x64xf32>, vector<6x64xf32> -> vector<6x64xf32>
    %18 = arith.addf %12, %17 : vector<6x64xf32>
    %c0_17 = arith.constant 0 : index
    %c4 = arith.constant 4 : index
    %c0_18 = arith.constant 0 : index
    %19 = vector.load %arg1[%c0_17, %c4, %c0_18] : memref<1x10x128xf32, #tpu.memory_space<vmem>>, vector<1x6x128xf32>
    %20 = vector.shape_cast %19 : vector<1x6x128xf32> to vector<6x128xf32>
    %c3_19 = arith.constant 3 : index
    %c0_20 = arith.constant 0 : index
    %c0_21 = arith.constant 0 : index
    %21 = vector.load %arg2[%c3_19, %c0_20, %c0_21] : memref<4x128x64xf32, #tpu.memory_space<vmem>>, vector<1x128x64xf32>
    %22 = vector.shape_cast %21 : vector<1x128x64xf32> to vector<128x64xf32>
    %cst_22 = arith.constant dense<0.000000e+00> : vector<6x64xf32>
    %23 = tpu.matmul %20, %22, %cst_22 {dimension_numbers = #tpu.dot_dimension_numbers<[1], [0], [0], [1], [0, 0, 1, 1], [], []>} : vector<6x128xf32>, vector<128x64xf32>, vector<6x64xf32> -> vector<6x64xf32>
    %24 = arith.addf %18, %23 : vector<6x64xf32>
    %c0_23 = arith.constant 0 : index
    %c0_24 = arith.constant 0 : index
    %25 = vector.load %arg3[%c0_23, %c0_24] : memref<1x64xf32, #tpu.memory_space<vmem>>, vector<1x64xf32>
    %26 = vector.broadcast %25 : vector<1x64xf32> to vector<6x64xf32>
    %27 = arith.addf %24, %26 : vector<6x64xf32>
    %cst_25 = arith.constant 0.000000e+00 : f32
    %28 = vector.broadcast %cst_25 : f32 to vector<6x64xf32>
    %29 = arith.maximumf %27, %28 : vector<6x64xf32>
    %c0_26 = arith.constant 0 : index
    %c0_27 = arith.constant 0 : index
    %c0_28 = arith.constant 0 : index
    %30 = vector.load %arg4[%c0_26, %c0_27, %c0_28] : memref<1x6x64xf32, #tpu.memory_space<vmem>>, vector<1x6x64xf32>
    %31 = vector.shape_cast %30 : vector<1x6x64xf32> to vector<6x64xf32>
    %32 = vector.shape_cast %29 : vector<6x64xf32> to vector<1x6x64xf32>
    tpu.vector_store %arg4[%c0_26, %c0_27, %c0_28], %32 {strides = array<i32>} : memref<1x6x64xf32, #tpu.memory_space<vmem>>, vector<1x6x64xf32>,
    return
  }
  func.func @transform_0(%arg0: i32) -> (i32, i32, i32) {
    %c0_i32 = arith.constant 0 : i32
    %c0_i32_0 = arith.constant 0 : i32
    %c0_i32_1 = arith.constant 0 : i32
    return %arg0, %c0_i32, %c0_i32_0 : i32, i32, i32
  }
  func.func @transform_1(%arg0: i32) -> (i32, i32, i32) {
    %c0_i32 = arith.constant 0 : i32
    %c0_i32_0 = arith.constant 0 : i32
    %c0_i32_1 = arith.constant 0 : i32
    %c0_i32_2 = arith.constant 0 : i32
    return %c0_i32, %c0_i32_0, %c0_i32_1 : i32, i32, i32
  }
  func.func @transform_2(%arg0: i32) -> (i32, i32) {
    %c0_i32 = arith.constant 0 : i32
    %c0_i32_0 = arith.constant 0 : i32
    %c0_i32_1 = arith.constant 0 : i32
    return %c0_i32, %c0_i32_0 : i32, i32
  }
  func.func @transform_3(%arg0: i32) -> (i32, i32, i32) {
    %c0_i32 = arith.constant 0 : i32
    %c0_i32_0 = arith.constant 0 : i32
    %c0_i32_1 = arith.constant 0 : i32
    return %arg0, %c0_i32, %c0_i32_0 : i32, i32, i32
  }
}

module attributes {stable_mosaic.version = 11 : i64} {
  func.func @_conv_bn_relu_kernel(%arg0: i32, %arg1: memref<1x5x512xf32, #tpu.memory_space<vmem>>, %arg2: memref<4x512x256xf32, #tpu.memory_space<vmem>>, %arg3: memref<1x256xf32, #tpu.memory_space<vmem>>, %arg4: memref<1x2x256xf32, #tpu.memory_space<vmem>>) attributes {dimension_semantics = [#tpu.dimension_semantics<parallel>], iteration_bounds = array<i64: 2>, scalar_prefetch = 0 : i64, scratch_operands = 0 : i64, tpu.core_type = #tpu.core_type<tc>, window_params = [{transform_indices = @transform_0, window_bounds = array<i64: 1, 5, 512>}, {pipeline_mode = #tpu.pipeline_mode<synchronous>, transform_indices = @transform_1, window_bounds = array<i64: 4, 512, 256>}, {pipeline_mode = #tpu.pipeline_mode<synchronous>, transform_indices = @transform_2, window_bounds = array<i64: 1, 256>}, {transform_indices = @transform_3, window_bounds = array<i64: 1, 2, 256>}]} {
    %cst = arith.constant 0.000000e+00 : f32
    %0 = vector.broadcast %cst : f32 to vector<2x256xf32>
    %c0 = arith.constant 0 : index
    %c0_0 = arith.constant 0 : index
    %c0_1 = arith.constant 0 : index
    %1 = vector.load %arg1[%c0, %c0_0, %c0_1] : memref<1x5x512xf32, #tpu.memory_space<vmem>>, vector<1x2x512xf32>
    %2 = vector.shape_cast %1 : vector<1x2x512xf32> to vector<2x512xf32>
    %c0_2 = arith.constant 0 : index
    %c0_3 = arith.constant 0 : index
    %c0_4 = arith.constant 0 : index
    %3 = vector.load %arg2[%c0_2, %c0_3, %c0_4] : memref<4x512x256xf32, #tpu.memory_space<vmem>>, vector<1x512x256xf32>
    %4 = vector.shape_cast %3 : vector<1x512x256xf32> to vector<512x256xf32>
    %cst_5 = arith.constant dense<0.000000e+00> : vector<2x256xf32>
    %5 = tpu.matmul %2, %4, %cst_5 {dimension_numbers = #tpu.dot_dimension_numbers<[1], [0], [0], [1], [0, 0, 1, 1], [], []>} : vector<2x512xf32>, vector<512x256xf32>, vector<2x256xf32> -> vector<2x256xf32>
    %6 = arith.addf %0, %5 : vector<2x256xf32>
    %c0_6 = arith.constant 0 : index
    %c1 = arith.constant 1 : index
    %c0_7 = arith.constant 0 : index
    %7 = vector.load %arg1[%c0_6, %c1, %c0_7] : memref<1x5x512xf32, #tpu.memory_space<vmem>>, vector<1x2x512xf32>
    %8 = vector.shape_cast %7 : vector<1x2x512xf32> to vector<2x512xf32>
    %c1_8 = arith.constant 1 : index
    %c0_9 = arith.constant 0 : index
    %c0_10 = arith.constant 0 : index
    %9 = vector.load %arg2[%c1_8, %c0_9, %c0_10] : memref<4x512x256xf32, #tpu.memory_space<vmem>>, vector<1x512x256xf32>
    %10 = vector.shape_cast %9 : vector<1x512x256xf32> to vector<512x256xf32>
    %cst_11 = arith.constant dense<0.000000e+00> : vector<2x256xf32>
    %11 = tpu.matmul %8, %10, %cst_11 {dimension_numbers = #tpu.dot_dimension_numbers<[1], [0], [0], [1], [0, 0, 1, 1], [], []>} : vector<2x512xf32>, vector<512x256xf32>, vector<2x256xf32> -> vector<2x256xf32>
    %12 = arith.addf %6, %11 : vector<2x256xf32>
    %c0_12 = arith.constant 0 : index
    %c2 = arith.constant 2 : index
    %c0_13 = arith.constant 0 : index
    %13 = vector.load %arg1[%c0_12, %c2, %c0_13] : memref<1x5x512xf32, #tpu.memory_space<vmem>>, vector<1x2x512xf32>
    %14 = vector.shape_cast %13 : vector<1x2x512xf32> to vector<2x512xf32>
    %c2_14 = arith.constant 2 : index
    %c0_15 = arith.constant 0 : index
    %c0_16 = arith.constant 0 : index
    %15 = vector.load %arg2[%c2_14, %c0_15, %c0_16] : memref<4x512x256xf32, #tpu.memory_space<vmem>>, vector<1x512x256xf32>
    %16 = vector.shape_cast %15 : vector<1x512x256xf32> to vector<512x256xf32>
    %cst_17 = arith.constant dense<0.000000e+00> : vector<2x256xf32>
    %17 = tpu.matmul %14, %16, %cst_17 {dimension_numbers = #tpu.dot_dimension_numbers<[1], [0], [0], [1], [0, 0, 1, 1], [], []>} : vector<2x512xf32>, vector<512x256xf32>, vector<2x256xf32> -> vector<2x256xf32>
    %18 = arith.addf %12, %17 : vector<2x256xf32>
    %c0_18 = arith.constant 0 : index
    %c3 = arith.constant 3 : index
    %c0_19 = arith.constant 0 : index
    %19 = vector.load %arg1[%c0_18, %c3, %c0_19] : memref<1x5x512xf32, #tpu.memory_space<vmem>>, vector<1x2x512xf32>
    %20 = vector.shape_cast %19 : vector<1x2x512xf32> to vector<2x512xf32>
    %c3_20 = arith.constant 3 : index
    %c0_21 = arith.constant 0 : index
    %c0_22 = arith.constant 0 : index
    %21 = vector.load %arg2[%c3_20, %c0_21, %c0_22] : memref<4x512x256xf32, #tpu.memory_space<vmem>>, vector<1x512x256xf32>
    %22 = vector.shape_cast %21 : vector<1x512x256xf32> to vector<512x256xf32>
    %cst_23 = arith.constant dense<0.000000e+00> : vector<2x256xf32>
    %23 = tpu.matmul %20, %22, %cst_23 {dimension_numbers = #tpu.dot_dimension_numbers<[1], [0], [0], [1], [0, 0, 1, 1], [], []>} : vector<2x512xf32>, vector<512x256xf32>, vector<2x256xf32> -> vector<2x256xf32>
    %24 = arith.addf %18, %23 : vector<2x256xf32>
    %c0_24 = arith.constant 0 : index
    %c0_25 = arith.constant 0 : index
    %25 = vector.load %arg3[%c0_24, %c0_25] : memref<1x256xf32, #tpu.memory_space<vmem>>, vector<1x256xf32>
    %26 = vector.broadcast %25 : vector<1x256xf32> to vector<2x256xf32>
    %27 = arith.addf %24, %26 : vector<2x256xf32>
    %cst_26 = arith.constant 0.000000e+00 : f32
    %28 = vector.broadcast %cst_26 : f32 to vector<2x256xf32>
    %29 = arith.maximumf %27, %28 : vector<2x256xf32>
    %c0_27 = arith.constant 0 : index
    %c0_28 = arith.constant 0 : index
    %c0_29 = arith.constant 0 : index
    %30 = vector.load %arg4[%c0_27, %c0_28, %c0_29] : memref<1x2x256xf32, #tpu.memory_space<vmem>>, vector<1x2x256xf32>
    %31 = vector.shape_cast %30 : vector<1x2x256xf32> to vector<2x256xf32>
    %32 = vector.shape_cast %29 : vector<2x256xf32> to vector<1x2x256xf32>
    tpu.vector_store %arg4[%c0_27, %c0_28, %c0_29], %32 {strides = array<i32>} : memref<1x2x256xf32, #tpu.memory_space<vmem>>, vector<1x2x256xf32>,
    return
  }
  func.func @transform_0(%arg0: i32) -> (i32, i32, i32) {
    %c0_i32 = arith.constant 0 : i32
    %c0_i32_0 = arith.constant 0 : i32
    %c0_i32_1 = arith.constant 0 : i32
    return %arg0, %c0_i32, %c0_i32_0 : i32, i32, i32
  }
  func.func @transform_1(%arg0: i32) -> (i32, i32, i32) {
    %c0_i32 = arith.constant 0 : i32
    %c0_i32_0 = arith.constant 0 : i32
    %c0_i32_1 = arith.constant 0 : i32
    %c0_i32_2 = arith.constant 0 : i32
    return %c0_i32, %c0_i32_0, %c0_i32_1 : i32, i32, i32
  }
  func.func @transform_2(%arg0: i32) -> (i32, i32) {
    %c0_i32 = arith.constant 0 : i32
    %c0_i32_0 = arith.constant 0 : i32
    %c0_i32_1 = arith.constant 0 : i32
    return %c0_i32, %c0_i32_0 : i32, i32
  }
  func.func @transform_3(%arg0: i32) -> (i32, i32, i32) {
    %c0_i32 = arith.constant 0 : i32
    %c0_i32_0 = arith.constant 0 : i32
    %c0_i32_1 = arith.constant 0 : i32
    return %arg0, %c0_i32, %c0_i32_0 : i32, i32, i32
  }
}

module attributes {stable_mosaic.version = 11 : i64} {
  func.func @_conv_bn_relu_kernel(%arg0: i32, %arg1: memref<1x5x256xf32, #tpu.memory_space<vmem>>, %arg2: memref<4x256x128xf32, #tpu.memory_space<vmem>>, %arg3: memref<1x128xf32, #tpu.memory_space<vmem>>, %arg4: memref<1x2x128xf32, #tpu.memory_space<vmem>>) attributes {dimension_semantics = [#tpu.dimension_semantics<parallel>], iteration_bounds = array<i64: 2>, scalar_prefetch = 0 : i64, scratch_operands = 0 : i64, tpu.core_type = #tpu.core_type<tc>, window_params = [{transform_indices = @transform_0, window_bounds = array<i64: 1, 5, 256>}, {pipeline_mode = #tpu.pipeline_mode<synchronous>, transform_indices = @transform_1, window_bounds = array<i64: 4, 256, 128>}, {pipeline_mode = #tpu.pipeline_mode<synchronous>, transform_indices = @transform_2, window_bounds = array<i64: 1, 128>}, {transform_indices = @transform_3, window_bounds = array<i64: 1, 2, 128>}]} {
    %cst = arith.constant 0.000000e+00 : f32
    %0 = vector.broadcast %cst : f32 to vector<2x128xf32>
    %c0 = arith.constant 0 : index
    %c0_0 = arith.constant 0 : index
    %c0_1 = arith.constant 0 : index
    %1 = vector.load %arg1[%c0, %c0_0, %c0_1] : memref<1x5x256xf32, #tpu.memory_space<vmem>>, vector<1x2x256xf32>
    %2 = vector.shape_cast %1 : vector<1x2x256xf32> to vector<2x256xf32>
    %c0_2 = arith.constant 0 : index
    %c0_3 = arith.constant 0 : index
    %c0_4 = arith.constant 0 : index
    %3 = vector.load %arg2[%c0_2, %c0_3, %c0_4] : memref<4x256x128xf32, #tpu.memory_space<vmem>>, vector<1x256x128xf32>
    %4 = vector.shape_cast %3 : vector<1x256x128xf32> to vector<256x128xf32>
    %cst_5 = arith.constant dense<0.000000e+00> : vector<2x128xf32>
    %5 = tpu.matmul %2, %4, %cst_5 {dimension_numbers = #tpu.dot_dimension_numbers<[1], [0], [0], [1], [0, 0, 1, 1], [], []>} : vector<2x256xf32>, vector<256x128xf32>, vector<2x128xf32> -> vector<2x128xf32>
    %6 = arith.addf %0, %5 : vector<2x128xf32>
    %c0_6 = arith.constant 0 : index
    %c1 = arith.constant 1 : index
    %c0_7 = arith.constant 0 : index
    %7 = vector.load %arg1[%c0_6, %c1, %c0_7] : memref<1x5x256xf32, #tpu.memory_space<vmem>>, vector<1x2x256xf32>
    %8 = vector.shape_cast %7 : vector<1x2x256xf32> to vector<2x256xf32>
    %c1_8 = arith.constant 1 : index
    %c0_9 = arith.constant 0 : index
    %c0_10 = arith.constant 0 : index
    %9 = vector.load %arg2[%c1_8, %c0_9, %c0_10] : memref<4x256x128xf32, #tpu.memory_space<vmem>>, vector<1x256x128xf32>
    %10 = vector.shape_cast %9 : vector<1x256x128xf32> to vector<256x128xf32>
    %cst_11 = arith.constant dense<0.000000e+00> : vector<2x128xf32>
    %11 = tpu.matmul %8, %10, %cst_11 {dimension_numbers = #tpu.dot_dimension_numbers<[1], [0], [0], [1], [0, 0, 1, 1], [], []>} : vector<2x256xf32>, vector<256x128xf32>, vector<2x128xf32> -> vector<2x128xf32>
    %12 = arith.addf %6, %11 : vector<2x128xf32>
    %c0_12 = arith.constant 0 : index
    %c2 = arith.constant 2 : index
    %c0_13 = arith.constant 0 : index
    %13 = vector.load %arg1[%c0_12, %c2, %c0_13] : memref<1x5x256xf32, #tpu.memory_space<vmem>>, vector<1x2x256xf32>
    %14 = vector.shape_cast %13 : vector<1x2x256xf32> to vector<2x256xf32>
    %c2_14 = arith.constant 2 : index
    %c0_15 = arith.constant 0 : index
    %c0_16 = arith.constant 0 : index
    %15 = vector.load %arg2[%c2_14, %c0_15, %c0_16] : memref<4x256x128xf32, #tpu.memory_space<vmem>>, vector<1x256x128xf32>
    %16 = vector.shape_cast %15 : vector<1x256x128xf32> to vector<256x128xf32>
    %cst_17 = arith.constant dense<0.000000e+00> : vector<2x128xf32>
    %17 = tpu.matmul %14, %16, %cst_17 {dimension_numbers = #tpu.dot_dimension_numbers<[1], [0], [0], [1], [0, 0, 1, 1], [], []>} : vector<2x256xf32>, vector<256x128xf32>, vector<2x128xf32> -> vector<2x128xf32>
    %18 = arith.addf %12, %17 : vector<2x128xf32>
    %c0_18 = arith.constant 0 : index
    %c3 = arith.constant 3 : index
    %c0_19 = arith.constant 0 : index
    %19 = vector.load %arg1[%c0_18, %c3, %c0_19] : memref<1x5x256xf32, #tpu.memory_space<vmem>>, vector<1x2x256xf32>
    %20 = vector.shape_cast %19 : vector<1x2x256xf32> to vector<2x256xf32>
    %c3_20 = arith.constant 3 : index
    %c0_21 = arith.constant 0 : index
    %c0_22 = arith.constant 0 : index
    %21 = vector.load %arg2[%c3_20, %c0_21, %c0_22] : memref<4x256x128xf32, #tpu.memory_space<vmem>>, vector<1x256x128xf32>
    %22 = vector.shape_cast %21 : vector<1x256x128xf32> to vector<256x128xf32>
    %cst_23 = arith.constant dense<0.000000e+00> : vector<2x128xf32>
    %23 = tpu.matmul %20, %22, %cst_23 {dimension_numbers = #tpu.dot_dimension_numbers<[1], [0], [0], [1], [0, 0, 1, 1], [], []>} : vector<2x256xf32>, vector<256x128xf32>, vector<2x128xf32> -> vector<2x128xf32>
    %24 = arith.addf %18, %23 : vector<2x128xf32>
    %c0_24 = arith.constant 0 : index
    %c0_25 = arith.constant 0 : index
    %25 = vector.load %arg3[%c0_24, %c0_25] : memref<1x128xf32, #tpu.memory_space<vmem>>, vector<1x128xf32>
    %26 = vector.broadcast %25 : vector<1x128xf32> to vector<2x128xf32>
    %27 = arith.addf %24, %26 : vector<2x128xf32>
    %cst_26 = arith.constant 0.000000e+00 : f32
    %28 = vector.broadcast %cst_26 : f32 to vector<2x128xf32>
    %29 = arith.maximumf %27, %28 : vector<2x128xf32>
    %c0_27 = arith.constant 0 : index
    %c0_28 = arith.constant 0 : index
    %c0_29 = arith.constant 0 : index
    %30 = vector.load %arg4[%c0_27, %c0_28, %c0_29] : memref<1x2x128xf32, #tpu.memory_space<vmem>>, vector<1x2x128xf32>
    %31 = vector.shape_cast %30 : vector<1x2x128xf32> to vector<2x128xf32>
    %32 = vector.shape_cast %29 : vector<2x128xf32> to vector<1x2x128xf32>
    tpu.vector_store %arg4[%c0_27, %c0_28, %c0_29], %32 {strides = array<i32>} : memref<1x2x128xf32, #tpu.memory_space<vmem>>, vector<1x2x128xf32>,
    return
  }
  func.func @transform_0(%arg0: i32) -> (i32, i32, i32) {
    %c0_i32 = arith.constant 0 : i32
    %c0_i32_0 = arith.constant 0 : i32
    %c0_i32_1 = arith.constant 0 : i32
    return %arg0, %c0_i32, %c0_i32_0 : i32, i32, i32
  }
  func.func @transform_1(%arg0: i32) -> (i32, i32, i32) {
    %c0_i32 = arith.constant 0 : i32
    %c0_i32_0 = arith.constant 0 : i32
    %c0_i32_1 = arith.constant 0 : i32
    %c0_i32_2 = arith.constant 0 : i32
    return %c0_i32, %c0_i32_0, %c0_i32_1 : i32, i32, i32
  }
  func.func @transform_2(%arg0: i32) -> (i32, i32) {
    %c0_i32 = arith.constant 0 : i32
    %c0_i32_0 = arith.constant 0 : i32
    %c0_i32_1 = arith.constant 0 : i32
    return %c0_i32, %c0_i32_0 : i32, i32
  }
  func.func @transform_3(%arg0: i32) -> (i32, i32, i32) {
    %c0_i32 = arith.constant 0 : i32
    %c0_i32_0 = arith.constant 0 : i32
    %c0_i32_1 = arith.constant 0 : i32
    return %arg0, %c0_i32, %c0_i32_0 : i32, i32, i32
  }
}

</mosaic_0001>

<llo_original>
// kernel: encoder_forward.5
$region0: #{encoder_forward.5}
  #allocation0 [shape = 'u32[]', space=smem, size = 0x4, offset = 0x4, fixed_abs, tag = 'smem constant byte address 0x4 - core index']
  #allocation1 [shape = 'u32[144,128]{1,0:T(1,128)}', space=vmem, size = 0x12000, scoped, tag = 'internal scratch']
  %s0 = inlined_call_operand.vmem [shape: f32[2,82,12], index: 0, kind: input, shape index: {}]
  %s1 = inlined_call_operand.vmem [shape: f32[4,12,16], index: 1, kind: input, shape index: {}]
  %s2 = inlined_call_operand.hbm [shape: f32[1,16], index: 2, kind: input, shape index: {}]
  %s3 = inlined_call_operand.vmem [shape: f32[2,72,16], index: 3, kind: output, shape index: {}]
  %s4 = sld [smem:[#allocation0]]
  $region49: #{encoder_forward.5} parent=0
    _
  %s6 = ssub.s32 1, %s4
  %s7 = scalar_select 0, %s6, %s4
  $region1: #{encoder_forward.5} parent=0
    #allocation2 [shape = 'u8[512]{0}', space=vmem, size = 0x400, scoped, tag = 'input window, operand 2, single buffered']
    #allocation3 [shape = 's32[2]{0}', space=sflag, size = 0x8, scoped, tag = 'scoped memory for encoder_forward.5']
    %8 = vsyncpa [#allocation3], 0
    loop: start=0, step=1, limit=4
    $region2: #{encoder_forward.5} parent=1 // loop_pre_header
      _
    $region3: #{encoder_forward.5} parent=1 // loop_header
      %s10 = sphi 0, %s14
      %p11 = scmp.ge.s32.totalorder %s10, 4
      %s20 = sphi 0, %s22
      %s23 = sphi 0, %s20
      %s24 = sphi 0, %s23
      %s40 = sphi 0, %s24
      %s44 = sphi 0, %s44
      %s46 = sphi 0, %s44
      %s47 = sphi 0, %s46
      %s61 = sphi 0, %s47
      %s65 = sphi 0, %s65
      %s67 = sphi 0, %s65
      %s68 = sphi 0, %s67
      %s82 = sphi 0, %s68
      %s88 = sphi 0, %s90
      %s91 = sphi 0, %s88
      %s92 = sphi 0, %s91
      %s108 = sphi 0, %s92
    $region4: #{encoder_forward.5} parent=1 // loop_header_branch
      %13 = sbr.rel (%p11) target = $region8
    $region5: #{encoder_forward.5} parent=1 // loop_body
      %s15 = ssub.s32 %s10, 1
      %s16 = ssub.s32 %s10, 2
      %s17 = sadd.s32 %s10, 1
      %s18 = ssub.s32 %s10, %s17
      %p19 = scmp.eq.s32.totalorder %s18, 0
      %s21 = sadd.s32 %s20, 1
      %s22 = scalar_select %p19, %s20, %s21
      %p25 = pneg %p19
      %p26 = scmp.eq.s32.totalorder %s10, 1
      %p27 = por %p25, %p26
      %p28 = scmp.ne.s32.totalorder %s20, %s23
      %p29 = scmp.eq.s32.totalorder %s10, 0
      %p30 = por %p28, %p29
      %p31 = scmp.ne.s32.totalorder %s20, %s23
      %p32 = scmp.eq.s32.totalorder %s15, 1
      %p33 = por %p31, %p32
      %p34 = scmp.ne.s32.totalorder %s23, %s24
      %p35 = scmp.eq.s32.totalorder %s15, 0
      %p36 = por %p34, %p35
      %p37 = scmp.ne.s32.totalorder %s23, %s24
      %p38 = scmp.eq.s32.totalorder %s16, 1
      %p39 = por %p37, %p38
      %p41 = scmp.ne.s32.totalorder %s24, %s40
      %p42 = scmp.eq.s32.totalorder %s16, 0
      %p43 = por %p41, %p42
      %s45 = sadd.s32 %s44, 1
      %p48 = scmp.eq.s32.totalorder %s10, 1
      %p49 = scmp.ne.s32.totalorder %s44, %s46
      %p50 = scmp.eq.s32.totalorder %s10, 0
      %p51 = por %p49, %p50
      %p52 = scmp.ne.s32.totalorder %s44, %s46
      %p53 = scmp.eq.s32.totalorder %s15, 1
      %p54 = por %p52, %p53
      %p55 = scmp.ne.s32.totalorder %s46, %s47
      %p56 = scmp.eq.s32.totalorder %s15, 0
      %p57 = por %p55, %p56
      %p58 = scmp.ne.s32.totalorder %s46, %s47
      %p59 = scmp.eq.s32.totalorder %s16, 1
      %p60 = por %p58, %p59
      %p62 = scmp.ne.s32.totalorder %s47, %s61
      %p63 = scmp.eq.s32.totalorder %s16, 0
      %p64 = por %p62, %p63
      %s66 = sadd.s32 %s65, 1
      %p69 = scmp.eq.s32.totalorder %s10, 1
      %p70 = scmp.ne.s32.totalorder %s65, %s67
      %p71 = scmp.eq.s32.totalorder %s10, 0
      %p72 = por %p70, %p71
      %p73 = scmp.ne.s32.totalorder %s65, %s67
      %p74 = scmp.eq.s32.totalorder %s15, 1
      %p75 = por %p73, %p74
      %p76 = scmp.ne.s32.totalorder %s67, %s68
      %p77 = scmp.eq.s32.totalorder %s15, 0
      %p78 = por %p76, %p77
      %p79 = scmp.ne.s32.totalorder %s67, %s68
      %p80 = scmp.eq.s32.totalorder %s16, 1
      %p81 = por %p79, %p80
      %p83 = scmp.ne.s32.totalorder %s68, %s82
      %p84 = scmp.eq.s32.totalorder %s16, 0
      %p85 = por %p83, %p84
      %s86 = ssub.s32 %s10, %s17
      %p87 = scmp.eq.s32.totalorder %s86, 0
      %s89 = sadd.s32 %s88, 1
      %s90 = scalar_select %p87, %s88, %s89
      %p93 = pneg %p87
      %p94 = scmp.eq.s32.totalorder %s10, 1
      %p95 = por %p93, %p94
      %p96 = scmp.ne.s32.totalorder %s88, %s91
      %p97 = scmp.eq.s32.totalorder %s10, 0
      %p98 = por %p96, %p97
      %p99 = scmp.ne.s32.totalorder %s88, %s91
      %p100 = scmp.eq.s32.totalorder %s15, 1
      %p101 = por %p99, %p100
      %p102 = scmp.ne.s32.totalorder %s91, %s92
      %p103 = scmp.eq.s32.totalorder %s15, 0
      %p104 = por %p102, %p103
      %p105 = scmp.ne.s32.totalorder %s91, %s92
      %p106 = scmp.eq.s32.totalorder %s16, 1
      %p107 = por %p105, %p106
      %p109 = scmp.ne.s32.totalorder %s92, %s108
      %p110 = scmp.eq.s32.totalorder %s16, 0
      %p111 = por %p109, %p110
      %p112 = scmp.le.s32.totalorder 1, %s10
      %p113 = scmp.lt.s32.totalorder %s10, 3
      %p114 = pnand %p112, %p113
      %p115 = pneg %p114
      // Predicated region
      $region9: #{encoder_forward.5} parent=5 // pred_check
        _
      $region10: #{encoder_forward.5} parent=5 // pred_check_branch
        %117 = sbr.rel (%p114) target = $region12
      $region11: #{encoder_forward.5} parent=5 // pred_region
        %s118 = ssub.s32 %s10, 1
        // Predicated region
        $region13: #{encoder_forward.5} parent=11 // pred_check
          %p119 = pneg %p57
        $region14: #{encoder_forward.5} parent=11 // pred_check_branch
          %121 = sbr.rel (%p119) target = $region16
        $region15: #{encoder_forward.5} parent=11 // pred_region
          _
        $region16: #{encoder_forward.5} parent=11 // pred_fallthru
          _
        // Predicated region
        $region17: #{encoder_forward.5} parent=11 // pred_check
          %p122 = pneg %p78
        $region18: #{encoder_forward.5} parent=11 // pred_check_branch
          %124 = sbr.rel (%p122) target = $region20
        $region19: #{encoder_forward.5} parent=11 // pred_region
          %s126 = ssub.s32 16, 16
          %127 = vsyncadd [#allocation3], %s126
          %s129 = sshll.u32 [#allocation2], 4
          %s130 = int_to_ptr.vmem [resolvable:$true] %s129
          %132 = dma.hbm_to_vmem [thread:$0]  %s2, 16, %s130, [#allocation3]
        $region20: #{encoder_forward.5} parent=11 // pred_fallthru
          _
      $region12: #{encoder_forward.5} parent=5 // pred_fallthru
        _
      %p133 = scmp.lt.s32.totalorder %s10, 2
      // Predicated region
      $region21: #{encoder_forward.5} parent=5 // pred_check
        %p134 = pneg %p133
      $region22: #{encoder_forward.5} parent=5 // pred_check_branch
        %136 = sbr.rel (%p134) target = $region24
      $region23: #{encoder_forward.5} parent=5 // pred_region
        // Predicated region
        $region25: #{encoder_forward.5} parent=23 // pred_check
          %p137 = pneg %p30
        $region26: #{encoder_forward.5} parent=23 // pred_check_branch
          %139 = sbr.rel (%p137) target = $region28
        $region27: #{encoder_forward.5} parent=23 // pred_region
          %p140 = scmp.lt.s32.totalorder %s10, 1
          %s141 = scalar_select %p140, %s10, 1
          %s142 = smul.addr %s141, 11
          %s143 = smul.addr %s142, 8
          %s144 = scalar_lea.vmem %s0, %s143
        $region28: #{encoder_forward.5} parent=23 // pred_fallthru
          _
      $region24: #{encoder_forward.5} parent=5 // pred_fallthru
        _
      %p145 = scmp.le.s32.totalorder 1, %s10
      %p146 = scmp.lt.s32.totalorder %s10, 3
      %p147 = pnand %p145, %p146
      %p148 = pneg %p147
      // Predicated region
      $region29: #{encoder_forward.5} parent=5 // pred_check
        _
      $region30: #{encoder_forward.5} parent=5 // pred_check_branch
        %150 = sbr.rel (%p147) target = $region32
      $region31: #{encoder_forward.5} parent=5 // pred_region
        %s151 = ssub.s32 %s10, 1
        // Predicated region
        $region33: #{encoder_forward.5} parent=31 // pred_check
          %p152 = pneg %p78
        $region34: #{encoder_forward.5} parent=31 // pred_check_branch
          %154 = sbr.rel (%p152) target = $region36
        $region35: #{encoder_forward.5} parent=31 // pred_region
          %155 = dma.done [#allocation3], 16
        $region36: #{encoder_forward.5} parent=31 // pred_fallthru
          _
        %p156 = scmp.lt.s32.totalorder %s15, 1
        %s157 = scalar_select %p156, %s15, 1
        %s158 = smul.addr %s157, 11
        %s159 = smul.addr %s158, 8
        %s160 = scalar_lea.vmem %s0, %s159
        %p161 = pneg %p36
        %p162 = pneg %p33
        %p163 = pneg %p57
        %p164 = pneg %p54
        %p165 = pneg %p78
        %p166 = pneg %p75
        %p167 = pneg %p104
        %p168 = pneg %p101
        %p169 = scmp.lt.s32.totalorder %s15, 1
        %s170 = scalar_select %p169, %s15, 1
        %s171 = smul.addr %s170, 9
        %s172 = smul.addr %s171, 8
        %s173 = scalar_lea.vmem %s3, %s172
        %p174 = scmp.lt.s32.totalorder %s15, 1
        %s175 = scalar_select %p174, %s15, 1
        %s176 = smul.addr %s175, 11
        %s177 = smul.addr %s176, 8
        %s178 = scalar_lea.vmem %s0, %s177
        %p179 = scmp.lt.s32.totalorder %s15, 1
        %s180 = scalar_select %p179, %s15, 1
        %s181 = smul.addr %s180, 9
        %s182 = smul.addr %s181, 8
        %s183 = scalar_lea.vmem %s3, %s182
        %v184 = vld [vmem:[%s178] sm:$0xff]
        %v185 = vld [vmem:[%s178 + $0x8] sm:$0xff]
        %v186 = vld [vmem:[%s178 + $0x10] sm:$0xff]
        %v187 = vld [vmem:[%s178 + $0x18] sm:$0xff]
        %v188 = vld [vmem:[%s178 + $0x20] sm:$0xff]
        %v189 = vld [vmem:[%s178 + $0x28] sm:$0xff]
        %v190 = vld [vmem:[%s178 + $0x30] sm:$0xff]
        %v191 = vld [vmem:[%s178 + $0x38] sm:$0xff]
        %v192 = vld [vmem:[%s178 + $0x40] sm:$0xff]
        %v193 = vld [vmem:[%s1] sm:$0xff]
        %v194 = vld [vmem:[%s1 + $0x8] sm:$0xf]
        %v195 = vld [vmem:[%s178 + $0x1] sm:$0xff]
        %v196 = vld [vmem:[%s178 + $0x9] sm:$0xff]
        %v197 = vld [vmem:[%s178 + $0x11] sm:$0xff]
        %v198 = vld [vmem:[%s178 + $0x19] sm:$0xff]
        %v199 = vld [vmem:[%s178 + $0x21] sm:$0xff]
        %v200 = vld [vmem:[%s178 + $0x29] sm:$0xff]
        %v201 = vld [vmem:[%s178 + $0x31] sm:$0xff]
        %v202 = vld [vmem:[%s178 + $0x39] sm:$0xff]
        %v203 = vld [vmem:[%s178 + $0x41] sm:$0xff]
        %s204 = scalar_lea.vmem %s1, 16
        %v205 = vld [vmem:[%s204] sm:$0xff]
        %v206 = vld [vmem:[%s204 + $0x8] sm:$0xf]
        %vm207 = vcmask 97280
        %v209 = vsel %vm207, %v195, 0
        %v212 = vsel %vm207, %v196, 0
        %v215 = vsel %vm207, %v197, 0
        %v218 = vsel %vm207, %v198, 0
        %v221 = vsel %vm207, %v199, 0
        %v224 = vsel %vm207, %v200, 0
        %v227 = vsel %vm207, %v201, 0
        %v230 = vsel %vm207, %v202, 0
        %v233 = vsel %vm207, %v203, 0
        %vm235 = vcmask 1043456
        %v237 = vsel %vm235, %v206, 0
        %239 = vmatprep.subr.mxu0 0.0
        %240 = vmatpush1.msra.mxu0 0.0
        %241 = vmatprep.subr.mxu0 0.0
        %242 = vmatpush1.msra.mxu0 0.0
        %243 = vmatprep.subr.mxu0 0.0
        %244 = vmatpush1.msra.mxu0 0.0
        %245 = vmatprep.subr.mxu0 0.0
        %246 = vmatpush1.msra.mxu0 0.0
        %247 = vmatprep.subr.mxu0 0.0
        %248 = vmatpush1.msra.mxu0 0.0
        %249 = vmatprep.subr.mxu0 0.0
        %250 = vmatpush1.msra.mxu0 0.0
        %251 = vmatprep.subr.mxu0 0.0
        %252 = vmatpush1.msra.mxu0 0.0
        %253 = vmatprep.subr.mxu0 0.0
        %254 = vmatpush1.msra.mxu0 0.0
        %255 = vmatprep.subr.mxu0 0.0
        %256 = vmatpush1.msra.mxu0 0.0
        %257 = vmatprep.subr.mxu0 0.0
        %258 = vmatpush1.msra.mxu0 0.0
        %259 = vmatprep.subr.mxu0 0.0
        %260 = vmatpush1.msra.mxu0 0.0
        %261 = vmatprep.subr.mxu0 0.0
        %262 = vmatpush1.msra.mxu0 0.0
        %263 = vmatprep.subr.mxu0 0.0
        %264 = vmatpush1.msra.mxu0 0.0
        %265 = vmatprep.subr.mxu0 0.0
        %266 = vmatpush1.msra.mxu0 0.0
        %267 = vmatprep.subr.mxu0 0.0
        %268 = vmatpush1.msra.mxu0 %v237
        %269 = vmatprep.subr.mxu0 0.0
        %270 = vmatpush1.msra.mxu0 %v205
        %271 = vmatprep.subr.mxu0 0.0
        %272 = vmatpush2.msra.mxu0 0.0
        %273 = vmatprep.subr.mxu0 0.0
        %274 = vmatpush2.msra.mxu0 0.0
        %275 = vmatprep.subr.mxu0 0.0
        %276 = vmatpush2.msra.mxu0 0.0
        %277 = vmatprep.subr.mxu0 0.0
        %278 = vmatpush2.msra.mxu0 0.0
        %279 = vmatprep.subr.mxu0 0.0
        %280 = vmatpush2.msra.mxu0 0.0
        %281 = vmatprep.subr.mxu0 0.0
        %282 = vmatpush2.msra.mxu0 0.0
        %283 = vmatprep.subr.mxu0 0.0
        %284 = vmatpush2.msra.mxu0 0.0
        %285 = vmatprep.subr.mxu0 0.0
        %286 = vmatpush2.msra.mxu0 0.0
        %287 = vmatprep.subr.mxu0 0.0
        %288 = vmatpush2.msra.mxu0 0.0
        %289 = vmatprep.subr.mxu0 0.0
        %290 = vmatpush2.msra.mxu0 0.0
        %291 = vmatprep.subr.mxu0 0.0
        %292 = vmatpush2.msra.mxu0 0.0
        %293 = vmatprep.subr.mxu0 0.0
        %294 = vmatpush2.msra.mxu0 0.0
        %295 = vmatprep.subr.mxu0 0.0
        %296 = vmatpush2.msra.mxu0 0.0
        %297 = vmatprep.subr.mxu0 0.0
        %298 = vmatpush2.msra.mxu0 0.0
        %299 = vmatprep.subr.mxu0 0.0
        %300 = vmatpush2.msra.mxu0 0.0
        %301 = vmatprep.subr.mxu0 0.0
        %302 = vmatpush2.msra.mxu0 0.0
        %303 = vmatprep.mubr.f32.mxu0 0.0
        %304 = vmatmul.mubr.f32.gmra.mxu0 %v209
        %v305 = vpop.f32.mrf.mxu0
        %v306 = vadd.f32 0.0, %v305
        %v307 = vpop.f32.mrf.mxu0
        %308 = vmatprep.mubr.f32.mxu0 0.0
        %309 = vmatmul.mubr.f32.gmra.mxu0 %v212
        %v310 = vpop.f32.mrf.mxu0
        %v311 = vadd.f32 0.0, %v310
        %v312 = vpop.f32.mrf.mxu0
        %313 = vmatprep.mubr.f32.mxu0 0.0
        %314 = vmatmul.mubr.f32.gmra.mxu0 %v215
        %v315 = vpop.f32.mrf.mxu0
        %v316 = vadd.f32 0.0, %v315
        %v317 = vpop.f32.mrf.mxu0
        %318 = vmatprep.mubr.f32.mxu0 0.0
        %319 = vmatmul.mubr.f32.gmra.mxu0 %v218
        %v320 = vpop.f32.mrf.mxu0
        %v321 = vadd.f32 0.0, %v320
        %v322 = vpop.f32.mrf.mxu0
        %323 = vmatprep.mubr.f32.mxu0 0.0
        %324 = vmatmul.mubr.f32.gmra.mxu0 %v221
        %v325 = vpop.f32.mrf.mxu0
        %v326 = vadd.f32 0.0, %v325
        %v327 = vpop.f32.mrf.mxu0
        %328 = vmatprep.mubr.f32.mxu0 0.0
        %329 = vmatmul.mubr.f32.gmra.mxu0 %v224
        %v330 = vpop.f32.mrf.mxu0
        %v331 = vadd.f32 0.0, %v330
        %v332 = vpop.f32.mrf.mxu0
        %333 = vmatprep.mubr.f32.mxu0 0.0
        %334 = vmatmul.mubr.f32.gmra.mxu0 %v227
        %v335 = vpop.f32.mrf.mxu0
        %v336 = vadd.f32 0.0, %v335
        %v337 = vpop.f32.mrf.mxu0
        %338 = vmatprep.mubr.f32.mxu0 0.0
        %339 = vmatmul.mubr.f32.gmra.mxu0 %v230
        %v340 = vpop.f32.mrf.mxu0
        %v341 = vadd.f32 0.0, %v340
        %v342 = vpop.f32.mrf.mxu0
        %343 = vmatprep.mubr.f32.mxu0 0.0
        %344 = vmatmul.mubr.f32.gmra.mxu0 %v233
        %v345 = vpop.f32.mrf.mxu0
        %v346 = vadd.f32 0.0, %v345
        %v347 = vpop.f32.mrf.mxu0
        %348 = vdwg.mxu0
        %v350 = vsel %vm207, %v184, 0
        %v353 = vsel %vm207, %v185, 0
        %v356 = vsel %vm207, %v186, 0
        %v359 = vsel %vm207, %v187, 0
        %v362 = vsel %vm207, %v188, 0
        %v365 = vsel %vm207, %v189, 0
        %v368 = vsel %vm207, %v190, 0
        %v371 = vsel %vm207, %v191, 0
        %v374 = vsel %vm207, %v192, 0
        %v377 = vsel %vm235, %v194, 0
        %379 = vmatprep.subr.mxu0 0.0
        %380 = vmatpush1.msra.mxu0 0.0
        %381 = vmatprep.subr.mxu0 0.0
        %382 = vmatpush1.msra.mxu0 0.0
        %383 = vmatprep.subr.mxu0 0.0
        %384 = vmatpush1.msra.mxu0 0.0
        %385 = vmatprep.subr.mxu0 0.0
        %386 = vmatpush1.msra.mxu0 0.0
        %387 = vmatprep.subr.mxu0 0.0
        %388 = vmatpush1.msra.mxu0 0.0
        %389 = vmatprep.subr.mxu0 0.0
        %390 = vmatpush1.msra.mxu0 0.0
        %391 = vmatprep.subr.mxu0 0.0
        %392 = vmatpush1.msra.mxu0 0.0
        %393 = vmatprep.subr.mxu0 0.0
        %394 = vmatpush1.msra.mxu0 0.0
        %395 = vmatprep.subr.mxu0 0.0
        %396 = vmatpush1.msra.mxu0 0.0
        %397 = vmatprep.subr.mxu0 0.0
        %398 = vmatpush1.msra.mxu0 0.0
        %399 = vmatprep.subr.mxu0 0.0
        %400 = vmatpush1.msra.mxu0 0.0
        %401 = vmatprep.subr.mxu0 0.0
        %402 = vmatpush1.msra.mxu0 0.0
        %403 = vmatprep.subr.mxu0 0.0
        %404 = vmatpush1.msra.mxu0 0.0
        %405 = vmatprep.subr.mxu0 0.0
        %406 = vmatpush1.msra.mxu0 0.0
        %407 = vmatprep.subr.mxu0 0.0
        %408 = vmatpush1.msra.mxu0 %v377
        %409 = vmatprep.subr.mxu0 0.0
        %410 = vmatpush1.msra.mxu0 %v193
        %411 = vmatprep.subr.mxu0 0.0
        %412 = vmatpush2.msra.mxu0 0.0
        %413 = vmatprep.subr.mxu0 0.0
        %414 = vmatpush2.msra.mxu0 0.0
        %415 = vmatprep.subr.mxu0 0.0
        %416 = vmatpush2.msra.mxu0 0.0
        %417 = vmatprep.subr.mxu0 0.0
        %418 = vmatpush2.msra.mxu0 0.0
        %419 = vmatprep.subr.mxu0 0.0
        %420 = vmatpush2.msra.mxu0 0.0
        %421 = vmatprep.subr.mxu0 0.0
        %422 = vmatpush2.msra.mxu0 0.0
        %423 = vmatprep.subr.mxu0 0.0
        %424 = vmatpush2.msra.mxu0 0.0
        %425 = vmatprep.subr.mxu0 0.0
        %426 = vmatpush2.msra.mxu0 0.0
        %427 = vmatprep.subr.mxu0 0.0
        %428 = vmatpush2.msra.mxu0 0.0
        %429 = vmatprep.subr.mxu0 0.0
        %430 = vmatpush2.msra.mxu0 0.0
        %431 = vmatprep.subr.mxu0 0.0
        %432 = vmatpush2.msra.mxu0 0.0
        %433 = vmatprep.subr.mxu0 0.0
        %434 = vmatpush2.msra.mxu0 0.0
        %435 = vmatprep.subr.mxu0 0.0
        %436 = vmatpush2.msra.mxu0 0.0
        %437 = vmatprep.subr.mxu0 0.0
        %438 = vmatpush2.msra.mxu0 0.0
        %439 = vmatprep.subr.mxu0 0.0
        %440 = vmatpush2.msra.mxu0 0.0
        %441 = vmatprep.subr.mxu0 0.0
        %442 = vmatpush2.msra.mxu0 0.0
        %443 = vmatprep.mubr.f32.mxu0 0.0
        %444 = vmatmul.mubr.f32.gmra.mxu0 %v350
        %v445 = vpop.f32.mrf.mxu0
        %v446 = vadd.f32 %v306, %v445
        %v447 = vpop.f32.mrf.mxu0
        %448 = vmatprep.mubr.f32.mxu0 0.0
        %449 = vmatmul.mubr.f32.gmra.mxu0 %v353
        %v450 = vpop.f32.mrf.mxu0
        %v451 = vadd.f32 %v311, %v450
        %v452 = vpop.f32.mrf.mxu0
        %453 = vmatprep.mubr.f32.mxu0 0.0
        %454 = vmatmul.mubr.f32.gmra.mxu0 %v356
        %v455 = vpop.f32.mrf.mxu0
        %v456 = vadd.f32 %v316, %v455
        %v457 = vpop.f32.mrf.mxu0
        %458 = vmatprep.mubr.f32.mxu0 0.0
        %459 = vmatmul.mubr.f32.gmra.mxu0 %v359
        %v460 = vpop.f32.mrf.mxu0
        %v461 = vadd.f32 %v321, %v460
        %v462 = vpop.f32.mrf.mxu0
        %463 = vmatprep.mubr.f32.mxu0 0.0
        %464 = vmatmul.mubr.f32.gmra.mxu0 %v362
        %v465 = vpop.f32.mrf.mxu0
        %v466 = vadd.f32 %v326, %v465
        %v467 = vpop.f32.mrf.mxu0
        %468 = vmatprep.mubr.f32.mxu0 0.0
        %469 = vmatmul.mubr.f32.gmra.mxu0 %v365
        %v470 = vpop.f32.mrf.mxu0
        %v471 = vadd.f32 %v331, %v470
        %v472 = vpop.f32.mrf.mxu0
        %473 = vmatprep.mubr.f32.mxu0 0.0
        %474 = vmatmul.mubr.f32.gmra.mxu0 %v368
        %v475 = vpop.f32.mrf.mxu0
        %v476 = vadd.f32 %v336, %v475
        %v477 = vpop.f32.mrf.mxu0
        %478 = vmatprep.mubr.f32.mxu0 0.0
        %479 = vmatmul.mubr.f32.gmra.mxu0 %v371
        %v480 = vpop.f32.mrf.mxu0
        %v481 = vadd.f32 %v341, %v480
        %v482 = vpop.f32.mrf.mxu0
        %483 = vmatprep.mubr.f32.mxu0 0.0
        %484 = vmatmul.mubr.f32.gmra.mxu0 %v374
        %v485 = vpop.f32.mrf.mxu0
        %v486 = vadd.f32 %v346, %v485
        %v487 = vpop.f32.mrf.mxu0
        %488 = vdwg.mxu0
        %v489 = vld [vmem:[%s178 + $0x9] sm:$0xff]
        %v490 = vld [vmem:[%s178 + $0x11] sm:$0xff]
        %v491 = vld [vmem:[%s178 + $0x19] sm:$0xff]
        %v492 = vld [vmem:[%s178 + $0x21] sm:$0xff]
        %v493 = vld [vmem:[%s178 + $0x29] sm:$0xff]
        %v494 = vld [vmem:[%s178 + $0x31] sm:$0xff]
        %v495 = vld [vmem:[%s178 + $0x39] sm:$0xff]
        %v496 = vld [vmem:[%s178 + $0x41] sm:$0xff]
        %v497 = vld [vmem:[%s178 + $0x49] sm:$0xff]
        %s498 = scalar_lea.vmem %s1, 32
        %v499 = vld [vmem:[%s498] sm:$0xff]
        %v500 = vld [vmem:[%s498 + $0x8] sm:$0xf]
        %v502 = vsel %vm207, %v489, 0
        %v505 = vsel %vm207, %v490, 0
        %v508 = vsel %vm207, %v491, 0
        %v511 = vsel %vm207, %v492, 0
        %v514 = vsel %vm207, %v493, 0
        %v517 = vsel %vm207, %v494, 0
        %v520 = vsel %vm207, %v495, 0
        %v523 = vsel %vm207, %v496, 0
        %v526 = vsel %vm207, %v497, 0
        %v529 = vsel %vm235, %v500, 0
        %531 = vmatprep.subr.mxu0 0.0
        %532 = vmatpush1.msra.mxu0 0.0
        %533 = vmatprep.subr.mxu0 0.0
        %534 = vmatpush1.msra.mxu0 0.0
        %535 = vmatprep.subr.mxu0 0.0
        %536 = vmatpush1.msra.mxu0 0.0
        %537 = vmatprep.subr.mxu0 0.0
        %538 = vmatpush1.msra.mxu0 0.0
        %539 = vmatprep.subr.mxu0 0.0
        %540 = vmatpush1.msra.mxu0 0.0
        %541 = vmatprep.subr.mxu0 0.0
        %542 = vmatpush1.msra.mxu0 0.0
        %543 = vmatprep.subr.mxu0 0.0
        %544 = vmatpush1.msra.mxu0 0.0
        %545 = vmatprep.subr.mxu0 0.0
        %546 = vmatpush1.msra.mxu0 0.0
        %547 = vmatprep.subr.mxu0 0.0
        %548 = vmatpush1.msra.mxu0 0.0
        %549 = vmatprep.subr.mxu0 0.0
        %550 = vmatpush1.msra.mxu0 0.0
        %551 = vmatprep.subr.mxu0 0.0
        %552 = vmatpush1.msra.mxu0 0.0
        %553 = vmatprep.subr.mxu0 0.0
        %554 = vmatpush1.msra.mxu0 0.0
        %555 = vmatprep.subr.mxu0 0.0
        %556 = vmatpush1.msra.mxu0 0.0
        %557 = vmatprep.subr.mxu0 0.0
        %558 = vmatpush1.msra.mxu0 0.0
        %559 = vmatprep.subr.mxu0 0.0
        %560 = vmatpush1.msra.mxu0 %v529
        %561 = vmatprep.subr.mxu0 0.0
        %562 = vmatpush1.msra.mxu0 %v499
        %563 = vmatprep.subr.mxu0 0.0
        %564 = vmatpush2.msra.mxu0 0.0
        %565 = vmatprep.subr.mxu0 0.0
        %566 = vmatpush2.msra.mxu0 0.0
        %567 = vmatprep.subr.mxu0 0.0
        %568 = vmatpush2.msra.mxu0 0.0
        %569 = vmatprep.subr.mxu0 0.0
        %570 = vmatpush2.msra.mxu0 0.0
        %571 = vmatprep.subr.mxu0 0.0
        %572 = vmatpush2.msra.mxu0 0.0
        %573 = vmatprep.subr.mxu0 0.0
        %574 = vmatpush2.msra.mxu0 0.0
        %575 = vmatprep.subr.mxu0 0.0
        %576 = vmatpush2.msra.mxu0 0.0
        %577 = vmatprep.subr.mxu0 0.0
        %578 = vmatpush2.msra.mxu0 0.0
        %579 = vmatprep.subr.mxu0 0.0
        %580 = vmatpush2.msra.mxu0 0.0
        %581 = vmatprep.subr.mxu0 0.0
        %582 = vmatpush2.msra.mxu0 0.0
        %583 = vmatprep.subr.mxu0 0.0
        %584 = vmatpush2.msra.mxu0 0.0
        %585 = vmatprep.subr.mxu0 0.0
        %586 = vmatpush2.msra.mxu0 0.0
        %587 = vmatprep.subr.mxu0 0.0
        %588 = vmatpush2.msra.mxu0 0.0
        %589 = vmatprep.subr.mxu0 0.0
        %590 = vmatpush2.msra.mxu0 0.0
        %591 = vmatprep.subr.mxu0 0.0
        %592 = vmatpush2.msra.mxu0 0.0
        %593 = vmatprep.subr.mxu0 0.0
        %594 = vmatpush2.msra.mxu0 0.0
        %595 = vmatprep.mubr.f32.mxu0 0.0
        %596 = vmatmul.mubr.f32.gmra.mxu0 %v502
        %v597 = vpop.f32.mrf.mxu0
        %v598 = vadd.f32 0.0, %v597
        %v599 = vpop.f32.mrf.mxu0
        %600 = vmatprep.mubr.f32.mxu0 0.0
        %601 = vmatmul.mubr.f32.gmra.mxu0 %v505
        %v602 = vpop.f32.mrf.mxu0
        %v603 = vadd.f32 0.0, %v602
        %v604 = vpop.f32.mrf.mxu0
        %605 = vmatprep.mubr.f32.mxu0 0.0
        %606 = vmatmul.mubr.f32.gmra.mxu0 %v508
        %v607 = vpop.f32.mrf.mxu0
        %v608 = vadd.f32 0.0, %v607
        %v609 = vpop.f32.mrf.mxu0
        %610 = vmatprep.mubr.f32.mxu0 0.0
        %611 = vmatmul.mubr.f32.gmra.mxu0 %v511
        %v612 = vpop.f32.mrf.mxu0
        %v613 = vadd.f32 0.0, %v612
        %v614 = vpop.f32.mrf.mxu0
        %615 = vmatprep.mubr.f32.mxu0 0.0
        %616 = vmatmul.mubr.f32.gmra.mxu0 %v514
        %v617 = vpop.f32.mrf.mxu0
        %v618 = vadd.f32 0.0, %v617
        %v619 = vpop.f32.mrf.mxu0
        %620 = vmatprep.mubr.f32.mxu0 0.0
        %621 = vmatmul.mubr.f32.gmra.mxu0 %v517
        %v622 = vpop.f32.mrf.mxu0
        %v623 = vadd.f32 0.0, %v622
        %v624 = vpop.f32.mrf.mxu0
        %625 = vmatprep.mubr.f32.mxu0 0.0
        %626 = vmatmul.mubr.f32.gmra.mxu0 %v520
        %v627 = vpop.f32.mrf.mxu0
        %v628 = vadd.f32 0.0, %v627
        %v629 = vpop.f32.mrf.mxu0
        %630 = vmatprep.mubr.f32.mxu0 0.0
        %631 = vmatmul.mubr.f32.gmra.mxu0 %v523
        %v632 = vpop.f32.mrf.mxu0
        %v633 = vadd.f32 0.0, %v632
        %v634 = vpop.f32.mrf.mxu0
        %635 = vmatprep.mubr.f32.mxu0 0.0
        %636 = vmatmul.mubr.f32.gmra.mxu0 %v526
        %v637 = vpop.f32.mrf.mxu0
        %v638 = vadd.f32 0.0, %v637
        %v639 = vpop.f32.mrf.mxu0
        %640 = vdwg.mxu0
        %v641 = vadd.f32 %v446, %v598
        %v642 = vadd.f32 %v451, %v603
        %v643 = vadd.f32 %v456, %v608
        %v644 = vadd.f32 %v461, %v613
        %v645 = vadd.f32 %v466, %v618
        %v646 = vadd.f32 %v471, %v623
        %v647 = vadd.f32 %v476, %v628
        %v648 = vadd.f32 %v481, %v633
        %v649 = vadd.f32 %v486, %v638
        %v650 = vld [vmem:[%s178 + $0xa] sm:$0xff]
        %v651 = vld [vmem:[%s178 + $0x12] sm:$0xff]
        %v652 = vld [vmem:[%s178 + $0x1a] sm:$0xff]
        %v653 = vld [vmem:[%s178 + $0x22] sm:$0xff]
        %v654 = vld [vmem:[%s178 + $0x2a] sm:$0xff]
        %v655 = vld [vmem:[%s178 + $0x32] sm:$0xff]
        %v656 = vld [vmem:[%s178 + $0x3a] sm:$0xff]
        %v657 = vld [vmem:[%s178 + $0x42] sm:$0xff]
        %v658 = vld [vmem:[%s178 + $0x4a] sm:$0xff]
        %s659 = scalar_lea.vmem %s1, 48
        %v660 = vld [vmem:[%s659] sm:$0xff]
        %v661 = vld [vmem:[%s659 + $0x8] sm:$0xf]
        %v663 = vsel %vm207, %v650, 0
        %v666 = vsel %vm207, %v651, 0
        %v669 = vsel %vm207, %v652, 0
        %v672 = vsel %vm207, %v653, 0
        %v675 = vsel %vm207, %v654, 0
        %v678 = vsel %vm207, %v655, 0
        %v681 = vsel %vm207, %v656, 0
        %v684 = vsel %vm207, %v657, 0
        %v687 = vsel %vm207, %v658, 0
        %v690 = vsel %vm235, %v661, 0
        %692 = vmatprep.subr.mxu0 0.0
        %693 = vmatpush1.msra.mxu0 0.0
        %694 = vmatprep.subr.mxu0 0.0
        %695 = vmatpush1.msra.mxu0 0.0
        %696 = vmatprep.subr.mxu0 0.0
        %697 = vmatpush1.msra.mxu0 0.0
        %698 = vmatprep.subr.mxu0 0.0
        %699 = vmatpush1.msra.mxu0 0.0
        %700 = vmatprep.subr.mxu0 0.0
        %701 = vmatpush1.msra.mxu0 0.0
        %702 = vmatprep.subr.mxu0 0.0
        %703 = vmatpush1.msra.mxu0 0.0
        %704 = vmatprep.subr.mxu0 0.0
        %705 = vmatpush1.msra.mxu0 0.0
        %706 = vmatprep.subr.mxu0 0.0
        %707 = vmatpush1.msra.mxu0 0.0
        %708 = vmatprep.subr.mxu0 0.0
        %709 = vmatpush1.msra.mxu0 0.0
        %710 = vmatprep.subr.mxu0 0.0
        %711 = vmatpush1.msra.mxu0 0.0
        %712 = vmatprep.subr.mxu0 0.0
        %713 = vmatpush1.msra.mxu0 0.0
        %714 = vmatprep.subr.mxu0 0.0
        %715 = vmatpush1.msra.mxu0 0.0
        %716 = vmatprep.subr.mxu0 0.0
        %717 = vmatpush1.msra.mxu0 0.0
        %718 = vmatprep.subr.mxu0 0.0
        %719 = vmatpush1.msra.mxu0 0.0
        %720 = vmatprep.subr.mxu0 0.0
        %721 = vmatpush1.msra.mxu0 %v690
        %722 = vmatprep.subr.mxu0 0.0
        %723 = vmatpush1.msra.mxu0 %v660
        %724 = vmatprep.subr.mxu0 0.0
        %725 = vmatpush2.msra.mxu0 0.0
        %726 = vmatprep.subr.mxu0 0.0
        %727 = vmatpush2.msra.mxu0 0.0
        %728 = vmatprep.subr.mxu0 0.0
        %729 = vmatpush2.msra.mxu0 0.0
        %730 = vmatprep.subr.mxu0 0.0
        %731 = vmatpush2.msra.mxu0 0.0
        %732 = vmatprep.subr.mxu0 0.0
        %733 = vmatpush2.msra.mxu0 0.0
        %734 = vmatprep.subr.mxu0 0.0
        %735 = vmatpush2.msra.mxu0 0.0
        %736 = vmatprep.subr.mxu0 0.0
        %737 = vmatpush2.msra.mxu0 0.0
        %738 = vmatprep.subr.mxu0 0.0
        %739 = vmatpush2.msra.mxu0 0.0
        %740 = vmatprep.subr.mxu0 0.0
        %741 = vmatpush2.msra.mxu0 0.0
        %742 = vmatprep.subr.mxu0 0.0
        %743 = vmatpush2.msra.mxu0 0.0
        %744 = vmatprep.subr.mxu0 0.0
        %745 = vmatpush2.msra.mxu0 0.0
        %746 = vmatprep.subr.mxu0 0.0
        %747 = vmatpush2.msra.mxu0 0.0
        %748 = vmatprep.subr.mxu0 0.0
        %749 = vmatpush2.msra.mxu0 0.0
        %750 = vmatprep.subr.mxu0 0.0
        %751 = vmatpush2.msra.mxu0 0.0
        %752 = vmatprep.subr.mxu0 0.0
        %753 = vmatpush2.msra.mxu0 0.0
        %754 = vmatprep.subr.mxu0 0.0
        %755 = vmatpush2.msra.mxu0 0.0
        %756 = vmatprep.mubr.f32.mxu0 0.0
        %757 = vmatmul.mubr.f32.gmra.mxu0 %v663
        %v758 = vpop.f32.mrf.mxu0
        %v759 = vadd.f32 0.0, %v758
        %v760 = vpop.f32.mrf.mxu0
        %761 = vmatprep.mubr.f32.mxu0 0.0
        %762 = vmatmul.mubr.f32.gmra.mxu0 %v666
        %v763 = vpop.f32.mrf.mxu0
        %v764 = vadd.f32 0.0, %v763
        %v765 = vpop.f32.mrf.mxu0
        %766 = vmatprep.mubr.f32.mxu0 0.0
        %767 = vmatmul.mubr.f32.gmra.mxu0 %v669
        %v768 = vpop.f32.mrf.mxu0
        %v769 = vadd.f32 0.0, %v768
        %v770 = vpop.f32.mrf.mxu0
        %771 = vmatprep.mubr.f32.mxu0 0.0
        %772 = vmatmul.mubr.f32.gmra.mxu0 %v672
        %v773 = vpop.f32.mrf.mxu0
        %v774 = vadd.f32 0.0, %v773
        %v775 = vpop.f32.mrf.mxu0
        %776 = vmatprep.mubr.f32.mxu0 0.0
        %777 = vmatmul.mubr.f32.gmra.mxu0 %v675
        %v778 = vpop.f32.mrf.mxu0
        %v779 = vadd.f32 0.0, %v778
        %v780 = vpop.f32.mrf.mxu0
        %781 = vmatprep.mubr.f32.mxu0 0.0
        %782 = vmatmul.mubr.f32.gmra.mxu0 %v678
        %v783 = vpop.f32.mrf.mxu0
        %v784 = vadd.f32 0.0, %v783
        %v785 = vpop.f32.mrf.mxu0
        %786 = vmatprep.mubr.f32.mxu0 0.0
        %787 = vmatmul.mubr.f32.gmra.mxu0 %v681
        %v788 = vpop.f32.mrf.mxu0
        %v789 = vadd.f32 0.0, %v788
        %v790 = vpop.f32.mrf.mxu0
        %791 = vmatprep.mubr.f32.mxu0 0.0
        %792 = vmatmul.mubr.f32.gmra.mxu0 %v684
        %v793 = vpop.f32.mrf.mxu0
        %v794 = vadd.f32 0.0, %v793
        %v795 = vpop.f32.mrf.mxu0
        %796 = vmatprep.mubr.f32.mxu0 0.0
        %797 = vmatmul.mubr.f32.gmra.mxu0 %v687
        %v798 = vpop.f32.mrf.mxu0
        %v799 = vadd.f32 0.0, %v798
        %v800 = vpop.f32.mrf.mxu0
        %801 = vdwg.mxu0
        %v802 = vadd.f32 %v641, %v759
        %v803 = vadd.f32 %v642, %v764
        %v804 = vadd.f32 %v643, %v769
        %v805 = vadd.f32 %v644, %v774
        %v806 = vadd.f32 %v645, %v779
        %v807 = vadd.f32 %v646, %v784
        %v808 = vadd.f32 %v647, %v789
        %v809 = vadd.f32 %v648, %v794
        %v810 = vadd.f32 %v649, %v799
        %v811 = vld [vmem:[#allocation2] sm:$0x1]
        %v813 = vlaneseq
        %v814 = vshrl.u32 %v813, 7
        %v815 = vsub.s32 0, %v814
        %v816 = vrot.slane %v811, %v815
        %v818 = vadd.f32 %v802, %v816
        %v819 = vadd.f32 %v803, %v816
        %v820 = vadd.f32 %v804, %v816
        %v821 = vadd.f32 %v805, %v816
        %v822 = vadd.f32 %v806, %v816
        %v823 = vadd.f32 %v807, %v816
        %v824 = vadd.f32 %v808, %v816
        %v825 = vadd.f32 %v809, %v816
        %v826 = vadd.f32 %v810, %v816
        %v827 = vmax.f32 %v818, 0.0
        %v828 = vmax.f32 %v819, 0.0
        %v829 = vmax.f32 %v820, 0.0
        %v830 = vmax.f32 %v821, 0.0
        %v831 = vmax.f32 %v822, 0.0
        %v832 = vmax.f32 %v823, 0.0
        %v833 = vmax.f32 %v824, 0.0
        %v834 = vmax.f32 %v825, 0.0
        %v835 = vmax.f32 %v826, 0.0
        %vm836 = vcmask 130048
        %837 = vst.msk [vmem:[%s183] sm:$0xff] %vm836, %v827
        %838 = vst.msk [vmem:[%s183 + $0x8] sm:$0xff] %vm836, %v828
        %839 = vst.msk [vmem:[%s183 + $0x10] sm:$0xff] %vm836, %v829
        %840 = vst.msk [vmem:[%s183 + $0x18] sm:$0xff] %vm836, %v830
        %841 = vst.msk [vmem:[%s183 + $0x20] sm:$0xff] %vm836, %v831
        %842 = vst.msk [vmem:[%s183 + $0x28] sm:$0xff] %vm836, %v832
        %843 = vst.msk [vmem:[%s183 + $0x30] sm:$0xff] %vm836, %v833
        %844 = vst.msk [vmem:[%s183 + $0x38] sm:$0xff] %vm836, %v834
        %845 = vst.msk [vmem:[%s183 + $0x40] sm:$0xff] %vm836, %v835
        %p846 = scmp.lt.s32.totalorder %s15, 1
        %s847 = scalar_select %p846, %s15, 1
        %s848 = smul.addr %s847, 9
        %s849 = smul.addr %s848, 8
        %s850 = scalar_lea.vmem %s3, %s849
        // Predicated region
        $region37: #{encoder_forward.5} parent=31 // pred_check
          %p851 = pneg %p101
        $region38: #{encoder_forward.5} parent=31 // pred_check_branch
          %853 = sbr.rel (%p851) target = $region40
        $region39: #{encoder_forward.5} parent=31 // pred_region
          _
        $region40: #{encoder_forward.5} parent=31 // pred_fallthru
          _
      $region32: #{encoder_forward.5} parent=5 // pred_fallthru
        _
      %p854 = scmp.le.s32.totalorder 2, %s10
      // Predicated region
      $region41: #{encoder_forward.5} parent=5 // pred_check
        %p855 = pneg %p854
      $region42: #{encoder_forward.5} parent=5 // pred_check_branch
        %857 = sbr.rel (%p855) target = $region44
      $region43: #{encoder_forward.5} parent=5 // pred_region
        %s858 = ssub.s32 %s10, 2
        // Predicated region
        $region45: #{encoder_forward.5} parent=43 // pred_check
          %p859 = pneg %p107
        $region46: #{encoder_forward.5} parent=43 // pred_check_branch
          %861 = sbr.rel (%p859) target = $region48
        $region47: #{encoder_forward.5} parent=43 // pred_region
          %p862 = scmp.lt.s32.totalorder %s16, 1
          %s863 = scalar_select %p862, %s16, 1
          %s864 = smul.addr %s863, 9
          %s865 = smul.addr %s864, 8
          %s866 = scalar_lea.vmem %s3, %s865
        $region48: #{encoder_forward.5} parent=43 // pred_fallthru
          _
      $region44: #{encoder_forward.5} parent=5 // pred_fallthru
        _
    $region6: #{encoder_forward.5} parent=1 // loop_footer
      %s14 = sadd.s32 1, %s10
    $region7: #{encoder_forward.5} parent=1 // loop_footer_branch
      %9 = sbr.rel target = $region3
    $region8: #{encoder_forward.5} parent=1 // loop_exit
      _
    %867 = vsyncpa [#allocation3], 1
    %s868 = scalar_lea.sflag [#allocation3], 1
    %869 = vsyncpa %s868, 1

// kernel: encoder_forward.6
$region0: #{encoder_forward.6}
  #allocation0 [shape = 'u32[]', space=smem, size = 0x4, offset = 0x4, fixed_abs, tag = 'smem constant byte address 0x4 - core index']
  #allocation1 [shape = 'u32[144,128]{1,0:T(1,128)}', space=vmem, size = 0x12000, scoped, tag = 'internal scratch']
  %s0 = inlined_call_operand.vmem [shape: f32[2,26,64], index: 0, kind: input, shape index: {}]
  %s1 = inlined_call_operand.vmem [shape: f32[4,64,32], index: 1, kind: input, shape index: {}]
  %s2 = inlined_call_operand.vmem [shape: f32[1,32], index: 2, kind: input, shape index: {}]
  %s3 = inlined_call_operand.vmem [shape: f32[2,20,32], index: 3, kind: output, shape index: {}]
  %s4 = sld [smem:[#allocation0]]
  $region45: #{encoder_forward.6} parent=0
    _
  %s6 = ssub.s32 1, %s4
  %s7 = scalar_select 0, %s6, %s4
  loop: start=0, step=1, limit=4
  $region2: #{encoder_forward.6} parent=0 // loop_pre_header
    _
  $region3: #{encoder_forward.6} parent=0 // loop_header
    %s9 = sphi 0, %s13
    %p10 = scmp.ge.s32.totalorder %s9, 4
    %s19 = sphi 0, %s21
    %s22 = sphi 0, %s19
    %s23 = sphi 0, %s22
    %s39 = sphi 0, %s23
    %s43 = sphi 0, %s43
    %s45 = sphi 0, %s43
    %s46 = sphi 0, %s45
    %s60 = sphi 0, %s46
    %s64 = sphi 0, %s64
    %s66 = sphi 0, %s64
    %s67 = sphi 0, %s66
    %s81 = sphi 0, %s67
    %s87 = sphi 0, %s89
    %s90 = sphi 0, %s87
    %s91 = sphi 0, %s90
    %s107 = sphi 0, %s91
  $region4: #{encoder_forward.6} parent=0 // loop_header_branch
    %12 = sbr.rel (%p10) target = $region8
  $region5: #{encoder_forward.6} parent=0 // loop_body
    %s14 = ssub.s32 %s9, 1
    %s15 = ssub.s32 %s9, 2
    %s16 = sadd.s32 %s9, 1
    %s17 = ssub.s32 %s9, %s16
    %p18 = scmp.eq.s32.totalorder %s17, 0
    %s20 = sadd.s32 %s19, 1
    %s21 = scalar_select %p18, %s19, %s20
    %p24 = pneg %p18
    %p25 = scmp.eq.s32.totalorder %s9, 1
    %p26 = por %p24, %p25
    %p27 = scmp.ne.s32.totalorder %s19, %s22
    %p28 = scmp.eq.s32.totalorder %s9, 0
    %p29 = por %p27, %p28
    %p30 = scmp.ne.s32.totalorder %s19, %s22
    %p31 = scmp.eq.s32.totalorder %s14, 1
    %p32 = por %p30, %p31
    %p33 = scmp.ne.s32.totalorder %s22, %s23
    %p34 = scmp.eq.s32.totalorder %s14, 0
    %p35 = por %p33, %p34
    %p36 = scmp.ne.s32.totalorder %s22, %s23
    %p37 = scmp.eq.s32.totalorder %s15, 1
    %p38 = por %p36, %p37
    %p40 = scmp.ne.s32.totalorder %s23, %s39
    %p41 = scmp.eq.s32.totalorder %s15, 0
    %p42 = por %p40, %p41
    %s44 = sadd.s32 %s43, 1
    %p47 = scmp.eq.s32.totalorder %s9, 1
    %p48 = scmp.ne.s32.totalorder %s43, %s45
    %p49 = scmp.eq.s32.totalorder %s9, 0
    %p50 = por %p48, %p49
    %p51 = scmp.ne.s32.totalorder %s43, %s45
    %p52 = scmp.eq.s32.totalorder %s14, 1
    %p53 = por %p51, %p52
    %p54 = scmp.ne.s32.totalorder %s45, %s46
    %p55 = scmp.eq.s32.totalorder %s14, 0
    %p56 = por %p54, %p55
    %p57 = scmp.ne.s32.totalorder %s45, %s46
    %p58 = scmp.eq.s32.totalorder %s15, 1
    %p59 = por %p57, %p58
    %p61 = scmp.ne.s32.totalorder %s46, %s60
    %p62 = scmp.eq.s32.totalorder %s15, 0
    %p63 = por %p61, %p62
    %s65 = sadd.s32 %s64, 1
    %p68 = scmp.eq.s32.totalorder %s9, 1
    %p69 = scmp.ne.s32.totalorder %s64, %s66
    %p70 = scmp.eq.s32.totalorder %s9, 0
    %p71 = por %p69, %p70
    %p72 = scmp.ne.s32.totalorder %s64, %s66
    %p73 = scmp.eq.s32.totalorder %s14, 1
    %p74 = por %p72, %p73
    %p75 = scmp.ne.s32.totalorder %s66, %s67
    %p76 = scmp.eq.s32.totalorder %s14, 0
    %p77 = por %p75, %p76
    %p78 = scmp.ne.s32.totalorder %s66, %s67
    %p79 = scmp.eq.s32.totalorder %s15, 1
    %p80 = por %p78, %p79
    %p82 = scmp.ne.s32.totalorder %s67, %s81
    %p83 = scmp.eq.s32.totalorder %s15, 0
    %p84 = por %p82, %p83
    %s85 = ssub.s32 %s9, %s16
    %p86 = scmp.eq.s32.totalorder %s85, 0
    %s88 = sadd.s32 %s87, 1
    %s89 = scalar_select %p86, %s87, %s88
    %p92 = pneg %p86
    %p93 = scmp.eq.s32.totalorder %s9, 1
    %p94 = por %p92, %p93
    %p95 = scmp.ne.s32.totalorder %s87, %s90
    %p96 = scmp.eq.s32.totalorder %s9, 0
    %p97 = por %p95, %p96
    %p98 = scmp.ne.s32.totalorder %s87, %s90
    %p99 = scmp.eq.s32.totalorder %s14, 1
    %p100 = por %p98, %p99
    %p101 = scmp.ne.s32.totalorder %s90, %s91
    %p102 = scmp.eq.s32.totalorder %s14, 0
    %p103 = por %p101, %p102
    %p104 = scmp.ne.s32.totalorder %s90, %s91
    %p105 = scmp.eq.s32.totalorder %s15, 1
    %p106 = por %p104, %p105
    %p108 = scmp.ne.s32.totalorder %s91, %s107
    %p109 = scmp.eq.s32.totalorder %s15, 0
    %p110 = por %p108, %p109
    %p111 = scmp.le.s32.totalorder 1, %s9
    %p112 = scmp.lt.s32.totalorder %s9, 3
    %p113 = pnand %p111, %p112
    %p114 = pneg %p113
    // Predicated region
    $region9: #{encoder_forward.6} parent=5 // pred_check
      _
    $region10: #{encoder_forward.6} parent=5 // pred_check_branch
      %116 = sbr.rel (%p113) target = $region12
    $region11: #{encoder_forward.6} parent=5 // pred_region
      %s117 = ssub.s32 %s9, 1
      // Predicated region
      $region13: #{encoder_forward.6} parent=11 // pred_check
        %p118 = pneg %p56
      $region14: #{encoder_forward.6} parent=11 // pred_check_branch
        %120 = sbr.rel (%p118) target = $region16
      $region15: #{encoder_forward.6} parent=11 // pred_region
        _
      $region16: #{encoder_forward.6} parent=11 // pred_fallthru
        _
      // Predicated region
      $region17: #{encoder_forward.6} parent=11 // pred_check
        %p121 = pneg %p77
      $region18: #{encoder_forward.6} parent=11 // pred_check_branch
        %123 = sbr.rel (%p121) target = $region20
      $region19: #{encoder_forward.6} parent=11 // pred_region
        _
      $region20: #{encoder_forward.6} parent=11 // pred_fallthru
        _
    $region12: #{encoder_forward.6} parent=5 // pred_fallthru
      _
    %p124 = scmp.lt.s32.totalorder %s9, 2
    // Predicated region
    $region21: #{encoder_forward.6} parent=5 // pred_check
      %p125 = pneg %p124
    $region22: #{encoder_forward.6} parent=5 // pred_check_branch
      %127 = sbr.rel (%p125) target = $region24
    $region23: #{encoder_forward.6} parent=5 // pred_region
      // Predicated region
      $region25: #{encoder_forward.6} parent=23 // pred_check
        %p128 = pneg %p29
      $region26: #{encoder_forward.6} parent=23 // pred_check_branch
        %130 = sbr.rel (%p128) target = $region28
      $region27: #{encoder_forward.6} parent=23 // pred_region
        %p131 = scmp.lt.s32.totalorder %s9, 1
        %s132 = scalar_select %p131, %s9, 1
        %s133 = smul.addr %s132, 4
        %s134 = smul.addr %s133, 8
        %s135 = scalar_lea.vmem %s0, %s134
      $region28: #{encoder_forward.6} parent=23 // pred_fallthru
        _
    $region24: #{encoder_forward.6} parent=5 // pred_fallthru
      _
    %p136 = scmp.le.s32.totalorder 1, %s9
    %p137 = scmp.lt.s32.totalorder %s9, 3
    %p138 = pnand %p136, %p137
    %p139 = pneg %p138
    // Predicated region
    $region29: #{encoder_forward.6} parent=5 // pred_check
      _
    $region30: #{encoder_forward.6} parent=5 // pred_check_branch
      %141 = sbr.rel (%p138) target = $region32
    $region31: #{encoder_forward.6} parent=5 // pred_region
      %s142 = ssub.s32 %s9, 1
      %p143 = scmp.lt.s32.totalorder %s14, 1
      %s144 = scalar_select %p143, %s14, 1
      %s145 = smul.addr %s144, 4
      %s146 = smul.addr %s145, 8
      %s147 = scalar_lea.vmem %s0, %s146
      %p148 = pneg %p35
      %p149 = pneg %p32
      %p150 = pneg %p56
      %p151 = pneg %p53
      %p152 = pneg %p77
      %p153 = pneg %p74
      %p154 = pneg %p103
      %p155 = pneg %p100
      %p156 = scmp.lt.s32.totalorder %s14, 1
      %s157 = scalar_select %p156, %s14, 1
      %s158 = smul.addr %s157, 3
      %s159 = smul.addr %s158, 8
      %s160 = scalar_lea.vmem %s3, %s159
      %p161 = scmp.lt.s32.totalorder %s14, 1
      %s162 = scalar_select %p161, %s14, 1
      %s163 = smul.addr %s162, 4
      %s164 = smul.addr %s163, 8
      %s165 = scalar_lea.vmem %s0, %s164
      %p166 = scmp.lt.s32.totalorder %s14, 1
      %s167 = scalar_select %p166, %s14, 1
      %s168 = smul.addr %s167, 3
      %s169 = smul.addr %s168, 8
      %s170 = scalar_lea.vmem %s3, %s169
      %v171 = vld [vmem:[%s165] sm:$0xff]
      %v172 = vld [vmem:[%s165 + $0x8] sm:$0xff]
      %v173 = vld [vmem:[%s165 + $0x10] sm:$0xf]
      %v174 = vld [vmem:[%s1] sm:$0xff]
      %v175 = vld [vmem:[%s1 + $0x8] sm:$0xff]
      %v176 = vld [vmem:[%s1 + $0x10] sm:$0xff]
      %v177 = vld [vmem:[%s1 + $0x18] sm:$0xff]
      %v178 = vld [vmem:[%s1 + $0x20] sm:$0xff]
      %v179 = vld [vmem:[%s1 + $0x28] sm:$0xff]
      %v180 = vld [vmem:[%s1 + $0x30] sm:$0xff]
      %v181 = vld [vmem:[%s1 + $0x38] sm:$0xff]
      %v182 = vld [vmem:[%s165 + $0x1] sm:$0xff]
      %v183 = vld [vmem:[%s165 + $0x9] sm:$0xff]
      %v184 = vld [vmem:[%s165 + $0x11] sm:$0xf]
      %s185 = scalar_lea.vmem %s1, 64
      %v186 = vld [vmem:[%s185] sm:$0xff]
      %v187 = vld [vmem:[%s185 + $0x8] sm:$0xff]
      %v188 = vld [vmem:[%s185 + $0x10] sm:$0xff]
      %v189 = vld [vmem:[%s185 + $0x18] sm:$0xff]
      %v190 = vld [vmem:[%s185 + $0x20] sm:$0xff]
      %v191 = vld [vmem:[%s185 + $0x28] sm:$0xff]
      %v192 = vld [vmem:[%s185 + $0x30] sm:$0xff]
      %v193 = vld [vmem:[%s185 + $0x38] sm:$0xff]
      %vm194 = vcmask 523264
      %v196 = vsel %vm194, %v182, 0
      %v199 = vsel %vm194, %v183, 0
      %v202 = vsel %vm194, %v184, 0
      %204 = vmatprep.subr.mxu0 0.0
      %205 = vmatpush1.msra.mxu0 0.0
      %206 = vmatprep.subr.mxu0 0.0
      %207 = vmatpush1.msra.mxu0 0.0
      %208 = vmatprep.subr.mxu0 0.0
      %209 = vmatpush1.msra.mxu0 0.0
      %210 = vmatprep.subr.mxu0 0.0
      %211 = vmatpush1.msra.mxu0 0.0
      %212 = vmatprep.subr.mxu0 0.0
      %213 = vmatpush1.msra.mxu0 0.0
      %214 = vmatprep.subr.mxu0 0.0
      %215 = vmatpush1.msra.mxu0 0.0
      %216 = vmatprep.subr.mxu0 0.0
      %217 = vmatpush1.msra.mxu0 0.0
      %218 = vmatprep.subr.mxu0 0.0
      %219 = vmatpush1.msra.mxu0 0.0
      %220 = vmatprep.subr.mxu0 0.0
      %221 = vmatpush1.msra.mxu0 %v193
      %222 = vmatprep.subr.mxu0 0.0
      %223 = vmatpush1.msra.mxu0 %v192
      %224 = vmatprep.subr.mxu0 0.0
      %225 = vmatpush1.msra.mxu0 %v191
      %226 = vmatprep.subr.mxu0 0.0
      %227 = vmatpush1.msra.mxu0 %v190
      %228 = vmatprep.subr.mxu0 0.0
      %229 = vmatpush1.msra.mxu0 %v189
      %230 = vmatprep.subr.mxu0 0.0
      %231 = vmatpush1.msra.mxu0 %v188
      %232 = vmatprep.subr.mxu0 0.0
      %233 = vmatpush1.msra.mxu0 %v187
      %234 = vmatprep.subr.mxu0 0.0
      %235 = vmatpush1.msra.mxu0 %v186
      %236 = vmatprep.subr.mxu0 0.0
      %237 = vmatpush2.msra.mxu0 0.0
      %238 = vmatprep.subr.mxu0 0.0
      %239 = vmatpush2.msra.mxu0 0.0
      %240 = vmatprep.subr.mxu0 0.0
      %241 = vmatpush2.msra.mxu0 0.0
      %242 = vmatprep.subr.mxu0 0.0
      %243 = vmatpush2.msra.mxu0 0.0
      %244 = vmatprep.subr.mxu0 0.0
      %245 = vmatpush2.msra.mxu0 0.0
      %246 = vmatprep.subr.mxu0 0.0
      %247 = vmatpush2.msra.mxu0 0.0
      %248 = vmatprep.subr.mxu0 0.0
      %249 = vmatpush2.msra.mxu0 0.0
      %250 = vmatprep.subr.mxu0 0.0
      %251 = vmatpush2.msra.mxu0 0.0
      %252 = vmatprep.subr.mxu0 0.0
      %253 = vmatpush2.msra.mxu0 0.0
      %254 = vmatprep.subr.mxu0 0.0
      %255 = vmatpush2.msra.mxu0 0.0
      %256 = vmatprep.subr.mxu0 0.0
      %257 = vmatpush2.msra.mxu0 0.0
      %258 = vmatprep.subr.mxu0 0.0
      %259 = vmatpush2.msra.mxu0 0.0
      %260 = vmatprep.subr.mxu0 0.0
      %261 = vmatpush2.msra.mxu0 0.0
      %262 = vmatprep.subr.mxu0 0.0
      %263 = vmatpush2.msra.mxu0 0.0
      %264 = vmatprep.subr.mxu0 0.0
      %265 = vmatpush2.msra.mxu0 0.0
      %266 = vmatprep.subr.mxu0 0.0
      %267 = vmatpush2.msra.mxu0 0.0
      %268 = vmatprep.mubr.f32.mxu0 0.0
      %269 = vmatmul.mubr.f32.gmra.mxu0 %v196
      %v270 = vpop.f32.mrf.mxu0
      %v271 = vadd.f32 0.0, %v270
      %v272 = vpop.f32.mrf.mxu0
      %273 = vmatprep.mubr.f32.mxu0 0.0
      %274 = vmatmul.mubr.f32.gmra.mxu0 %v199
      %v275 = vpop.f32.mrf.mxu0
      %v276 = vadd.f32 0.0, %v275
      %v277 = vpop.f32.mrf.mxu0
      %278 = vmatprep.mubr.f32.mxu0 0.0
      %279 = vmatmul.mubr.f32.gmra.mxu0 %v202
      %v280 = vpop.f32.mrf.mxu0
      %v281 = vadd.f32 0.0, %v280
      %v282 = vpop.f32.mrf.mxu0
      %283 = vdwg.mxu0
      %v285 = vsel %vm194, %v171, 0
      %v288 = vsel %vm194, %v172, 0
      %v291 = vsel %vm194, %v173, 0
      %293 = vmatprep.subr.mxu0 0.0
      %294 = vmatpush1.msra.mxu0 0.0
      %295 = vmatprep.subr.mxu0 0.0
      %296 = vmatpush1.msra.mxu0 0.0
      %297 = vmatprep.subr.mxu0 0.0
      %298 = vmatpush1.msra.mxu0 0.0
      %299 = vmatprep.subr.mxu0 0.0
      %300 = vmatpush1.msra.mxu0 0.0
      %301 = vmatprep.subr.mxu0 0.0
      %302 = vmatpush1.msra.mxu0 0.0
      %303 = vmatprep.subr.mxu0 0.0
      %304 = vmatpush1.msra.mxu0 0.0
      %305 = vmatprep.subr.mxu0 0.0
      %306 = vmatpush1.msra.mxu0 0.0
      %307 = vmatprep.subr.mxu0 0.0
      %308 = vmatpush1.msra.mxu0 0.0
      %309 = vmatprep.subr.mxu0 0.0
      %310 = vmatpush1.msra.mxu0 %v181
      %311 = vmatprep.subr.mxu0 0.0
      %312 = vmatpush1.msra.mxu0 %v180
      %313 = vmatprep.subr.mxu0 0.0
      %314 = vmatpush1.msra.mxu0 %v179
      %315 = vmatprep.subr.mxu0 0.0
      %316 = vmatpush1.msra.mxu0 %v178
      %317 = vmatprep.subr.mxu0 0.0
      %318 = vmatpush1.msra.mxu0 %v177
      %319 = vmatprep.subr.mxu0 0.0
      %320 = vmatpush1.msra.mxu0 %v176
      %321 = vmatprep.subr.mxu0 0.0
      %322 = vmatpush1.msra.mxu0 %v175
      %323 = vmatprep.subr.mxu0 0.0
      %324 = vmatpush1.msra.mxu0 %v174
      %325 = vmatprep.subr.mxu0 0.0
      %326 = vmatpush2.msra.mxu0 0.0
      %327 = vmatprep.subr.mxu0 0.0
      %328 = vmatpush2.msra.mxu0 0.0
      %329 = vmatprep.subr.mxu0 0.0
      %330 = vmatpush2.msra.mxu0 0.0
      %331 = vmatprep.subr.mxu0 0.0
      %332 = vmatpush2.msra.mxu0 0.0
      %333 = vmatprep.subr.mxu0 0.0
      %334 = vmatpush2.msra.mxu0 0.0
      %335 = vmatprep.subr.mxu0 0.0
      %336 = vmatpush2.msra.mxu0 0.0
      %337 = vmatprep.subr.mxu0 0.0
      %338 = vmatpush2.msra.mxu0 0.0
      %339 = vmatprep.subr.mxu0 0.0
      %340 = vmatpush2.msra.mxu0 0.0
      %341 = vmatprep.subr.mxu0 0.0
      %342 = vmatpush2.msra.mxu0 0.0
      %343 = vmatprep.subr.mxu0 0.0
      %344 = vmatpush2.msra.mxu0 0.0
      %345 = vmatprep.subr.mxu0 0.0
      %346 = vmatpush2.msra.mxu0 0.0
      %347 = vmatprep.subr.mxu0 0.0
      %348 = vmatpush2.msra.mxu0 0.0
      %349 = vmatprep.subr.mxu0 0.0
      %350 = vmatpush2.msra.mxu0 0.0
      %351 = vmatprep.subr.mxu0 0.0
      %352 = vmatpush2.msra.mxu0 0.0
      %353 = vmatprep.subr.mxu0 0.0
      %354 = vmatpush2.msra.mxu0 0.0
      %355 = vmatprep.subr.mxu0 0.0
      %356 = vmatpush2.msra.mxu0 0.0
      %357 = vmatprep.mubr.f32.mxu0 0.0
      %358 = vmatmul.mubr.f32.gmra.mxu0 %v285
      %v359 = vpop.f32.mrf.mxu0
      %v360 = vadd.f32 %v271, %v359
      %v361 = vpop.f32.mrf.mxu0
      %362 = vmatprep.mubr.f32.mxu0 0.0
      %363 = vmatmul.mubr.f32.gmra.mxu0 %v288
      %v364 = vpop.f32.mrf.mxu0
      %v365 = vadd.f32 %v276, %v364
      %v366 = vpop.f32.mrf.mxu0
      %367 = vmatprep.mubr.f32.mxu0 0.0
      %368 = vmatmul.mubr.f32.gmra.mxu0 %v291
      %v369 = vpop.f32.mrf.mxu0
      %v370 = vadd.f32 %v281, %v369
      %v371 = vpop.f32.mrf.mxu0
      %372 = vdwg.mxu0
      %v373 = vld [vmem:[%s165 + $0x5] sm:$0xff]
      %v374 = vld [vmem:[%s165 + $0xd] sm:$0xff]
      %v375 = vld [vmem:[%s165 + $0x15] sm:$0xf]
      %s376 = scalar_lea.vmem %s1, 128
      %v377 = vld [vmem:[%s376] sm:$0xff]
      %v378 = vld [vmem:[%s376 + $0x8] sm:$0xff]
      %v379 = vld [vmem:[%s376 + $0x10] sm:$0xff]
      %v380 = vld [vmem:[%s376 + $0x18] sm:$0xff]
      %v381 = vld [vmem:[%s376 + $0x20] sm:$0xff]
      %v382 = vld [vmem:[%s376 + $0x28] sm:$0xff]
      %v383 = vld [vmem:[%s376 + $0x30] sm:$0xff]
      %v384 = vld [vmem:[%s376 + $0x38] sm:$0xff]
      %v386 = vsel %vm194, %v373, 0
      %v389 = vsel %vm194, %v374, 0
      %v392 = vsel %vm194, %v375, 0
      %394 = vmatprep.subr.mxu0 0.0
      %395 = vmatpush1.msra.mxu0 0.0
      %396 = vmatprep.subr.mxu0 0.0
      %397 = vmatpush1.msra.mxu0 0.0
      %398 = vmatprep.subr.mxu0 0.0
      %399 = vmatpush1.msra.mxu0 0.0
      %400 = vmatprep.subr.mxu0 0.0
      %401 = vmatpush1.msra.mxu0 0.0
      %402 = vmatprep.subr.mxu0 0.0
      %403 = vmatpush1.msra.mxu0 0.0
      %404 = vmatprep.subr.mxu0 0.0
      %405 = vmatpush1.msra.mxu0 0.0
      %406 = vmatprep.subr.mxu0 0.0
      %407 = vmatpush1.msra.mxu0 0.0
      %408 = vmatprep.subr.mxu0 0.0
      %409 = vmatpush1.msra.mxu0 0.0
      %410 = vmatprep.subr.mxu0 0.0
      %411 = vmatpush1.msra.mxu0 %v384
      %412 = vmatprep.subr.mxu0 0.0
      %413 = vmatpush1.msra.mxu0 %v383
      %414 = vmatprep.subr.mxu0 0.0
      %415 = vmatpush1.msra.mxu0 %v382
      %416 = vmatprep.subr.mxu0 0.0
      %417 = vmatpush1.msra.mxu0 %v381
      %418 = vmatprep.subr.mxu0 0.0
      %419 = vmatpush1.msra.mxu0 %v380
      %420 = vmatprep.subr.mxu0 0.0
      %421 = vmatpush1.msra.mxu0 %v379
      %422 = vmatprep.subr.mxu0 0.0
      %423 = vmatpush1.msra.mxu0 %v378
      %424 = vmatprep.subr.mxu0 0.0
      %425 = vmatpush1.msra.mxu0 %v377
      %426 = vmatprep.subr.mxu0 0.0
      %427 = vmatpush2.msra.mxu0 0.0
      %428 = vmatprep.subr.mxu0 0.0
      %429 = vmatpush2.msra.mxu0 0.0
      %430 = vmatprep.subr.mxu0 0.0
      %431 = vmatpush2.msra.mxu0 0.0
      %432 = vmatprep.subr.mxu0 0.0
      %433 = vmatpush2.msra.mxu0 0.0
      %434 = vmatprep.subr.mxu0 0.0
      %435 = vmatpush2.msra.mxu0 0.0
      %436 = vmatprep.subr.mxu0 0.0
      %437 = vmatpush2.msra.mxu0 0.0
      %438 = vmatprep.subr.mxu0 0.0
      %439 = vmatpush2.msra.mxu0 0.0
      %440 = vmatprep.subr.mxu0 0.0
      %441 = vmatpush2.msra.mxu0 0.0
      %442 = vmatprep.subr.mxu0 0.0
      %443 = vmatpush2.msra.mxu0 0.0
      %444 = vmatprep.subr.mxu0 0.0
      %445 = vmatpush2.msra.mxu0 0.0
      %446 = vmatprep.subr.mxu0 0.0
      %447 = vmatpush2.msra.mxu0 0.0
      %448 = vmatprep.subr.mxu0 0.0
      %449 = vmatpush2.msra.mxu0 0.0
      %450 = vmatprep.subr.mxu0 0.0
      %451 = vmatpush2.msra.mxu0 0.0
      %452 = vmatprep.subr.mxu0 0.0
      %453 = vmatpush2.msra.mxu0 0.0
      %454 = vmatprep.subr.mxu0 0.0
      %455 = vmatpush2.msra.mxu0 0.0
      %456 = vmatprep.subr.mxu0 0.0
      %457 = vmatpush2.msra.mxu0 0.0
      %458 = vmatprep.mubr.f32.mxu0 0.0
      %459 = vmatmul.mubr.f32.gmra.mxu0 %v386
      %v460 = vpop.f32.mrf.mxu0
      %v461 = vadd.f32 0.0, %v460
      %v462 = vpop.f32.mrf.mxu0
      %463 = vmatprep.mubr.f32.mxu0 0.0
      %464 = vmatmul.mubr.f32.gmra.mxu0 %v389
      %v465 = vpop.f32.mrf.mxu0
      %v466 = vadd.f32 0.0, %v465
      %v467 = vpop.f32.mrf.mxu0
      %468 = vmatprep.mubr.f32.mxu0 0.0
      %469 = vmatmul.mubr.f32.gmra.mxu0 %v392
      %v470 = vpop.f32.mrf.mxu0
      %v471 = vadd.f32 0.0, %v470
      %v472 = vpop.f32.mrf.mxu0
      %473 = vdwg.mxu0
      %v474 = vadd.f32 %v360, %v461
      %v475 = vadd.f32 %v365, %v466
      %v476 = vadd.f32 %v370, %v471
      %v477 = vld [vmem:[%s165 + $0x6] sm:$0xff]
      %v478 = vld [vmem:[%s165 + $0xe] sm:$0xff]
      %v479 = vld [vmem:[%s165 + $0x16] sm:$0xf]
      %s480 = scalar_lea.vmem %s1, 192
      %v481 = vld [vmem:[%s480] sm:$0xff]
      %v482 = vld [vmem:[%s480 + $0x8] sm:$0xff]
      %v483 = vld [vmem:[%s480 + $0x10] sm:$0xff]
      %v484 = vld [vmem:[%s480 + $0x18] sm:$0xff]
      %v485 = vld [vmem:[%s480 + $0x20] sm:$0xff]
      %v486 = vld [vmem:[%s480 + $0x28] sm:$0xff]
      %v487 = vld [vmem:[%s480 + $0x30] sm:$0xff]
      %v488 = vld [vmem:[%s480 + $0x38] sm:$0xff]
      %v490 = vsel %vm194, %v477, 0
      %v493 = vsel %vm194, %v478, 0
      %v496 = vsel %vm194, %v479, 0
      %498 = vmatprep.subr.mxu0 0.0
      %499 = vmatpush1.msra.mxu0 0.0
      %500 = vmatprep.subr.mxu0 0.0
      %501 = vmatpush1.msra.mxu0 0.0
      %502 = vmatprep.subr.mxu0 0.0
      %503 = vmatpush1.msra.mxu0 0.0
      %504 = vmatprep.subr.mxu0 0.0
      %505 = vmatpush1.msra.mxu0 0.0
      %506 = vmatprep.subr.mxu0 0.0
      %507 = vmatpush1.msra.mxu0 0.0
      %508 = vmatprep.subr.mxu0 0.0
      %509 = vmatpush1.msra.mxu0 0.0
      %510 = vmatprep.subr.mxu0 0.0
      %511 = vmatpush1.msra.mxu0 0.0
      %512 = vmatprep.subr.mxu0 0.0
      %513 = vmatpush1.msra.mxu0 0.0
      %514 = vmatprep.subr.mxu0 0.0
      %515 = vmatpush1.msra.mxu0 %v488
      %516 = vmatprep.subr.mxu0 0.0
      %517 = vmatpush1.msra.mxu0 %v487
      %518 = vmatprep.subr.mxu0 0.0
      %519 = vmatpush1.msra.mxu0 %v486
      %520 = vmatprep.subr.mxu0 0.0
      %521 = vmatpush1.msra.mxu0 %v485
      %522 = vmatprep.subr.mxu0 0.0
      %523 = vmatpush1.msra.mxu0 %v484
      %524 = vmatprep.subr.mxu0 0.0
      %525 = vmatpush1.msra.mxu0 %v483
      %526 = vmatprep.subr.mxu0 0.0
      %527 = vmatpush1.msra.mxu0 %v482
      %528 = vmatprep.subr.mxu0 0.0
      %529 = vmatpush1.msra.mxu0 %v481
      %530 = vmatprep.subr.mxu0 0.0
      %531 = vmatpush2.msra.mxu0 0.0
      %532 = vmatprep.subr.mxu0 0.0
      %533 = vmatpush2.msra.mxu0 0.0
      %534 = vmatprep.subr.mxu0 0.0
      %535 = vmatpush2.msra.mxu0 0.0
      %536 = vmatprep.subr.mxu0 0.0
      %537 = vmatpush2.msra.mxu0 0.0
      %538 = vmatprep.subr.mxu0 0.0
      %539 = vmatpush2.msra.mxu0 0.0
      %540 = vmatprep.subr.mxu0 0.0
      %541 = vmatpush2.msra.mxu0 0.0
      %542 = vmatprep.subr.mxu0 0.0
      %543 = vmatpush2.msra.mxu0 0.0
      %544 = vmatprep.subr.mxu0 0.0
      %545 = vmatpush2.msra.mxu0 0.0
      %546 = vmatprep.subr.mxu0 0.0
      %547 = vmatpush2.msra.mxu0 0.0
      %548 = vmatprep.subr.mxu0 0.0
      %549 = vmatpush2.msra.mxu0 0.0
      %550 = vmatprep.subr.mxu0 0.0
      %551 = vmatpush2.msra.mxu0 0.0
      %552 = vmatprep.subr.mxu0 0.0
      %553 = vmatpush2.msra.mxu0 0.0
      %554 = vmatprep.subr.mxu0 0.0
      %555 = vmatpush2.msra.mxu0 0.0
      %556 = vmatprep.subr.mxu0 0.0
      %557 = vmatpush2.msra.mxu0 0.0
      %558 = vmatprep.subr.mxu0 0.0
      %559 = vmatpush2.msra.mxu0 0.0
      %560 = vmatprep.subr.mxu0 0.0
      %561 = vmatpush2.msra.mxu0 0.0
      %562 = vmatprep.mubr.f32.mxu0 0.0
      %563 = vmatmul.mubr.f32.gmra.mxu0 %v490
      %v564 = vpop.f32.mrf.mxu0
      %v565 = vadd.f32 0.0, %v564
      %v566 = vpop.f32.mrf.mxu0
      %567 = vmatprep.mubr.f32.mxu0 0.0
      %568 = vmatmul.mubr.f32.gmra.mxu0 %v493
      %v569 = vpop.f32.mrf.mxu0
      %v570 = vadd.f32 0.0, %v569
      %v571 = vpop.f32.mrf.mxu0
      %572 = vmatprep.mubr.f32.mxu0 0.0
      %573 = vmatmul.mubr.f32.gmra.mxu0 %v496
      %v574 = vpop.f32.mrf.mxu0
      %v575 = vadd.f32 0.0, %v574
      %v576 = vpop.f32.mrf.mxu0
      %577 = vdwg.mxu0
      %v578 = vadd.f32 %v474, %v565
      %v579 = vadd.f32 %v475, %v570
      %v580 = vadd.f32 %v476, %v575
      %v581 = vld [vmem:[%s2] sm:$0x1]
      %v583 = vlaneseq
      %v584 = vshrl.u32 %v583, 7
      %v585 = vsub.s32 0, %v584
      %v586 = vrot.slane %v581, %v585
      %v588 = vadd.f32 %v578, %v586
      %v589 = vadd.f32 %v579, %v586
      %v590 = vadd.f32 %v580, %v586
      %v591 = vmax.f32 %v588, 0.0
      %v592 = vmax.f32 %v589, 0.0
      %v593 = vmax.f32 %v590, 0.0
      %vm594 = vcmask 261120
      %595 = vst.msk [vmem:[%s170] sm:$0xff] %vm594, %v591
      %596 = vst.msk [vmem:[%s170 + $0x8] sm:$0xff] %vm594, %v592
      %vm597 = vcmask 257024
      %598 = vst.msk [vmem:[%s170 + $0x10] sm:$0xf] %vm597, %v593
      %p599 = scmp.lt.s32.totalorder %s14, 1
      %s600 = scalar_select %p599, %s14, 1
      %s601 = smul.addr %s600, 3
      %s602 = smul.addr %s601, 8
      %s603 = scalar_lea.vmem %s3, %s602
      // Predicated region
      $region33: #{encoder_forward.6} parent=31 // pred_check
        %p604 = pneg %p100
      $region34: #{encoder_forward.6} parent=31 // pred_check_branch
        %606 = sbr.rel (%p604) target = $region36
      $region35: #{encoder_forward.6} parent=31 // pred_region
        _
      $region36: #{encoder_forward.6} parent=31 // pred_fallthru
        _
    $region32: #{encoder_forward.6} parent=5 // pred_fallthru
      _
    %p607 = scmp.le.s32.totalorder 2, %s9
    // Predicated region
    $region37: #{encoder_forward.6} parent=5 // pred_check
      %p608 = pneg %p607
    $region38: #{encoder_forward.6} parent=5 // pred_check_branch
      %610 = sbr.rel (%p608) target = $region40
    $region39: #{encoder_forward.6} parent=5 // pred_region
      %s611 = ssub.s32 %s9, 2
      // Predicated region
      $region41: #{encoder_forward.6} parent=39 // pred_check
        %p612 = pneg %p106
      $region42: #{encoder_forward.6} parent=39 // pred_check_branch
        %614 = sbr.rel (%p612) target = $region44
      $region43: #{encoder_forward.6} parent=39 // pred_region
        %p615 = scmp.lt.s32.totalorder %s15, 1
        %s616 = scalar_select %p615, %s15, 1
        %s617 = smul.addr %s616, 3
        %s618 = smul.addr %s617, 8
        %s619 = scalar_lea.vmem %s3, %s618
      $region44: #{encoder_forward.6} parent=39 // pred_fallthru
        _
    $region40: #{encoder_forward.6} parent=5 // pred_fallthru
      _
  $region6: #{encoder_forward.6} parent=0 // loop_footer
    %s13 = sadd.s32 1, %s9
  $region7: #{encoder_forward.6} parent=0 // loop_footer_branch
    %8 = sbr.rel target = $region3
  $region8: #{encoder_forward.6} parent=0 // loop_exit
    _

// kernel: encoder_forward.7
$region0: #{encoder_forward.7}
  #allocation0 [shape = 'u32[]', space=smem, size = 0x4, offset = 0x4, fixed_abs, tag = 'smem constant byte address 0x4 - core index']
  #allocation1 [shape = 'u32[144,128]{1,0:T(1,128)}', space=vmem, size = 0x12000, scoped, tag = 'internal scratch']
  %s0 = inlined_call_operand.vmem [shape: f32[2,10,128], index: 0, kind: input, shape index: {}]
  %s1 = inlined_call_operand.vmem [shape: f32[4,128,64], index: 1, kind: input, shape index: {}]
  %s2 = inlined_call_operand.vmem [shape: f32[1,64], index: 2, kind: input, shape index: {}]
  %s3 = inlined_call_operand.vmem [shape: f32[2,6,64], index: 3, kind: output, shape index: {}]
  %s4 = sld [smem:[#allocation0]]
  $region45: #{encoder_forward.7} parent=0
    _
  %s6 = ssub.s32 1, %s4
  %s7 = scalar_select 0, %s6, %s4
  loop: start=0, step=1, limit=4
  $region2: #{encoder_forward.7} parent=0 // loop_pre_header
    _
  $region3: #{encoder_forward.7} parent=0 // loop_header
    %s9 = sphi 0, %s13
    %p10 = scmp.ge.s32.totalorder %s9, 4
    %s19 = sphi 0, %s21
    %s22 = sphi 0, %s19
    %s23 = sphi 0, %s22
    %s39 = sphi 0, %s23
    %s43 = sphi 0, %s43
    %s45 = sphi 0, %s43
    %s46 = sphi 0, %s45
    %s60 = sphi 0, %s46
    %s64 = sphi 0, %s64
    %s66 = sphi 0, %s64
    %s67 = sphi 0, %s66
    %s81 = sphi 0, %s67
    %s87 = sphi 0, %s89
    %s90 = sphi 0, %s87
    %s91 = sphi 0, %s90
    %s107 = sphi 0, %s91
  $region4: #{encoder_forward.7} parent=0 // loop_header_branch
    %12 = sbr.rel (%p10) target = $region8
  $region5: #{encoder_forward.7} parent=0 // loop_body
    %s14 = ssub.s32 %s9, 1
    %s15 = ssub.s32 %s9, 2
    %s16 = sadd.s32 %s9, 1
    %s17 = ssub.s32 %s9, %s16
    %p18 = scmp.eq.s32.totalorder %s17, 0
    %s20 = sadd.s32 %s19, 1
    %s21 = scalar_select %p18, %s19, %s20
    %p24 = pneg %p18
    %p25 = scmp.eq.s32.totalorder %s9, 1
    %p26 = por %p24, %p25
    %p27 = scmp.ne.s32.totalorder %s19, %s22
    %p28 = scmp.eq.s32.totalorder %s9, 0
    %p29 = por %p27, %p28
    %p30 = scmp.ne.s32.totalorder %s19, %s22
    %p31 = scmp.eq.s32.totalorder %s14, 1
    %p32 = por %p30, %p31
    %p33 = scmp.ne.s32.totalorder %s22, %s23
    %p34 = scmp.eq.s32.totalorder %s14, 0
    %p35 = por %p33, %p34
    %p36 = scmp.ne.s32.totalorder %s22, %s23
    %p37 = scmp.eq.s32.totalorder %s15, 1
    %p38 = por %p36, %p37
    %p40 = scmp.ne.s32.totalorder %s23, %s39
    %p41 = scmp.eq.s32.totalorder %s15, 0
    %p42 = por %p40, %p41
    %s44 = sadd.s32 %s43, 1
    %p47 = scmp.eq.s32.totalorder %s9, 1
    %p48 = scmp.ne.s32.totalorder %s43, %s45
    %p49 = scmp.eq.s32.totalorder %s9, 0
    %p50 = por %p48, %p49
    %p51 = scmp.ne.s32.totalorder %s43, %s45
    %p52 = scmp.eq.s32.totalorder %s14, 1
    %p53 = por %p51, %p52
    %p54 = scmp.ne.s32.totalorder %s45, %s46
    %p55 = scmp.eq.s32.totalorder %s14, 0
    %p56 = por %p54, %p55
    %p57 = scmp.ne.s32.totalorder %s45, %s46
    %p58 = scmp.eq.s32.totalorder %s15, 1
    %p59 = por %p57, %p58
    %p61 = scmp.ne.s32.totalorder %s46, %s60
    %p62 = scmp.eq.s32.totalorder %s15, 0
    %p63 = por %p61, %p62
    %s65 = sadd.s32 %s64, 1
    %p68 = scmp.eq.s32.totalorder %s9, 1
    %p69 = scmp.ne.s32.totalorder %s64, %s66
    %p70 = scmp.eq.s32.totalorder %s9, 0
    %p71 = por %p69, %p70
    %p72 = scmp.ne.s32.totalorder %s64, %s66
    %p73 = scmp.eq.s32.totalorder %s14, 1
    %p74 = por %p72, %p73
    %p75 = scmp.ne.s32.totalorder %s66, %s67
    %p76 = scmp.eq.s32.totalorder %s14, 0
    %p77 = por %p75, %p76
    %p78 = scmp.ne.s32.totalorder %s66, %s67
    %p79 = scmp.eq.s32.totalorder %s15, 1
    %p80 = por %p78, %p79
    %p82 = scmp.ne.s32.totalorder %s67, %s81
    %p83 = scmp.eq.s32.totalorder %s15, 0
    %p84 = por %p82, %p83
    %s85 = ssub.s32 %s9, %s16
    %p86 = scmp.eq.s32.totalorder %s85, 0
    %s88 = sadd.s32 %s87, 1
    %s89 = scalar_select %p86, %s87, %s88
    %p92 = pneg %p86
    %p93 = scmp.eq.s32.totalorder %s9, 1
    %p94 = por %p92, %p93
    %p95 = scmp.ne.s32.totalorder %s87, %s90
    %p96 = scmp.eq.s32.totalorder %s9, 0
    %p97 = por %p95, %p96
    %p98 = scmp.ne.s32.totalorder %s87, %s90
    %p99 = scmp.eq.s32.totalorder %s14, 1
    %p100 = por %p98, %p99
    %p101 = scmp.ne.s32.totalorder %s90, %s91
    %p102 = scmp.eq.s32.totalorder %s14, 0
    %p103 = por %p101, %p102
    %p104 = scmp.ne.s32.totalorder %s90, %s91
    %p105 = scmp.eq.s32.totalorder %s15, 1
    %p106 = por %p104, %p105
    %p108 = scmp.ne.s32.totalorder %s91, %s107
    %p109 = scmp.eq.s32.totalorder %s15, 0
    %p110 = por %p108, %p109
    %p111 = scmp.le.s32.totalorder 1, %s9
    %p112 = scmp.lt.s32.totalorder %s9, 3
    %p113 = pnand %p111, %p112
    %p114 = pneg %p113
    // Predicated region
    $region9: #{encoder_forward.7} parent=5 // pred_check
      _
    $region10: #{encoder_forward.7} parent=5 // pred_check_branch
      %116 = sbr.rel (%p113) target = $region12
    $region11: #{encoder_forward.7} parent=5 // pred_region
      %s117 = ssub.s32 %s9, 1
      // Predicated region
      $region13: #{encoder_forward.7} parent=11 // pred_check
        %p118 = pneg %p56
      $region14: #{encoder_forward.7} parent=11 // pred_check_branch
        %120 = sbr.rel (%p118) target = $region16
      $region15: #{encoder_forward.7} parent=11 // pred_region
        _
      $region16: #{encoder_forward.7} parent=11 // pred_fallthru
        _
      // Predicated region
      $region17: #{encoder_forward.7} parent=11 // pred_check
        %p121 = pneg %p77
      $region18: #{encoder_forward.7} parent=11 // pred_check_branch
        %123 = sbr.rel (%p121) target = $region20
      $region19: #{encoder_forward.7} parent=11 // pred_region
        _
      $region20: #{encoder_forward.7} parent=11 // pred_fallthru
        _
    $region12: #{encoder_forward.7} parent=5 // pred_fallthru
      _
    %p124 = scmp.lt.s32.totalorder %s9, 2
    // Predicated region
    $region21: #{encoder_forward.7} parent=5 // pred_check
      %p125 = pneg %p124
    $region22: #{encoder_forward.7} parent=5 // pred_check_branch
      %127 = sbr.rel (%p125) target = $region24
    $region23: #{encoder_forward.7} parent=5 // pred_region
      // Predicated region
      $region25: #{encoder_forward.7} parent=23 // pred_check
        %p128 = pneg %p29
      $region26: #{encoder_forward.7} parent=23 // pred_check_branch
        %130 = sbr.rel (%p128) target = $region28
      $region27: #{encoder_forward.7} parent=23 // pred_region
        %p131 = scmp.lt.s32.totalorder %s9, 1
        %s132 = scalar_select %p131, %s9, 1
        %s133 = smul.addr %s132, 2
        %s134 = smul.addr %s133, 8
        %s135 = scalar_lea.vmem %s0, %s134
      $region28: #{encoder_forward.7} parent=23 // pred_fallthru
        _
    $region24: #{encoder_forward.7} parent=5 // pred_fallthru
      _
    %p136 = scmp.le.s32.totalorder 1, %s9
    %p137 = scmp.lt.s32.totalorder %s9, 3
    %p138 = pnand %p136, %p137
    %p139 = pneg %p138
    // Predicated region
    $region29: #{encoder_forward.7} parent=5 // pred_check
      _
    $region30: #{encoder_forward.7} parent=5 // pred_check_branch
      %141 = sbr.rel (%p138) target = $region32
    $region31: #{encoder_forward.7} parent=5 // pred_region
      %s142 = ssub.s32 %s9, 1
      %p143 = scmp.lt.s32.totalorder %s14, 1
      %s144 = scalar_select %p143, %s14, 1
      %s145 = smul.addr %s144, 2
      %s146 = smul.addr %s145, 8
      %s147 = scalar_lea.vmem %s0, %s146
      %p148 = pneg %p35
      %p149 = pneg %p32
      %p150 = pneg %p56
      %p151 = pneg %p53
      %p152 = pneg %p77
      %p153 = pneg %p74
      %p154 = pneg %p103
      %p155 = pneg %p100
      %p156 = scmp.lt.s32.totalorder %s14, 1
      %s157 = scalar_select %p156, %s14, 1
      %s158 = smul.addr %s157, 8
      %s159 = scalar_lea.vmem %s3, %s158
      %p160 = scmp.lt.s32.totalorder %s14, 1
      %s161 = scalar_select %p160, %s14, 1
      %s162 = smul.addr %s161, 2
      %s163 = smul.addr %s162, 8
      %s164 = scalar_lea.vmem %s0, %s163
      %p165 = scmp.lt.s32.totalorder %s14, 1
      %s166 = scalar_select %p165, %s14, 1
      %s167 = smul.addr %s166, 8
      %s168 = scalar_lea.vmem %s3, %s167
      %v169 = vld [vmem:[%s164] sm:$0x3f]
      %v170 = vld [vmem:[%s1] sm:$0xff]
      %v171 = vld [vmem:[%s1 + $0x8] sm:$0xff]
      %v172 = vld [vmem:[%s1 + $0x10] sm:$0xff]
      %v173 = vld [vmem:[%s1 + $0x18] sm:$0xff]
      %v174 = vld [vmem:[%s1 + $0x20] sm:$0xff]
      %v175 = vld [vmem:[%s1 + $0x28] sm:$0xff]
      %v176 = vld [vmem:[%s1 + $0x30] sm:$0xff]
      %v177 = vld [vmem:[%s1 + $0x38] sm:$0xff]
      %v178 = vld [vmem:[%s1 + $0x40] sm:$0xff]
      %v179 = vld [vmem:[%s1 + $0x48] sm:$0xff]
      %v180 = vld [vmem:[%s1 + $0x50] sm:$0xff]
      %v181 = vld [vmem:[%s1 + $0x58] sm:$0xff]
      %v182 = vld [vmem:[%s1 + $0x60] sm:$0xff]
      %v183 = vld [vmem:[%s1 + $0x68] sm:$0xff]
      %v184 = vld [vmem:[%s1 + $0x70] sm:$0xff]
      %v185 = vld [vmem:[%s1 + $0x78] sm:$0xff]
      %v186 = vld [vmem:[%s164 + $0x1] sm:$0x3f]
      %s187 = scalar_lea.vmem %s1, 128
      %v188 = vld [vmem:[%s187] sm:$0xff]
      %v189 = vld [vmem:[%s187 + $0x8] sm:$0xff]
      %v190 = vld [vmem:[%s187 + $0x10] sm:$0xff]
      %v191 = vld [vmem:[%s187 + $0x18] sm:$0xff]
      %v192 = vld [vmem:[%s187 + $0x20] sm:$0xff]
      %v193 = vld [vmem:[%s187 + $0x28] sm:$0xff]
      %v194 = vld [vmem:[%s187 + $0x30] sm:$0xff]
      %v195 = vld [vmem:[%s187 + $0x38] sm:$0xff]
      %v196 = vld [vmem:[%s187 + $0x40] sm:$0xff]
      %v197 = vld [vmem:[%s187 + $0x48] sm:$0xff]
      %v198 = vld [vmem:[%s187 + $0x50] sm:$0xff]
      %v199 = vld [vmem:[%s187 + $0x58] sm:$0xff]
      %v200 = vld [vmem:[%s187 + $0x60] sm:$0xff]
      %v201 = vld [vmem:[%s187 + $0x68] sm:$0xff]
      %v202 = vld [vmem:[%s187 + $0x70] sm:$0xff]
      %v203 = vld [vmem:[%s187 + $0x78] sm:$0xff]
      %204 = vmatprep.subr.mxu0 0.0
      %205 = vmatpush1.msra.mxu0 %v203
      %206 = vmatprep.subr.mxu0 0.0
      %207 = vmatpush1.msra.mxu0 %v202
      %208 = vmatprep.subr.mxu0 0.0
      %209 = vmatpush1.msra.mxu0 %v201
      %210 = vmatprep.subr.mxu0 0.0
      %211 = vmatpush1.msra.mxu0 %v200
      %212 = vmatprep.subr.mxu0 0.0
      %213 = vmatpush1.msra.mxu0 %v199
      %214 = vmatprep.subr.mxu0 0.0
      %215 = vmatpush1.msra.mxu0 %v198
      %216 = vmatprep.subr.mxu0 0.0
      %217 = vmatpush1.msra.mxu0 %v197
      %218 = vmatprep.subr.mxu0 0.0
      %219 = vmatpush1.msra.mxu0 %v196
      %220 = vmatprep.subr.mxu0 0.0
      %221 = vmatpush1.msra.mxu0 %v195
      %222 = vmatprep.subr.mxu0 0.0
      %223 = vmatpush1.msra.mxu0 %v194
      %224 = vmatprep.subr.mxu0 0.0
      %225 = vmatpush1.msra.mxu0 %v193
      %226 = vmatprep.subr.mxu0 0.0
      %227 = vmatpush1.msra.mxu0 %v192
      %228 = vmatprep.subr.mxu0 0.0
      %229 = vmatpush1.msra.mxu0 %v191
      %230 = vmatprep.subr.mxu0 0.0
      %231 = vmatpush1.msra.mxu0 %v190
      %232 = vmatprep.subr.mxu0 0.0
      %233 = vmatpush1.msra.mxu0 %v189
      %234 = vmatprep.subr.mxu0 0.0
      %235 = vmatpush1.msra.mxu0 %v188
      %236 = vmatprep.subr.mxu0 0.0
      %237 = vmatpush2.msra.mxu0 0.0
      %238 = vmatprep.subr.mxu0 0.0
      %239 = vmatpush2.msra.mxu0 0.0
      %240 = vmatprep.subr.mxu0 0.0
      %241 = vmatpush2.msra.mxu0 0.0
      %242 = vmatprep.subr.mxu0 0.0
      %243 = vmatpush2.msra.mxu0 0.0
      %244 = vmatprep.subr.mxu0 0.0
      %245 = vmatpush2.msra.mxu0 0.0
      %246 = vmatprep.subr.mxu0 0.0
      %247 = vmatpush2.msra.mxu0 0.0
      %248 = vmatprep.subr.mxu0 0.0
      %249 = vmatpush2.msra.mxu0 0.0
      %250 = vmatprep.subr.mxu0 0.0
      %251 = vmatpush2.msra.mxu0 0.0
      %252 = vmatprep.subr.mxu0 0.0
      %253 = vmatpush2.msra.mxu0 0.0
      %254 = vmatprep.subr.mxu0 0.0
      %255 = vmatpush2.msra.mxu0 0.0
      %256 = vmatprep.subr.mxu0 0.0
      %257 = vmatpush2.msra.mxu0 0.0
      %258 = vmatprep.subr.mxu0 0.0
      %259 = vmatpush2.msra.mxu0 0.0
      %260 = vmatprep.subr.mxu0 0.0
      %261 = vmatpush2.msra.mxu0 0.0
      %262 = vmatprep.subr.mxu0 0.0
      %263 = vmatpush2.msra.mxu0 0.0
      %264 = vmatprep.subr.mxu0 0.0
      %265 = vmatpush2.msra.mxu0 0.0
      %266 = vmatprep.subr.mxu0 0.0
      %267 = vmatpush2.msra.mxu0 0.0
      %268 = vmatprep.mubr.f32.mxu0 0.0
      %269 = vmatmul.mubr.f32.gmra.mxu0 %v186
      %v270 = vpop.f32.mrf.mxu0
      %v271 = vadd.f32 0.0, %v270
      %v272 = vpop.f32.mrf.mxu0
      %273 = vdwg.mxu0
      %274 = vmatprep.subr.mxu0 0.0
      %275 = vmatpush1.msra.mxu0 %v185
      %276 = vmatprep.subr.mxu0 0.0
      %277 = vmatpush1.msra.mxu0 %v184
      %278 = vmatprep.subr.mxu0 0.0
      %279 = vmatpush1.msra.mxu0 %v183
      %280 = vmatprep.subr.mxu0 0.0
      %281 = vmatpush1.msra.mxu0 %v182
      %282 = vmatprep.subr.mxu0 0.0
      %283 = vmatpush1.msra.mxu0 %v181
      %284 = vmatprep.subr.mxu0 0.0
      %285 = vmatpush1.msra.mxu0 %v180
      %286 = vmatprep.subr.mxu0 0.0
      %287 = vmatpush1.msra.mxu0 %v179
      %288 = vmatprep.subr.mxu0 0.0
      %289 = vmatpush1.msra.mxu0 %v178
      %290 = vmatprep.subr.mxu0 0.0
      %291 = vmatpush1.msra.mxu0 %v177
      %292 = vmatprep.subr.mxu0 0.0
      %293 = vmatpush1.msra.mxu0 %v176
      %294 = vmatprep.subr.mxu0 0.0
      %295 = vmatpush1.msra.mxu0 %v175
      %296 = vmatprep.subr.mxu0 0.0
      %297 = vmatpush1.msra.mxu0 %v174
      %298 = vmatprep.subr.mxu0 0.0
      %299 = vmatpush1.msra.mxu0 %v173
      %300 = vmatprep.subr.mxu0 0.0
      %301 = vmatpush1.msra.mxu0 %v172
      %302 = vmatprep.subr.mxu0 0.0
      %303 = vmatpush1.msra.mxu0 %v171
      %304 = vmatprep.subr.mxu0 0.0
      %305 = vmatpush1.msra.mxu0 %v170
      %306 = vmatprep.subr.mxu0 0.0
      %307 = vmatpush2.msra.mxu0 0.0
      %308 = vmatprep.subr.mxu0 0.0
      %309 = vmatpush2.msra.mxu0 0.0
      %310 = vmatprep.subr.mxu0 0.0
      %311 = vmatpush2.msra.mxu0 0.0
      %312 = vmatprep.subr.mxu0 0.0
      %313 = vmatpush2.msra.mxu0 0.0
      %314 = vmatprep.subr.mxu0 0.0
      %315 = vmatpush2.msra.mxu0 0.0
      %316 = vmatprep.subr.mxu0 0.0
      %317 = vmatpush2.msra.mxu0 0.0
      %318 = vmatprep.subr.mxu0 0.0
      %319 = vmatpush2.msra.mxu0 0.0
      %320 = vmatprep.subr.mxu0 0.0
      %321 = vmatpush2.msra.mxu0 0.0
      %322 = vmatprep.subr.mxu0 0.0
      %323 = vmatpush2.msra.mxu0 0.0
      %324 = vmatprep.subr.mxu0 0.0
      %325 = vmatpush2.msra.mxu0 0.0
      %326 = vmatprep.subr.mxu0 0.0
      %327 = vmatpush2.msra.mxu0 0.0
      %328 = vmatprep.subr.mxu0 0.0
      %329 = vmatpush2.msra.mxu0 0.0
      %330 = vmatprep.subr.mxu0 0.0
      %331 = vmatpush2.msra.mxu0 0.0
      %332 = vmatprep.subr.mxu0 0.0
      %333 = vmatpush2.msra.mxu0 0.0
      %334 = vmatprep.subr.mxu0 0.0
      %335 = vmatpush2.msra.mxu0 0.0
      %336 = vmatprep.subr.mxu0 0.0
      %337 = vmatpush2.msra.mxu0 0.0
      %338 = vmatprep.mubr.f32.mxu0 0.0
      %339 = vmatmul.mubr.f32.gmra.mxu0 %v169
      %v340 = vpop.f32.mrf.mxu0
      %v341 = vadd.f32 %v271, %v340
      %v342 = vpop.f32.mrf.mxu0
      %343 = vdwg.mxu0
      %v344 = vld [vmem:[%s164 + $0x3] sm:$0x3f]
      %s345 = scalar_lea.vmem %s1, 256
      %v346 = vld [vmem:[%s345] sm:$0xff]
      %v347 = vld [vmem:[%s345 + $0x8] sm:$0xff]
      %v348 = vld [vmem:[%s345 + $0x10] sm:$0xff]
      %v349 = vld [vmem:[%s345 + $0x18] sm:$0xff]
      %v350 = vld [vmem:[%s345 + $0x20] sm:$0xff]
      %v351 = vld [vmem:[%s345 + $0x28] sm:$0xff]
      %v352 = vld [vmem:[%s345 + $0x30] sm:$0xff]
      %v353 = vld [vmem:[%s345 + $0x38] sm:$0xff]
      %v354 = vld [vmem:[%s345 + $0x40] sm:$0xff]
      %v355 = vld [vmem:[%s345 + $0x48] sm:$0xff]
      %v356 = vld [vmem:[%s345 + $0x50] sm:$0xff]
      %v357 = vld [vmem:[%s345 + $0x58] sm:$0xff]
      %v358 = vld [vmem:[%s345 + $0x60] sm:$0xff]
      %v359 = vld [vmem:[%s345 + $0x68] sm:$0xff]
      %v360 = vld [vmem:[%s345 + $0x70] sm:$0xff]
      %v361 = vld [vmem:[%s345 + $0x78] sm:$0xff]
      %362 = vmatprep.subr.mxu0 0.0
      %363 = vmatpush1.msra.mxu0 %v361
      %364 = vmatprep.subr.mxu0 0.0
      %365 = vmatpush1.msra.mxu0 %v360
      %366 = vmatprep.subr.mxu0 0.0
      %367 = vmatpush1.msra.mxu0 %v359
      %368 = vmatprep.subr.mxu0 0.0
      %369 = vmatpush1.msra.mxu0 %v358
      %370 = vmatprep.subr.mxu0 0.0
      %371 = vmatpush1.msra.mxu0 %v357
      %372 = vmatprep.subr.mxu0 0.0
      %373 = vmatpush1.msra.mxu0 %v356
      %374 = vmatprep.subr.mxu0 0.0
      %375 = vmatpush1.msra.mxu0 %v355
      %376 = vmatprep.subr.mxu0 0.0
      %377 = vmatpush1.msra.mxu0 %v354
      %378 = vmatprep.subr.mxu0 0.0
      %379 = vmatpush1.msra.mxu0 %v353
      %380 = vmatprep.subr.mxu0 0.0
      %381 = vmatpush1.msra.mxu0 %v352
      %382 = vmatprep.subr.mxu0 0.0
      %383 = vmatpush1.msra.mxu0 %v351
      %384 = vmatprep.subr.mxu0 0.0
      %385 = vmatpush1.msra.mxu0 %v350
      %386 = vmatprep.subr.mxu0 0.0
      %387 = vmatpush1.msra.mxu0 %v349
      %388 = vmatprep.subr.mxu0 0.0
      %389 = vmatpush1.msra.mxu0 %v348
      %390 = vmatprep.subr.mxu0 0.0
      %391 = vmatpush1.msra.mxu0 %v347
      %392 = vmatprep.subr.mxu0 0.0
      %393 = vmatpush1.msra.mxu0 %v346
      %394 = vmatprep.subr.mxu0 0.0
      %395 = vmatpush2.msra.mxu0 0.0
      %396 = vmatprep.subr.mxu0 0.0
      %397 = vmatpush2.msra.mxu0 0.0
      %398 = vmatprep.subr.mxu0 0.0
      %399 = vmatpush2.msra.mxu0 0.0
      %400 = vmatprep.subr.mxu0 0.0
      %401 = vmatpush2.msra.mxu0 0.0
      %402 = vmatprep.subr.mxu0 0.0
      %403 = vmatpush2.msra.mxu0 0.0
      %404 = vmatprep.subr.mxu0 0.0
      %405 = vmatpush2.msra.mxu0 0.0
      %406 = vmatprep.subr.mxu0 0.0
      %407 = vmatpush2.msra.mxu0 0.0
      %408 = vmatprep.subr.mxu0 0.0
      %409 = vmatpush2.msra.mxu0 0.0
      %410 = vmatprep.subr.mxu0 0.0
      %411 = vmatpush2.msra.mxu0 0.0
      %412 = vmatprep.subr.mxu0 0.0
      %413 = vmatpush2.msra.mxu0 0.0
      %414 = vmatprep.subr.mxu0 0.0
      %415 = vmatpush2.msra.mxu0 0.0
      %416 = vmatprep.subr.mxu0 0.0
      %417 = vmatpush2.msra.mxu0 0.0
      %418 = vmatprep.subr.mxu0 0.0
      %419 = vmatpush2.msra.mxu0 0.0
      %420 = vmatprep.subr.mxu0 0.0
      %421 = vmatpush2.msra.mxu0 0.0
      %422 = vmatprep.subr.mxu0 0.0
      %423 = vmatpush2.msra.mxu0 0.0
      %424 = vmatprep.subr.mxu0 0.0
      %425 = vmatpush2.msra.mxu0 0.0
      %426 = vmatprep.mubr.f32.mxu0 0.0
      %427 = vmatmul.mubr.f32.gmra.mxu0 %v344
      %v428 = vpop.f32.mrf.mxu0
      %v429 = vadd.f32 0.0, %v428
      %v430 = vpop.f32.mrf.mxu0
      %431 = vdwg.mxu0
      %v432 = vadd.f32 %v341, %v429
      %v433 = vld [vmem:[%s164 + $0x4] sm:$0x3f]
      %s434 = scalar_lea.vmem %s1, 384
      %v435 = vld [vmem:[%s434] sm:$0xff]
      %v436 = vld [vmem:[%s434 + $0x8] sm:$0xff]
      %v437 = vld [vmem:[%s434 + $0x10] sm:$0xff]
      %v438 = vld [vmem:[%s434 + $0x18] sm:$0xff]
      %v439 = vld [vmem:[%s434 + $0x20] sm:$0xff]
      %v440 = vld [vmem:[%s434 + $0x28] sm:$0xff]
      %v441 = vld [vmem:[%s434 + $0x30] sm:$0xff]
      %v442 = vld [vmem:[%s434 + $0x38] sm:$0xff]
      %v443 = vld [vmem:[%s434 + $0x40] sm:$0xff]
      %v444 = vld [vmem:[%s434 + $0x48] sm:$0xff]
      %v445 = vld [vmem:[%s434 + $0x50] sm:$0xff]
      %v446 = vld [vmem:[%s434 + $0x58] sm:$0xff]
      %v447 = vld [vmem:[%s434 + $0x60] sm:$0xff]
      %v448 = vld [vmem:[%s434 + $0x68] sm:$0xff]
      %v449 = vld [vmem:[%s434 + $0x70] sm:$0xff]
      %v450 = vld [vmem:[%s434 + $0x78] sm:$0xff]
      %451 = vmatprep.subr.mxu0 0.0
      %452 = vmatpush1.msra.mxu0 %v450
      %453 = vmatprep.subr.mxu0 0.0
      %454 = vmatpush1.msra.mxu0 %v449
      %455 = vmatprep.subr.mxu0 0.0
      %456 = vmatpush1.msra.mxu0 %v448
      %457 = vmatprep.subr.mxu0 0.0
      %458 = vmatpush1.msra.mxu0 %v447
      %459 = vmatprep.subr.mxu0 0.0
      %460 = vmatpush1.msra.mxu0 %v446
      %461 = vmatprep.subr.mxu0 0.0
      %462 = vmatpush1.msra.mxu0 %v445
      %463 = vmatprep.subr.mxu0 0.0
      %464 = vmatpush1.msra.mxu0 %v444
      %465 = vmatprep.subr.mxu0 0.0
      %466 = vmatpush1.msra.mxu0 %v443
      %467 = vmatprep.subr.mxu0 0.0
      %468 = vmatpush1.msra.mxu0 %v442
      %469 = vmatprep.subr.mxu0 0.0
      %470 = vmatpush1.msra.mxu0 %v441
      %471 = vmatprep.subr.mxu0 0.0
      %472 = vmatpush1.msra.mxu0 %v440
      %473 = vmatprep.subr.mxu0 0.0
      %474 = vmatpush1.msra.mxu0 %v439
      %475 = vmatprep.subr.mxu0 0.0
      %476 = vmatpush1.msra.mxu0 %v438
      %477 = vmatprep.subr.mxu0 0.0
      %478 = vmatpush1.msra.mxu0 %v437
      %479 = vmatprep.subr.mxu0 0.0
      %480 = vmatpush1.msra.mxu0 %v436
      %481 = vmatprep.subr.mxu0 0.0
      %482 = vmatpush1.msra.mxu0 %v435
      %483 = vmatprep.subr.mxu0 0.0
      %484 = vmatpush2.msra.mxu0 0.0
      %485 = vmatprep.subr.mxu0 0.0
      %486 = vmatpush2.msra.mxu0 0.0
      %487 = vmatprep.subr.mxu0 0.0
      %488 = vmatpush2.msra.mxu0 0.0
      %489 = vmatprep.subr.mxu0 0.0
      %490 = vmatpush2.msra.mxu0 0.0
      %491 = vmatprep.subr.mxu0 0.0
      %492 = vmatpush2.msra.mxu0 0.0
      %493 = vmatprep.subr.mxu0 0.0
      %494 = vmatpush2.msra.mxu0 0.0
      %495 = vmatprep.subr.mxu0 0.0
      %496 = vmatpush2.msra.mxu0 0.0
      %497 = vmatprep.subr.mxu0 0.0
      %498 = vmatpush2.msra.mxu0 0.0
      %499 = vmatprep.subr.mxu0 0.0
      %500 = vmatpush2.msra.mxu0 0.0
      %501 = vmatprep.subr.mxu0 0.0
      %502 = vmatpush2.msra.mxu0 0.0
      %503 = vmatprep.subr.mxu0 0.0
      %504 = vmatpush2.msra.mxu0 0.0
      %505 = vmatprep.subr.mxu0 0.0
      %506 = vmatpush2.msra.mxu0 0.0
      %507 = vmatprep.subr.mxu0 0.0
      %508 = vmatpush2.msra.mxu0 0.0
      %509 = vmatprep.subr.mxu0 0.0
      %510 = vmatpush2.msra.mxu0 0.0
      %511 = vmatprep.subr.mxu0 0.0
      %512 = vmatpush2.msra.mxu0 0.0
      %513 = vmatprep.subr.mxu0 0.0
      %514 = vmatpush2.msra.mxu0 0.0
      %515 = vmatprep.mubr.f32.mxu0 0.0
      %516 = vmatmul.mubr.f32.gmra.mxu0 %v433
      %v517 = vpop.f32.mrf.mxu0
      %v518 = vadd.f32 0.0, %v517
      %v519 = vpop.f32.mrf.mxu0
      %520 = vdwg.mxu0
      %v521 = vadd.f32 %v432, %v518
      %v522 = vld [vmem:[%s2] sm:$0x1]
      %v524 = vlaneseq
      %v525 = vshrl.u32 %v524, 7
      %v526 = vsub.s32 0, %v525
      %v527 = vrot.slane %v522, %v526
      %v529 = vadd.f32 %v521, %v527
      %v530 = vmax.f32 %v529, 0.0
      %vm531 = vcmask 521216
      %532 = vst.msk [vmem:[%s168] sm:$0x3f] %vm531, %v530
      %p533 = scmp.lt.s32.totalorder %s14, 1
      %s534 = scalar_select %p533, %s14, 1
      %s535 = smul.addr %s534, 8
      %s536 = scalar_lea.vmem %s3, %s535
      // Predicated region
      $region33: #{encoder_forward.7} parent=31 // pred_check
        %p537 = pneg %p100
      $region34: #{encoder_forward.7} parent=31 // pred_check_branch
        %539 = sbr.rel (%p537) target = $region36
      $region35: #{encoder_forward.7} parent=31 // pred_region
        _
      $region36: #{encoder_forward.7} parent=31 // pred_fallthru
        _
    $region32: #{encoder_forward.7} parent=5 // pred_fallthru
      _
    %p540 = scmp.le.s32.totalorder 2, %s9
    // Predicated region
    $region37: #{encoder_forward.7} parent=5 // pred_check
      %p541 = pneg %p540
    $region38: #{encoder_forward.7} parent=5 // pred_check_branch
      %543 = sbr.rel (%p541) target = $region40
    $region39: #{encoder_forward.7} parent=5 // pred_region
      %s544 = ssub.s32 %s9, 2
      // Predicated region
      $region41: #{encoder_forward.7} parent=39 // pred_check
        %p545 = pneg %p106
      $region42: #{encoder_forward.7} parent=39 // pred_check_branch
        %547 = sbr.rel (%p545) target = $region44
      $region43: #{encoder_forward.7} parent=39 // pred_region
        %p548 = scmp.lt.s32.totalorder %s15, 1
        %s549 = scalar_select %p548, %s15, 1
        %s550 = smul.addr %s549, 8
        %s551 = scalar_lea.vmem %s3, %s550
      $region44: #{encoder_forward.7} parent=39 // pred_fallthru
        _
    $region40: #{encoder_forward.7} parent=5 // pred_fallthru
      _
  $region6: #{encoder_forward.7} parent=0 // loop_footer
    %s13 = sadd.s32 1, %s9
  $region7: #{encoder_forward.7} parent=0 // loop_footer_branch
    %8 = sbr.rel target = $region3
  $region8: #{encoder_forward.7} parent=0 // loop_exit
    _

// kernel: encoder_forward.8
$region0: #{encoder_forward.8}
  #allocation0 [shape = 'u32[]', space=smem, size = 0x4, offset = 0x4, fixed_abs, tag = 'smem constant byte address 0x4 - core index']
  #allocation1 [shape = 'u32[144,128]{1,0:T(1,128)}', space=vmem, size = 0x12000, scoped, tag = 'internal scratch']
  %s0 = inlined_call_operand.vmem [shape: f32[2,5,256], index: 0, kind: input, shape index: {}]
  %s1 = inlined_call_operand.vmem [shape: f32[4,256,128], index: 1, kind: input, shape index: {}]
  %s2 = inlined_call_operand.vmem [shape: f32[1,128], index: 2, kind: input, shape index: {}]
  %s3 = inlined_call_operand.vmem [shape: f32[2,2,128], index: 3, kind: output, shape index: {}]
  %s4 = sld [smem:[#allocation0]]
  $region45: #{encoder_forward.8} parent=0
    _
  %s6 = ssub.s32 1, %s4
  %s7 = scalar_select 0, %s6, %s4
  loop: start=0, step=1, limit=4
  $region2: #{encoder_forward.8} parent=0 // loop_pre_header
    _
  $region3: #{encoder_forward.8} parent=0 // loop_header
    %s9 = sphi 0, %s13
    %p10 = scmp.ge.s32.totalorder %s9, 4
    %s19 = sphi 0, %s21
    %s22 = sphi 0, %s19
    %s23 = sphi 0, %s22
    %s39 = sphi 0, %s23
    %s43 = sphi 0, %s43
    %s45 = sphi 0, %s43
    %s46 = sphi 0, %s45
    %s60 = sphi 0, %s46
    %s64 = sphi 0, %s64
    %s66 = sphi 0, %s64
    %s67 = sphi 0, %s66
    %s81 = sphi 0, %s67
    %s87 = sphi 0, %s89
    %s90 = sphi 0, %s87
    %s91 = sphi 0, %s90
    %s107 = sphi 0, %s91
  $region4: #{encoder_forward.8} parent=0 // loop_header_branch
    %12 = sbr.rel (%p10) target = $region8
  $region5: #{encoder_forward.8} parent=0 // loop_body
    %s14 = ssub.s32 %s9, 1
    %s15 = ssub.s32 %s9, 2
    %s16 = sadd.s32 %s9, 1
    %s17 = ssub.s32 %s9, %s16
    %p18 = scmp.eq.s32.totalorder %s17, 0
    %s20 = sadd.s32 %s19, 1
    %s21 = scalar_select %p18, %s19, %s20
    %p24 = pneg %p18
    %p25 = scmp.eq.s32.totalorder %s9, 1
    %p26 = por %p24, %p25
    %p27 = scmp.ne.s32.totalorder %s19, %s22
    %p28 = scmp.eq.s32.totalorder %s9, 0
    %p29 = por %p27, %p28
    %p30 = scmp.ne.s32.totalorder %s19, %s22
    %p31 = scmp.eq.s32.totalorder %s14, 1
    %p32 = por %p30, %p31
    %p33 = scmp.ne.s32.totalorder %s22, %s23
    %p34 = scmp.eq.s32.totalorder %s14, 0
    %p35 = por %p33, %p34
    %p36 = scmp.ne.s32.totalorder %s22, %s23
    %p37 = scmp.eq.s32.totalorder %s15, 1
    %p38 = por %p36, %p37
    %p40 = scmp.ne.s32.totalorder %s23, %s39
    %p41 = scmp.eq.s32.totalorder %s15, 0
    %p42 = por %p40, %p41
    %s44 = sadd.s32 %s43, 1
    %p47 = scmp.eq.s32.totalorder %s9, 1
    %p48 = scmp.ne.s32.totalorder %s43, %s45
    %p49 = scmp.eq.s32.totalorder %s9, 0
    %p50 = por %p48, %p49
    %p51 = scmp.ne.s32.totalorder %s43, %s45
    %p52 = scmp.eq.s32.totalorder %s14, 1
    %p53 = por %p51, %p52
    %p54 = scmp.ne.s32.totalorder %s45, %s46
    %p55 = scmp.eq.s32.totalorder %s14, 0
    %p56 = por %p54, %p55
    %p57 = scmp.ne.s32.totalorder %s45, %s46
    %p58 = scmp.eq.s32.totalorder %s15, 1
    %p59 = por %p57, %p58
    %p61 = scmp.ne.s32.totalorder %s46, %s60
    %p62 = scmp.eq.s32.totalorder %s15, 0
    %p63 = por %p61, %p62
    %s65 = sadd.s32 %s64, 1
    %p68 = scmp.eq.s32.totalorder %s9, 1
    %p69 = scmp.ne.s32.totalorder %s64, %s66
    %p70 = scmp.eq.s32.totalorder %s9, 0
    %p71 = por %p69, %p70
    %p72 = scmp.ne.s32.totalorder %s64, %s66
    %p73 = scmp.eq.s32.totalorder %s14, 1
    %p74 = por %p72, %p73
    %p75 = scmp.ne.s32.totalorder %s66, %s67
    %p76 = scmp.eq.s32.totalorder %s14, 0
    %p77 = por %p75, %p76
    %p78 = scmp.ne.s32.totalorder %s66, %s67
    %p79 = scmp.eq.s32.totalorder %s15, 1
    %p80 = por %p78, %p79
    %p82 = scmp.ne.s32.totalorder %s67, %s81
    %p83 = scmp.eq.s32.totalorder %s15, 0
    %p84 = por %p82, %p83
    %s85 = ssub.s32 %s9, %s16
    %p86 = scmp.eq.s32.totalorder %s85, 0
    %s88 = sadd.s32 %s87, 1
    %s89 = scalar_select %p86, %s87, %s88
    %p92 = pneg %p86
    %p93 = scmp.eq.s32.totalorder %s9, 1
    %p94 = por %p92, %p93
    %p95 = scmp.ne.s32.totalorder %s87, %s90
    %p96 = scmp.eq.s32.totalorder %s9, 0
    %p97 = por %p95, %p96
    %p98 = scmp.ne.s32.totalorder %s87, %s90
    %p99 = scmp.eq.s32.totalorder %s14, 1
    %p100 = por %p98, %p99
    %p101 = scmp.ne.s32.totalorder %s90, %s91
    %p102 = scmp.eq.s32.totalorder %s14, 0
    %p103 = por %p101, %p102
    %p104 = scmp.ne.s32.totalorder %s90, %s91
    %p105 = scmp.eq.s32.totalorder %s15, 1
    %p106 = por %p104, %p105
    %p108 = scmp.ne.s32.totalorder %s91, %s107
    %p109 = scmp.eq.s32.totalorder %s15, 0
    %p110 = por %p108, %p109
    %p111 = scmp.le.s32.totalorder 1, %s9
    %p112 = scmp.lt.s32.totalorder %s9, 3
    %p113 = pnand %p111, %p112
    %p114 = pneg %p113
    // Predicated region
    $region9: #{encoder_forward.8} parent=5 // pred_check
      _
    $region10: #{encoder_forward.8} parent=5 // pred_check_branch
      %116 = sbr.rel (%p113) target = $region12
    $region11: #{encoder_forward.8} parent=5 // pred_region
      %s117 = ssub.s32 %s9, 1
      // Predicated region
      $region13: #{encoder_forward.8} parent=11 // pred_check
        %p118 = pneg %p56
      $region14: #{encoder_forward.8} parent=11 // pred_check_branch
        %120 = sbr.rel (%p118) target = $region16
      $region15: #{encoder_forward.8} parent=11 // pred_region
        _
      $region16: #{encoder_forward.8} parent=11 // pred_fallthru
        _
      // Predicated region
      $region17: #{encoder_forward.8} parent=11 // pred_check
        %p121 = pneg %p77
      $region18: #{encoder_forward.8} parent=11 // pred_check_branch
        %123 = sbr.rel (%p121) target = $region20
      $region19: #{encoder_forward.8} parent=11 // pred_region
        _
      $region20: #{encoder_forward.8} parent=11 // pred_fallthru
        _
    $region12: #{encoder_forward.8} parent=5 // pred_fallthru
      _
    %p124 = scmp.lt.s32.totalorder %s9, 2
    // Predicated region
    $region21: #{encoder_forward.8} parent=5 // pred_check
      %p125 = pneg %p124
    $region22: #{encoder_forward.8} parent=5 // pred_check_branch
      %127 = sbr.rel (%p125) target = $region24
    $region23: #{encoder_forward.8} parent=5 // pred_region
      // Predicated region
      $region25: #{encoder_forward.8} parent=23 // pred_check
        %p128 = pneg %p29
      $region26: #{encoder_forward.8} parent=23 // pred_check_branch
        %130 = sbr.rel (%p128) target = $region28
      $region27: #{encoder_forward.8} parent=23 // pred_region
        %p131 = scmp.lt.s32.totalorder %s9, 1
        %s132 = scalar_select %p131, %s9, 1
        %s133 = smul.addr %s132, 2
        %s134 = smul.addr %s133, 8
        %s135 = scalar_lea.vmem %s0, %s134
      $region28: #{encoder_forward.8} parent=23 // pred_fallthru
        _
    $region24: #{encoder_forward.8} parent=5 // pred_fallthru
      _
    %p136 = scmp.le.s32.totalorder 1, %s9
    %p137 = scmp.lt.s32.totalorder %s9, 3
    %p138 = pnand %p136, %p137
    %p139 = pneg %p138
    // Predicated region
    $region29: #{encoder_forward.8} parent=5 // pred_check
      _
    $region30: #{encoder_forward.8} parent=5 // pred_check_branch
      %141 = sbr.rel (%p138) target = $region32
    $region31: #{encoder_forward.8} parent=5 // pred_region
      %s142 = ssub.s32 %s9, 1
      %p143 = scmp.lt.s32.totalorder %s14, 1
      %s144 = scalar_select %p143, %s14, 1
      %s145 = smul.addr %s144, 2
      %s146 = smul.addr %s145, 8
      %s147 = scalar_lea.vmem %s0, %s146
      %p148 = pneg %p35
      %p149 = pneg %p32
      %p150 = pneg %p56
      %p151 = pneg %p53
      %p152 = pneg %p77
      %p153 = pneg %p74
      %p154 = pneg %p103
      %p155 = pneg %p100
      %p156 = scmp.lt.s32.totalorder %s14, 1
      %s157 = scalar_select %p156, %s14, 1
      %s158 = smul.addr %s157, 2
      %s159 = scalar_lea.vmem %s3, %s158
      %p160 = scmp.lt.s32.totalorder %s14, 1
      %s161 = scalar_select %p160, %s14, 1
      %s162 = smul.addr %s161, 2
      %s163 = smul.addr %s162, 8
      %s164 = scalar_lea.vmem %s0, %s163
      %p165 = scmp.lt.s32.totalorder %s14, 1
      %s166 = scalar_select %p165, %s14, 1
      %s167 = smul.addr %s166, 2
      %s168 = scalar_lea.vmem %s3, %s167
      %v169 = vld [vmem:[%s164] sm:$0x3]
      %v170 = vld [vmem:[%s164 + $0x8] sm:$0x3]
      %v171 = vld [vmem:[%s1] sm:$0xff]
      %v172 = vld [vmem:[%s1 + $0x8] sm:$0xff]
      %v173 = vld [vmem:[%s1 + $0x10] sm:$0xff]
      %v174 = vld [vmem:[%s1 + $0x18] sm:$0xff]
      %v175 = vld [vmem:[%s1 + $0x20] sm:$0xff]
      %v176 = vld [vmem:[%s1 + $0x28] sm:$0xff]
      %v177 = vld [vmem:[%s1 + $0x30] sm:$0xff]
      %v178 = vld [vmem:[%s1 + $0x38] sm:$0xff]
      %v179 = vld [vmem:[%s1 + $0x40] sm:$0xff]
      %v180 = vld [vmem:[%s1 + $0x48] sm:$0xff]
      %v181 = vld [vmem:[%s1 + $0x50] sm:$0xff]
      %v182 = vld [vmem:[%s1 + $0x58] sm:$0xff]
      %v183 = vld [vmem:[%s1 + $0x60] sm:$0xff]
      %v184 = vld [vmem:[%s1 + $0x68] sm:$0xff]
      %v185 = vld [vmem:[%s1 + $0x70] sm:$0xff]
      %v186 = vld [vmem:[%s1 + $0x78] sm:$0xff]
      %v187 = vld [vmem:[%s1 + $0x80] sm:$0xff]
      %v188 = vld [vmem:[%s1 + $0x88] sm:$0xff]
      %v189 = vld [vmem:[%s1 + $0x90] sm:$0xff]
      %v190 = vld [vmem:[%s1 + $0x98] sm:$0xff]
      %v191 = vld [vmem:[%s1 + $0xa0] sm:$0xff]
      %v192 = vld [vmem:[%s1 + $0xa8] sm:$0xff]
      %v193 = vld [vmem:[%s1 + $0xb0] sm:$0xff]
      %v194 = vld [vmem:[%s1 + $0xb8] sm:$0xff]
      %v195 = vld [vmem:[%s1 + $0xc0] sm:$0xff]
      %v196 = vld [vmem:[%s1 + $0xc8] sm:$0xff]
      %v197 = vld [vmem:[%s1 + $0xd0] sm:$0xff]
      %v198 = vld [vmem:[%s1 + $0xd8] sm:$0xff]
      %v199 = vld [vmem:[%s1 + $0xe0] sm:$0xff]
      %v200 = vld [vmem:[%s1 + $0xe8] sm:$0xff]
      %v201 = vld [vmem:[%s1 + $0xf0] sm:$0xff]
      %v202 = vld [vmem:[%s1 + $0xf8] sm:$0xff]
      %v203 = vld [vmem:[%s164] sm:$0x6]
      %v204 = vld [vmem:[%s164 + $0x8] sm:$0x6]
      %s205 = scalar_lea.vmem %s1, 256
      %v206 = vld [vmem:[%s205] sm:$0xff]
      %v207 = vld [vmem:[%s205 + $0x8] sm:$0xff]
      %v208 = vld [vmem:[%s205 + $0x10] sm:$0xff]
      %v209 = vld [vmem:[%s205 + $0x18] sm:$0xff]
      %v210 = vld [vmem:[%s205 + $0x20] sm:$0xff]
      %v211 = vld [vmem:[%s205 + $0x28] sm:$0xff]
      %v212 = vld [vmem:[%s205 + $0x30] sm:$0xff]
      %v213 = vld [vmem:[%s205 + $0x38] sm:$0xff]
      %v214 = vld [vmem:[%s205 + $0x40] sm:$0xff]
      %v215 = vld [vmem:[%s205 + $0x48] sm:$0xff]
      %v216 = vld [vmem:[%s205 + $0x50] sm:$0xff]
      %v217 = vld [vmem:[%s205 + $0x58] sm:$0xff]
      %v218 = vld [vmem:[%s205 + $0x60] sm:$0xff]
      %v219 = vld [vmem:[%s205 + $0x68] sm:$0xff]
      %v220 = vld [vmem:[%s205 + $0x70] sm:$0xff]
      %v221 = vld [vmem:[%s205 + $0x78] sm:$0xff]
      %v222 = vld [vmem:[%s205 + $0x80] sm:$0xff]
      %v223 = vld [vmem:[%s205 + $0x88] sm:$0xff]
      %v224 = vld [vmem:[%s205 + $0x90] sm:$0xff]
      %v225 = vld [vmem:[%s205 + $0x98] sm:$0xff]
      %v226 = vld [vmem:[%s205 + $0xa0] sm:$0xff]
      %v227 = vld [vmem:[%s205 + $0xa8] sm:$0xff]
      %v228 = vld [vmem:[%s205 + $0xb0] sm:$0xff]
      %v229 = vld [vmem:[%s205 + $0xb8] sm:$0xff]
      %v230 = vld [vmem:[%s205 + $0xc0] sm:$0xff]
      %v231 = vld [vmem:[%s205 + $0xc8] sm:$0xff]
      %v232 = vld [vmem:[%s205 + $0xd0] sm:$0xff]
      %v233 = vld [vmem:[%s205 + $0xd8] sm:$0xff]
      %v234 = vld [vmem:[%s205 + $0xe0] sm:$0xff]
      %v235 = vld [vmem:[%s205 + $0xe8] sm:$0xff]
      %v236 = vld [vmem:[%s205 + $0xf0] sm:$0xff]
      %v237 = vld [vmem:[%s205 + $0xf8] sm:$0xff]
      %v240 = vrot.slane %v203, 1
      %v241 = vrot.slane %v204, 1
      %244 = vmatprep.subr.mxu0 0.0
      %245 = vmatpush1.msra.mxu0 %v221
      %246 = vmatprep.subr.mxu0 0.0
      %247 = vmatpush1.msra.mxu0 %v220
      %248 = vmatprep.subr.mxu0 0.0
      %249 = vmatpush1.msra.mxu0 %v219
      %250 = vmatprep.subr.mxu0 0.0
      %251 = vmatpush1.msra.mxu0 %v218
      %252 = vmatprep.subr.mxu0 0.0
      %253 = vmatpush1.msra.mxu0 %v217
      %254 = vmatprep.subr.mxu0 0.0
      %255 = vmatpush1.msra.mxu0 %v216
      %256 = vmatprep.subr.mxu0 0.0
      %257 = vmatpush1.msra.mxu0 %v215
      %258 = vmatprep.subr.mxu0 0.0
      %259 = vmatpush1.msra.mxu0 %v214
      %260 = vmatprep.subr.mxu0 0.0
      %261 = vmatpush1.msra.mxu0 %v213
      %262 = vmatprep.subr.mxu0 0.0
      %263 = vmatpush1.msra.mxu0 %v212
      %264 = vmatprep.subr.mxu0 0.0
      %265 = vmatpush1.msra.mxu0 %v211
      %266 = vmatprep.subr.mxu0 0.0
      %267 = vmatpush1.msra.mxu0 %v210
      %268 = vmatprep.subr.mxu0 0.0
      %269 = vmatpush1.msra.mxu0 %v209
      %270 = vmatprep.subr.mxu0 0.0
      %271 = vmatpush1.msra.mxu0 %v208
      %272 = vmatprep.subr.mxu0 0.0
      %273 = vmatpush1.msra.mxu0 %v207
      %274 = vmatprep.subr.mxu0 0.0
      %275 = vmatpush1.msra.mxu0 %v206
      %276 = vmatprep.subr.mxu0 0.0
      %277 = vmatpush2.msra.mxu0 %v237
      %278 = vmatprep.subr.mxu0 0.0
      %279 = vmatpush2.msra.mxu0 %v236
      %280 = vmatprep.subr.mxu0 0.0
      %281 = vmatpush2.msra.mxu0 %v235
      %282 = vmatprep.subr.mxu0 0.0
      %283 = vmatpush2.msra.mxu0 %v234
      %284 = vmatprep.subr.mxu0 0.0
      %285 = vmatpush2.msra.mxu0 %v233
      %286 = vmatprep.subr.mxu0 0.0
      %287 = vmatpush2.msra.mxu0 %v232
      %288 = vmatprep.subr.mxu0 0.0
      %289 = vmatpush2.msra.mxu0 %v231
      %290 = vmatprep.subr.mxu0 0.0
      %291 = vmatpush2.msra.mxu0 %v230
      %292 = vmatprep.subr.mxu0 0.0
      %293 = vmatpush2.msra.mxu0 %v229
      %294 = vmatprep.subr.mxu0 0.0
      %295 = vmatpush2.msra.mxu0 %v228
      %296 = vmatprep.subr.mxu0 0.0
      %297 = vmatpush2.msra.mxu0 %v227
      %298 = vmatprep.subr.mxu0 0.0
      %299 = vmatpush2.msra.mxu0 %v226
      %300 = vmatprep.subr.mxu0 0.0
      %301 = vmatpush2.msra.mxu0 %v225
      %302 = vmatprep.subr.mxu0 0.0
      %303 = vmatpush2.msra.mxu0 %v224
      %304 = vmatprep.subr.mxu0 0.0
      %305 = vmatpush2.msra.mxu0 %v223
      %306 = vmatprep.subr.mxu0 0.0
      %307 = vmatpush2.msra.mxu0 %v222
      %308 = vmatprep.mubr.f32.mxu0 %v241
      %309 = vmatmul.mubr.f32.gmra.mxu0 %v240
      %v310 = vpop.f32.mrf.mxu0
      %v311 = vadd.f32 0.0, %v310
      %v312 = vpop.f32.mrf.mxu0
      %313 = vdwg.mxu0
      %314 = vmatprep.subr.mxu0 0.0
      %315 = vmatpush1.msra.mxu0 %v186
      %316 = vmatprep.subr.mxu0 0.0
      %317 = vmatpush1.msra.mxu0 %v185
      %318 = vmatprep.subr.mxu0 0.0
      %319 = vmatpush1.msra.mxu0 %v184
      %320 = vmatprep.subr.mxu0 0.0
      %321 = vmatpush1.msra.mxu0 %v183
      %322 = vmatprep.subr.mxu0 0.0
      %323 = vmatpush1.msra.mxu0 %v182
      %324 = vmatprep.subr.mxu0 0.0
      %325 = vmatpush1.msra.mxu0 %v181
      %326 = vmatprep.subr.mxu0 0.0
      %327 = vmatpush1.msra.mxu0 %v180
      %328 = vmatprep.subr.mxu0 0.0
      %329 = vmatpush1.msra.mxu0 %v179
      %330 = vmatprep.subr.mxu0 0.0
      %331 = vmatpush1.msra.mxu0 %v178
      %332 = vmatprep.subr.mxu0 0.0
      %333 = vmatpush1.msra.mxu0 %v177
      %334 = vmatprep.subr.mxu0 0.0
      %335 = vmatpush1.msra.mxu0 %v176
      %336 = vmatprep.subr.mxu0 0.0
      %337 = vmatpush1.msra.mxu0 %v175
      %338 = vmatprep.subr.mxu0 0.0
      %339 = vmatpush1.msra.mxu0 %v174
      %340 = vmatprep.subr.mxu0 0.0
      %341 = vmatpush1.msra.mxu0 %v173
      %342 = vmatprep.subr.mxu0 0.0
      %343 = vmatpush1.msra.mxu0 %v172
      %344 = vmatprep.subr.mxu0 0.0
      %345 = vmatpush1.msra.mxu0 %v171
      %346 = vmatprep.subr.mxu0 0.0
      %347 = vmatpush2.msra.mxu0 %v202
      %348 = vmatprep.subr.mxu0 0.0
      %349 = vmatpush2.msra.mxu0 %v201
      %350 = vmatprep.subr.mxu0 0.0
      %351 = vmatpush2.msra.mxu0 %v200
      %352 = vmatprep.subr.mxu0 0.0
      %353 = vmatpush2.msra.mxu0 %v199
      %354 = vmatprep.subr.mxu0 0.0
      %355 = vmatpush2.msra.mxu0 %v198
      %356 = vmatprep.subr.mxu0 0.0
      %357 = vmatpush2.msra.mxu0 %v197
      %358 = vmatprep.subr.mxu0 0.0
      %359 = vmatpush2.msra.mxu0 %v196
      %360 = vmatprep.subr.mxu0 0.0
      %361 = vmatpush2.msra.mxu0 %v195
      %362 = vmatprep.subr.mxu0 0.0
      %363 = vmatpush2.msra.mxu0 %v194
      %364 = vmatprep.subr.mxu0 0.0
      %365 = vmatpush2.msra.mxu0 %v193
      %366 = vmatprep.subr.mxu0 0.0
      %367 = vmatpush2.msra.mxu0 %v192
      %368 = vmatprep.subr.mxu0 0.0
      %369 = vmatpush2.msra.mxu0 %v191
      %370 = vmatprep.subr.mxu0 0.0
      %371 = vmatpush2.msra.mxu0 %v190
      %372 = vmatprep.subr.mxu0 0.0
      %373 = vmatpush2.msra.mxu0 %v189
      %374 = vmatprep.subr.mxu0 0.0
      %375 = vmatpush2.msra.mxu0 %v188
      %376 = vmatprep.subr.mxu0 0.0
      %377 = vmatpush2.msra.mxu0 %v187
      %378 = vmatprep.mubr.f32.mxu0 %v170
      %379 = vmatmul.mubr.f32.gmra.mxu0 %v169
      %v380 = vpop.f32.mrf.mxu0
      %v381 = vadd.f32 %v311, %v380
      %v382 = vpop.f32.mrf.mxu0
      %383 = vdwg.mxu0
      %v384 = vld [vmem:[%s164] sm:$0xc]
      %v385 = vld [vmem:[%s164 + $0x8] sm:$0xc]
      %s386 = scalar_lea.vmem %s1, 512
      %v387 = vld [vmem:[%s386] sm:$0xff]
      %v388 = vld [vmem:[%s386 + $0x8] sm:$0xff]
      %v389 = vld [vmem:[%s386 + $0x10] sm:$0xff]
      %v390 = vld [vmem:[%s386 + $0x18] sm:$0xff]
      %v391 = vld [vmem:[%s386 + $0x20] sm:$0xff]
      %v392 = vld [vmem:[%s386 + $0x28] sm:$0xff]
      %v393 = vld [vmem:[%s386 + $0x30] sm:$0xff]
      %v394 = vld [vmem:[%s386 + $0x38] sm:$0xff]
      %v395 = vld [vmem:[%s386 + $0x40] sm:$0xff]
      %v396 = vld [vmem:[%s386 + $0x48] sm:$0xff]
      %v397 = vld [vmem:[%s386 + $0x50] sm:$0xff]
      %v398 = vld [vmem:[%s386 + $0x58] sm:$0xff]
      %v399 = vld [vmem:[%s386 + $0x60] sm:$0xff]
      %v400 = vld [vmem:[%s386 + $0x68] sm:$0xff]
      %v401 = vld [vmem:[%s386 + $0x70] sm:$0xff]
      %v402 = vld [vmem:[%s386 + $0x78] sm:$0xff]
      %v403 = vld [vmem:[%s386 + $0x80] sm:$0xff]
      %v404 = vld [vmem:[%s386 + $0x88] sm:$0xff]
      %v405 = vld [vmem:[%s386 + $0x90] sm:$0xff]
      %v406 = vld [vmem:[%s386 + $0x98] sm:$0xff]
      %v407 = vld [vmem:[%s386 + $0xa0] sm:$0xff]
      %v408 = vld [vmem:[%s386 + $0xa8] sm:$0xff]
      %v409 = vld [vmem:[%s386 + $0xb0] sm:$0xff]
      %v410 = vld [vmem:[%s386 + $0xb8] sm:$0xff]
      %v411 = vld [vmem:[%s386 + $0xc0] sm:$0xff]
      %v412 = vld [vmem:[%s386 + $0xc8] sm:$0xff]
      %v413 = vld [vmem:[%s386 + $0xd0] sm:$0xff]
      %v414 = vld [vmem:[%s386 + $0xd8] sm:$0xff]
      %v415 = vld [vmem:[%s386 + $0xe0] sm:$0xff]
      %v416 = vld [vmem:[%s386 + $0xe8] sm:$0xff]
      %v417 = vld [vmem:[%s386 + $0xf0] sm:$0xff]
      %v418 = vld [vmem:[%s386 + $0xf8] sm:$0xff]
      %v421 = vrot.slane %v384, 2
      %v422 = vrot.slane %v385, 2
      %425 = vmatprep.subr.mxu0 0.0
      %426 = vmatpush1.msra.mxu0 %v402
      %427 = vmatprep.subr.mxu0 0.0
      %428 = vmatpush1.msra.mxu0 %v401
      %429 = vmatprep.subr.mxu0 0.0
      %430 = vmatpush1.msra.mxu0 %v400
      %431 = vmatprep.subr.mxu0 0.0
      %432 = vmatpush1.msra.mxu0 %v399
      %433 = vmatprep.subr.mxu0 0.0
      %434 = vmatpush1.msra.mxu0 %v398
      %435 = vmatprep.subr.mxu0 0.0
      %436 = vmatpush1.msra.mxu0 %v397
      %437 = vmatprep.subr.mxu0 0.0
      %438 = vmatpush1.msra.mxu0 %v396
      %439 = vmatprep.subr.mxu0 0.0
      %440 = vmatpush1.msra.mxu0 %v395
      %441 = vmatprep.subr.mxu0 0.0
      %442 = vmatpush1.msra.mxu0 %v394
      %443 = vmatprep.subr.mxu0 0.0
      %444 = vmatpush1.msra.mxu0 %v393
      %445 = vmatprep.subr.mxu0 0.0
      %446 = vmatpush1.msra.mxu0 %v392
      %447 = vmatprep.subr.mxu0 0.0
      %448 = vmatpush1.msra.mxu0 %v391
      %449 = vmatprep.subr.mxu0 0.0
      %450 = vmatpush1.msra.mxu0 %v390
      %451 = vmatprep.subr.mxu0 0.0
      %452 = vmatpush1.msra.mxu0 %v389
      %453 = vmatprep.subr.mxu0 0.0
      %454 = vmatpush1.msra.mxu0 %v388
      %455 = vmatprep.subr.mxu0 0.0
      %456 = vmatpush1.msra.mxu0 %v387
      %457 = vmatprep.subr.mxu0 0.0
      %458 = vmatpush2.msra.mxu0 %v418
      %459 = vmatprep.subr.mxu0 0.0
      %460 = vmatpush2.msra.mxu0 %v417
      %461 = vmatprep.subr.mxu0 0.0
      %462 = vmatpush2.msra.mxu0 %v416
      %463 = vmatprep.subr.mxu0 0.0
      %464 = vmatpush2.msra.mxu0 %v415
      %465 = vmatprep.subr.mxu0 0.0
      %466 = vmatpush2.msra.mxu0 %v414
      %467 = vmatprep.subr.mxu0 0.0
      %468 = vmatpush2.msra.mxu0 %v413
      %469 = vmatprep.subr.mxu0 0.0
      %470 = vmatpush2.msra.mxu0 %v412
      %471 = vmatprep.subr.mxu0 0.0
      %472 = vmatpush2.msra.mxu0 %v411
      %473 = vmatprep.subr.mxu0 0.0
      %474 = vmatpush2.msra.mxu0 %v410
      %475 = vmatprep.subr.mxu0 0.0
      %476 = vmatpush2.msra.mxu0 %v409
      %477 = vmatprep.subr.mxu0 0.0
      %478 = vmatpush2.msra.mxu0 %v408
      %479 = vmatprep.subr.mxu0 0.0
      %480 = vmatpush2.msra.mxu0 %v407
      %481 = vmatprep.subr.mxu0 0.0
      %482 = vmatpush2.msra.mxu0 %v406
      %483 = vmatprep.subr.mxu0 0.0
      %484 = vmatpush2.msra.mxu0 %v405
      %485 = vmatprep.subr.mxu0 0.0
      %486 = vmatpush2.msra.mxu0 %v404
      %487 = vmatprep.subr.mxu0 0.0
      %488 = vmatpush2.msra.mxu0 %v403
      %489 = vmatprep.mubr.f32.mxu0 %v422
      %490 = vmatmul.mubr.f32.gmra.mxu0 %v421
      %v491 = vpop.f32.mrf.mxu0
      %v492 = vadd.f32 0.0, %v491
      %v493 = vpop.f32.mrf.mxu0
      %494 = vdwg.mxu0
      %v495 = vadd.f32 %v381, %v492
      %v496 = vld [vmem:[%s164] sm:$0x18]
      %v497 = vld [vmem:[%s164 + $0x8] sm:$0x18]
      %s498 = scalar_lea.vmem %s1, 768
      %v499 = vld [vmem:[%s498] sm:$0xff]
      %v500 = vld [vmem:[%s498 + $0x8] sm:$0xff]
      %v501 = vld [vmem:[%s498 + $0x10] sm:$0xff]
      %v502 = vld [vmem:[%s498 + $0x18] sm:$0xff]
      %v503 = vld [vmem:[%s498 + $0x20] sm:$0xff]
      %v504 = vld [vmem:[%s498 + $0x28] sm:$0xff]
      %v505 = vld [vmem:[%s498 + $0x30] sm:$0xff]
      %v506 = vld [vmem:[%s498 + $0x38] sm:$0xff]
      %v507 = vld [vmem:[%s498 + $0x40] sm:$0xff]
      %v508 = vld [vmem:[%s498 + $0x48] sm:$0xff]
      %v509 = vld [vmem:[%s498 + $0x50] sm:$0xff]
      %v510 = vld [vmem:[%s498 + $0x58] sm:$0xff]
      %v511 = vld [vmem:[%s498 + $0x60] sm:$0xff]
      %v512 = vld [vmem:[%s498 + $0x68] sm:$0xff]
      %v513 = vld [vmem:[%s498 + $0x70] sm:$0xff]
      %v514 = vld [vmem:[%s498 + $0x78] sm:$0xff]
      %v515 = vld [vmem:[%s498 + $0x80] sm:$0xff]
      %v516 = vld [vmem:[%s498 + $0x88] sm:$0xff]
      %v517 = vld [vmem:[%s498 + $0x90] sm:$0xff]
      %v518 = vld [vmem:[%s498 + $0x98] sm:$0xff]
      %v519 = vld [vmem:[%s498 + $0xa0] sm:$0xff]
      %v520 = vld [vmem:[%s498 + $0xa8] sm:$0xff]
      %v521 = vld [vmem:[%s498 + $0xb0] sm:$0xff]
      %v522 = vld [vmem:[%s498 + $0xb8] sm:$0xff]
      %v523 = vld [vmem:[%s498 + $0xc0] sm:$0xff]
      %v524 = vld [vmem:[%s498 + $0xc8] sm:$0xff]
      %v525 = vld [vmem:[%s498 + $0xd0] sm:$0xff]
      %v526 = vld [vmem:[%s498 + $0xd8] sm:$0xff]
      %v527 = vld [vmem:[%s498 + $0xe0] sm:$0xff]
      %v528 = vld [vmem:[%s498 + $0xe8] sm:$0xff]
      %v529 = vld [vmem:[%s498 + $0xf0] sm:$0xff]
      %v530 = vld [vmem:[%s498 + $0xf8] sm:$0xff]
      %v533 = vrot.slane %v496, 3
      %v534 = vrot.slane %v497, 3
      %537 = vmatprep.subr.mxu0 0.0
      %538 = vmatpush1.msra.mxu0 %v514
      %539 = vmatprep.subr.mxu0 0.0
      %540 = vmatpush1.msra.mxu0 %v513
      %541 = vmatprep.subr.mxu0 0.0
      %542 = vmatpush1.msra.mxu0 %v512
      %543 = vmatprep.subr.mxu0 0.0
      %544 = vmatpush1.msra.mxu0 %v511
      %545 = vmatprep.subr.mxu0 0.0
      %546 = vmatpush1.msra.mxu0 %v510
      %547 = vmatprep.subr.mxu0 0.0
      %548 = vmatpush1.msra.mxu0 %v509
      %549 = vmatprep.subr.mxu0 0.0
      %550 = vmatpush1.msra.mxu0 %v508
      %551 = vmatprep.subr.mxu0 0.0
      %552 = vmatpush1.msra.mxu0 %v507
      %553 = vmatprep.subr.mxu0 0.0
      %554 = vmatpush1.msra.mxu0 %v506
      %555 = vmatprep.subr.mxu0 0.0
      %556 = vmatpush1.msra.mxu0 %v505
      %557 = vmatprep.subr.mxu0 0.0
      %558 = vmatpush1.msra.mxu0 %v504
      %559 = vmatprep.subr.mxu0 0.0
      %560 = vmatpush1.msra.mxu0 %v503
      %561 = vmatprep.subr.mxu0 0.0
      %562 = vmatpush1.msra.mxu0 %v502
      %563 = vmatprep.subr.mxu0 0.0
      %564 = vmatpush1.msra.mxu0 %v501
      %565 = vmatprep.subr.mxu0 0.0
      %566 = vmatpush1.msra.mxu0 %v500
      %567 = vmatprep.subr.mxu0 0.0
      %568 = vmatpush1.msra.mxu0 %v499
      %569 = vmatprep.subr.mxu0 0.0
      %570 = vmatpush2.msra.mxu0 %v530
      %571 = vmatprep.subr.mxu0 0.0
      %572 = vmatpush2.msra.mxu0 %v529
      %573 = vmatprep.subr.mxu0 0.0
      %574 = vmatpush2.msra.mxu0 %v528
      %575 = vmatprep.subr.mxu0 0.0
      %576 = vmatpush2.msra.mxu0 %v527
      %577 = vmatprep.subr.mxu0 0.0
      %578 = vmatpush2.msra.mxu0 %v526
      %579 = vmatprep.subr.mxu0 0.0
      %580 = vmatpush2.msra.mxu0 %v525
      %581 = vmatprep.subr.mxu0 0.0
      %582 = vmatpush2.msra.mxu0 %v524
      %583 = vmatprep.subr.mxu0 0.0
      %584 = vmatpush2.msra.mxu0 %v523
      %585 = vmatprep.subr.mxu0 0.0
      %586 = vmatpush2.msra.mxu0 %v522
      %587 = vmatprep.subr.mxu0 0.0
      %588 = vmatpush2.msra.mxu0 %v521
      %589 = vmatprep.subr.mxu0 0.0
      %590 = vmatpush2.msra.mxu0 %v520
      %591 = vmatprep.subr.mxu0 0.0
      %592 = vmatpush2.msra.mxu0 %v519
      %593 = vmatprep.subr.mxu0 0.0
      %594 = vmatpush2.msra.mxu0 %v518
      %595 = vmatprep.subr.mxu0 0.0
      %596 = vmatpush2.msra.mxu0 %v517
      %597 = vmatprep.subr.mxu0 0.0
      %598 = vmatpush2.msra.mxu0 %v516
      %599 = vmatprep.subr.mxu0 0.0
      %600 = vmatpush2.msra.mxu0 %v515
      %601 = vmatprep.mubr.f32.mxu0 %v534
      %602 = vmatmul.mubr.f32.gmra.mxu0 %v533
      %v603 = vpop.f32.mrf.mxu0
      %v604 = vadd.f32 0.0, %v603
      %v605 = vpop.f32.mrf.mxu0
      %606 = vdwg.mxu0
      %v607 = vadd.f32 %v495, %v604
      %v608 = vld [vmem:[%s2] sm:$0x1]
      %v610 = vlaneseq
      %v611 = vshrl.u32 %v610, 7
      %v612 = vsub.s32 0, %v611
      %v613 = vrot.slane %v608, %v612
      %v615 = vadd.f32 %v607, %v613
      %v616 = vmax.f32 %v615, 0.0
      %617 = vst [vmem:[%s168] sm:$0x3] %v616
      %p618 = scmp.lt.s32.totalorder %s14, 1
      %s619 = scalar_select %p618, %s14, 1
      %s620 = smul.addr %s619, 2
      %s621 = scalar_lea.vmem %s3, %s620
      // Predicated region
      $region33: #{encoder_forward.8} parent=31 // pred_check
        %p622 = pneg %p100
      $region34: #{encoder_forward.8} parent=31 // pred_check_branch
        %624 = sbr.rel (%p622) target = $region36
      $region35: #{encoder_forward.8} parent=31 // pred_region
        _
      $region36: #{encoder_forward.8} parent=31 // pred_fallthru
        _
    $region32: #{encoder_forward.8} parent=5 // pred_fallthru
      _
    %p625 = scmp.le.s32.totalorder 2, %s9
    // Predicated region
    $region37: #{encoder_forward.8} parent=5 // pred_check
      %p626 = pneg %p625
    $region38: #{encoder_forward.8} parent=5 // pred_check_branch
      %628 = sbr.rel (%p626) target = $region40
    $region39: #{encoder_forward.8} parent=5 // pred_region
      %s629 = ssub.s32 %s9, 2
      // Predicated region
      $region41: #{encoder_forward.8} parent=39 // pred_check
        %p630 = pneg %p106
      $region42: #{encoder_forward.8} parent=39 // pred_check_branch
        %632 = sbr.rel (%p630) target = $region44
      $region43: #{encoder_forward.8} parent=39 // pred_region
        %p633 = scmp.lt.s32.totalorder %s15, 1
        %s634 = scalar_select %p633, %s15, 1
        %s635 = smul.addr %s634, 2
        %s636 = scalar_lea.vmem %s3, %s635
      $region44: #{encoder_forward.8} parent=39 // pred_fallthru
        _
    $region40: #{encoder_forward.8} parent=5 // pred_fallthru
      _
  $region6: #{encoder_forward.8} parent=0 // loop_footer
    %s13 = sadd.s32 1, %s9
  $region7: #{encoder_forward.8} parent=0 // loop_footer_branch
    %8 = sbr.rel target = $region3
  $region8: #{encoder_forward.8} parent=0 // loop_exit
    _

// kernel: encoder_forward.9
$region0: #{encoder_forward.9}
  #allocation0 [shape = 'u32[]', space=smem, size = 0x4, offset = 0x4, fixed_abs, tag = 'smem constant byte address 0x4 - core index']
  #allocation1 [shape = 'u32[144,128]{1,0:T(1,128)}', space=vmem, size = 0x12000, scoped, tag = 'internal scratch']
  %s0 = inlined_call_operand.vmem [shape: f32[2,5,512], index: 0, kind: input, shape index: {}]
  %s1 = inlined_call_operand.vmem [shape: f32[4,512,256], index: 1, kind: input, shape index: {}]
  %s2 = inlined_call_operand.vmem [shape: f32[1,256], index: 2, kind: input, shape index: {}]
  %s3 = inlined_call_operand.vmem [shape: f32[2,2,256], index: 3, kind: output, shape index: {}]
  %s4 = sld [smem:[#allocation0]]
  $region45: #{encoder_forward.9} parent=0
    _
  %s6 = ssub.s32 1, %s4
  %s7 = scalar_select 0, %s6, %s4
  loop: start=0, step=1, limit=4
  $region2: #{encoder_forward.9} parent=0 // loop_pre_header
    _
  $region3: #{encoder_forward.9} parent=0 // loop_header
    %s9 = sphi 0, %s13
    %p10 = scmp.ge.s32.totalorder %s9, 4
    %s19 = sphi 0, %s21
    %s22 = sphi 0, %s19
    %s23 = sphi 0, %s22
    %s39 = sphi 0, %s23
    %s43 = sphi 0, %s43
    %s45 = sphi 0, %s43
    %s46 = sphi 0, %s45
    %s60 = sphi 0, %s46
    %s64 = sphi 0, %s64
    %s66 = sphi 0, %s64
    %s67 = sphi 0, %s66
    %s81 = sphi 0, %s67
    %s87 = sphi 0, %s89
    %s90 = sphi 0, %s87
    %s91 = sphi 0, %s90
    %s107 = sphi 0, %s91
  $region4: #{encoder_forward.9} parent=0 // loop_header_branch
    %12 = sbr.rel (%p10) target = $region8
  $region5: #{encoder_forward.9} parent=0 // loop_body
    %s14 = ssub.s32 %s9, 1
    %s15 = ssub.s32 %s9, 2
    %s16 = sadd.s32 %s9, 1
    %s17 = ssub.s32 %s9, %s16
    %p18 = scmp.eq.s32.totalorder %s17, 0
    %s20 = sadd.s32 %s19, 1
    %s21 = scalar_select %p18, %s19, %s20
    %p24 = pneg %p18
    %p25 = scmp.eq.s32.totalorder %s9, 1
    %p26 = por %p24, %p25
    %p27 = scmp.ne.s32.totalorder %s19, %s22
    %p28 = scmp.eq.s32.totalorder %s9, 0
    %p29 = por %p27, %p28
    %p30 = scmp.ne.s32.totalorder %s19, %s22
    %p31 = scmp.eq.s32.totalorder %s14, 1
    %p32 = por %p30, %p31
    %p33 = scmp.ne.s32.totalorder %s22, %s23
    %p34 = scmp.eq.s32.totalorder %s14, 0
    %p35 = por %p33, %p34
    %p36 = scmp.ne.s32.totalorder %s22, %s23
    %p37 = scmp.eq.s32.totalorder %s15, 1
    %p38 = por %p36, %p37
    %p40 = scmp.ne.s32.totalorder %s23, %s39
    %p41 = scmp.eq.s32.totalorder %s15, 0
    %p42 = por %p40, %p41
    %s44 = sadd.s32 %s43, 1
    %p47 = scmp.eq.s32.totalorder %s9, 1
    %p48 = scmp.ne.s32.totalorder %s43, %s45
    %p49 = scmp.eq.s32.totalorder %s9, 0
    %p50 = por %p48, %p49
    %p51 = scmp.ne.s32.totalorder %s43, %s45
    %p52 = scmp.eq.s32.totalorder %s14, 1
    %p53 = por %p51, %p52
    %p54 = scmp.ne.s32.totalorder %s45, %s46
    %p55 = scmp.eq.s32.totalorder %s14, 0
    %p56 = por %p54, %p55
    %p57 = scmp.ne.s32.totalorder %s45, %s46
    %p58 = scmp.eq.s32.totalorder %s15, 1
    %p59 = por %p57, %p58
    %p61 = scmp.ne.s32.totalorder %s46, %s60
    %p62 = scmp.eq.s32.totalorder %s15, 0
    %p63 = por %p61, %p62
    %s65 = sadd.s32 %s64, 1
    %p68 = scmp.eq.s32.totalorder %s9, 1
    %p69 = scmp.ne.s32.totalorder %s64, %s66
    %p70 = scmp.eq.s32.totalorder %s9, 0
    %p71 = por %p69, %p70
    %p72 = scmp.ne.s32.totalorder %s64, %s66
    %p73 = scmp.eq.s32.totalorder %s14, 1
    %p74 = por %p72, %p73
    %p75 = scmp.ne.s32.totalorder %s66, %s67
    %p76 = scmp.eq.s32.totalorder %s14, 0
    %p77 = por %p75, %p76
    %p78 = scmp.ne.s32.totalorder %s66, %s67
    %p79 = scmp.eq.s32.totalorder %s15, 1
    %p80 = por %p78, %p79
    %p82 = scmp.ne.s32.totalorder %s67, %s81
    %p83 = scmp.eq.s32.totalorder %s15, 0
    %p84 = por %p82, %p83
    %s85 = ssub.s32 %s9, %s16
    %p86 = scmp.eq.s32.totalorder %s85, 0
    %s88 = sadd.s32 %s87, 1
    %s89 = scalar_select %p86, %s87, %s88
    %p92 = pneg %p86
    %p93 = scmp.eq.s32.totalorder %s9, 1
    %p94 = por %p92, %p93
    %p95 = scmp.ne.s32.totalorder %s87, %s90
    %p96 = scmp.eq.s32.totalorder %s9, 0
    %p97 = por %p95, %p96
    %p98 = scmp.ne.s32.totalorder %s87, %s90
    %p99 = scmp.eq.s32.totalorder %s14, 1
    %p100 = por %p98, %p99
    %p101 = scmp.ne.s32.totalorder %s90, %s91
    %p102 = scmp.eq.s32.totalorder %s14, 0
    %p103 = por %p101, %p102
    %p104 = scmp.ne.s32.totalorder %s90, %s91
    %p105 = scmp.eq.s32.totalorder %s15, 1
    %p106 = por %p104, %p105
    %p108 = scmp.ne.s32.totalorder %s91, %s107
    %p109 = scmp.eq.s32.totalorder %s15, 0
    %p110 = por %p108, %p109
    %p111 = scmp.le.s32.totalorder 1, %s9
    %p112 = scmp.lt.s32.totalorder %s9, 3
    %p113 = pnand %p111, %p112
    %p114 = pneg %p113
    // Predicated region
    $region9: #{encoder_forward.9} parent=5 // pred_check
      _
    $region10: #{encoder_forward.9} parent=5 // pred_check_branch
      %116 = sbr.rel (%p113) target = $region12
    $region11: #{encoder_forward.9} parent=5 // pred_region
      %s117 = ssub.s32 %s9, 1
      // Predicated region
      $region13: #{encoder_forward.9} parent=11 // pred_check
        %p118 = pneg %p56
      $region14: #{encoder_forward.9} parent=11 // pred_check_branch
        %120 = sbr.rel (%p118) target = $region16
      $region15: #{encoder_forward.9} parent=11 // pred_region
        _
      $region16: #{encoder_forward.9} parent=11 // pred_fallthru
        _
      // Predicated region
      $region17: #{encoder_forward.9} parent=11 // pred_check
        %p121 = pneg %p77
      $region18: #{encoder_forward.9} parent=11 // pred_check_branch
        %123 = sbr.rel (%p121) target = $region20
      $region19: #{encoder_forward.9} parent=11 // pred_region
        _
      $region20: #{encoder_forward.9} parent=11 // pred_fallthru
        _
    $region12: #{encoder_forward.9} parent=5 // pred_fallthru
      _
    %p124 = scmp.lt.s32.totalorder %s9, 2
    // Predicated region
    $region21: #{encoder_forward.9} parent=5 // pred_check
      %p125 = pneg %p124
    $region22: #{encoder_forward.9} parent=5 // pred_check_branch
      %127 = sbr.rel (%p125) target = $region24
    $region23: #{encoder_forward.9} parent=5 // pred_region
      // Predicated region
      $region25: #{encoder_forward.9} parent=23 // pred_check
        %p128 = pneg %p29
      $region26: #{encoder_forward.9} parent=23 // pred_check_branch
        %130 = sbr.rel (%p128) target = $region28
      $region27: #{encoder_forward.9} parent=23 // pred_region
        %p131 = scmp.lt.s32.totalorder %s9, 1
        %s132 = scalar_select %p131, %s9, 1
        %s133 = smul.addr %s132, 4
        %s134 = smul.addr %s133, 8
        %s135 = scalar_lea.vmem %s0, %s134
      $region28: #{encoder_forward.9} parent=23 // pred_fallthru
        _
    $region24: #{encoder_forward.9} parent=5 // pred_fallthru
      _
    %p136 = scmp.le.s32.totalorder 1, %s9
    %p137 = scmp.lt.s32.totalorder %s9, 3
    %p138 = pnand %p136, %p137
    %p139 = pneg %p138
    // Predicated region
    $region29: #{encoder_forward.9} parent=5 // pred_check
      _
    $region30: #{encoder_forward.9} parent=5 // pred_check_branch
      %141 = sbr.rel (%p138) target = $region32
    $region31: #{encoder_forward.9} parent=5 // pred_region
      %s142 = ssub.s32 %s9, 1
      %p143 = scmp.lt.s32.totalorder %s14, 1
      %s144 = scalar_select %p143, %s14, 1
      %s145 = smul.addr %s144, 4
      %s146 = smul.addr %s145, 8
      %s147 = scalar_lea.vmem %s0, %s146
      %p148 = pneg %p35
      %p149 = pneg %p32
      %p150 = pneg %p56
      %p151 = pneg %p53
      %p152 = pneg %p77
      %p153 = pneg %p74
      %p154 = pneg %p103
      %p155 = pneg %p100
      %p156 = scmp.lt.s32.totalorder %s14, 1
      %s157 = scalar_select %p156, %s14, 1
      %s158 = smul.addr %s157, 2
      %s159 = smul.addr %s158, 2
      %s160 = scalar_lea.vmem %s3, %s159
      %p161 = scmp.lt.s32.totalorder %s14, 1
      %s162 = scalar_select %p161, %s14, 1
      %s163 = smul.addr %s162, 4
      %s164 = smul.addr %s163, 8
      %s165 = scalar_lea.vmem %s0, %s164
      %p166 = scmp.lt.s32.totalorder %s14, 1
      %s167 = scalar_select %p166, %s14, 1
      %s168 = smul.addr %s167, 2
      %s169 = smul.addr %s168, 2
      %s170 = scalar_lea.vmem %s3, %s169
      %v171 = vld [vmem:[%s165] sm:$0x3]
      %v172 = vld [vmem:[%s165 + $0x8] sm:$0x3]
      %v173 = vld [vmem:[%s165 + $0x10] sm:$0x3]
      %v174 = vld [vmem:[%s165 + $0x18] sm:$0x3]
      %v175 = vld [vmem:[%s1] sm:$0xff]
      %v176 = vld [vmem:[%s1 + $0x8] sm:$0xff]
      %v177 = vld [vmem:[%s1 + $0x10] sm:$0xff]
      %v178 = vld [vmem:[%s1 + $0x18] sm:$0xff]
      %v179 = vld [vmem:[%s1 + $0x20] sm:$0xff]
      %v180 = vld [vmem:[%s1 + $0x28] sm:$0xff]
      %v181 = vld [vmem:[%s1 + $0x30] sm:$0xff]
      %v182 = vld [vmem:[%s1 + $0x38] sm:$0xff]
      %v183 = vld [vmem:[%s1 + $0x40] sm:$0xff]
      %v184 = vld [vmem:[%s1 + $0x48] sm:$0xff]
      %v185 = vld [vmem:[%s1 + $0x50] sm:$0xff]
      %v186 = vld [vmem:[%s1 + $0x58] sm:$0xff]
      %v187 = vld [vmem:[%s1 + $0x60] sm:$0xff]
      %v188 = vld [vmem:[%s1 + $0x68] sm:$0xff]
      %v189 = vld [vmem:[%s1 + $0x70] sm:$0xff]
      %v190 = vld [vmem:[%s1 + $0x78] sm:$0xff]
      %v191 = vld [vmem:[%s1 + $0x80] sm:$0xff]
      %v192 = vld [vmem:[%s1 + $0x88] sm:$0xff]
      %v193 = vld [vmem:[%s1 + $0x90] sm:$0xff]
      %v194 = vld [vmem:[%s1 + $0x98] sm:$0xff]
      %v195 = vld [vmem:[%s1 + $0xa0] sm:$0xff]
      %v196 = vld [vmem:[%s1 + $0xa8] sm:$0xff]
      %v197 = vld [vmem:[%s1 + $0xb0] sm:$0xff]
      %v198 = vld [vmem:[%s1 + $0xb8] sm:$0xff]
      %v199 = vld [vmem:[%s1 + $0xc0] sm:$0xff]
      %v200 = vld [vmem:[%s1 + $0xc8] sm:$0xff]
      %v201 = vld [vmem:[%s1 + $0xd0] sm:$0xff]
      %v202 = vld [vmem:[%s1 + $0xd8] sm:$0xff]
      %v203 = vld [vmem:[%s1 + $0xe0] sm:$0xff]
      %v204 = vld [vmem:[%s1 + $0xe8] sm:$0xff]
      %v205 = vld [vmem:[%s1 + $0xf0] sm:$0xff]
      %v206 = vld [vmem:[%s1 + $0xf8] sm:$0xff]
      %v207 = vld [vmem:[%s1 + $0x100] sm:$0xff]
      %v208 = vld [vmem:[%s1 + $0x108] sm:$0xff]
      %v209 = vld [vmem:[%s1 + $0x110] sm:$0xff]
      %v210 = vld [vmem:[%s1 + $0x118] sm:$0xff]
      %v211 = vld [vmem:[%s1 + $0x120] sm:$0xff]
      %v212 = vld [vmem:[%s1 + $0x128] sm:$0xff]
      %v213 = vld [vmem:[%s1 + $0x130] sm:$0xff]
      %v214 = vld [vmem:[%s1 + $0x138] sm:$0xff]
      %v215 = vld [vmem:[%s1 + $0x140] sm:$0xff]
      %v216 = vld [vmem:[%s1 + $0x148] sm:$0xff]
      %v217 = vld [vmem:[%s1 + $0x150] sm:$0xff]
      %v218 = vld [vmem:[%s1 + $0x158] sm:$0xff]
      %v219 = vld [vmem:[%s1 + $0x160] sm:$0xff]
      %v220 = vld [vmem:[%s1 + $0x168] sm:$0xff]
      %v221 = vld [vmem:[%s1 + $0x170] sm:$0xff]
      %v222 = vld [vmem:[%s1 + $0x178] sm:$0xff]
      %v223 = vld [vmem:[%s1 + $0x180] sm:$0xff]
      %v224 = vld [vmem:[%s1 + $0x188] sm:$0xff]
      %v225 = vld [vmem:[%s1 + $0x190] sm:$0xff]
      %v226 = vld [vmem:[%s1 + $0x198] sm:$0xff]
      %v227 = vld [vmem:[%s1 + $0x1a0] sm:$0xff]
      %v228 = vld [vmem:[%s1 + $0x1a8] sm:$0xff]
      %v229 = vld [vmem:[%s1 + $0x1b0] sm:$0xff]
      %v230 = vld [vmem:[%s1 + $0x1b8] sm:$0xff]
      %v231 = vld [vmem:[%s1 + $0x1c0] sm:$0xff]
      %v232 = vld [vmem:[%s1 + $0x1c8] sm:$0xff]
      %v233 = vld [vmem:[%s1 + $0x1d0] sm:$0xff]
      %v234 = vld [vmem:[%s1 + $0x1d8] sm:$0xff]
      %v235 = vld [vmem:[%s1 + $0x1e0] sm:$0xff]
      %v236 = vld [vmem:[%s1 + $0x1e8] sm:$0xff]
      %v237 = vld [vmem:[%s1 + $0x1f0] sm:$0xff]
      %v238 = vld [vmem:[%s1 + $0x1f8] sm:$0xff]
      %v239 = vld [vmem:[%s1 + $0x200] sm:$0xff]
      %v240 = vld [vmem:[%s1 + $0x208] sm:$0xff]
      %v241 = vld [vmem:[%s1 + $0x210] sm:$0xff]
      %v242 = vld [vmem:[%s1 + $0x218] sm:$0xff]
      %v243 = vld [vmem:[%s1 + $0x220] sm:$0xff]
      %v244 = vld [vmem:[%s1 + $0x228] sm:$0xff]
      %v245 = vld [vmem:[%s1 + $0x230] sm:$0xff]
      %v246 = vld [vmem:[%s1 + $0x238] sm:$0xff]
      %v247 = vld [vmem:[%s1 + $0x240] sm:$0xff]
      %v248 = vld [vmem:[%s1 + $0x248] sm:$0xff]
      %v249 = vld [vmem:[%s1 + $0x250] sm:$0xff]
      %v250 = vld [vmem:[%s1 + $0x258] sm:$0xff]
      %v251 = vld [vmem:[%s1 + $0x260] sm:$0xff]
      %v252 = vld [vmem:[%s1 + $0x268] sm:$0xff]
      %v253 = vld [vmem:[%s1 + $0x270] sm:$0xff]
      %v254 = vld [vmem:[%s1 + $0x278] sm:$0xff]
      %v255 = vld [vmem:[%s1 + $0x280] sm:$0xff]
      %v256 = vld [vmem:[%s1 + $0x288] sm:$0xff]
      %v257 = vld [vmem:[%s1 + $0x290] sm:$0xff]
      %v258 = vld [vmem:[%s1 + $0x298] sm:$0xff]
      %v259 = vld [vmem:[%s1 + $0x2a0] sm:$0xff]
      %v260 = vld [vmem:[%s1 + $0x2a8] sm:$0xff]
      %v261 = vld [vmem:[%s1 + $0x2b0] sm:$0xff]
      %v262 = vld [vmem:[%s1 + $0x2b8] sm:$0xff]
      %v263 = vld [vmem:[%s1 + $0x2c0] sm:$0xff]
      %v264 = vld [vmem:[%s1 + $0x2c8] sm:$0xff]
      %v265 = vld [vmem:[%s1 + $0x2d0] sm:$0xff]
      %v266 = vld [vmem:[%s1 + $0x2d8] sm:$0xff]
      %v267 = vld [vmem:[%s1 + $0x2e0] sm:$0xff]
      %v268 = vld [vmem:[%s1 + $0x2e8] sm:$0xff]
      %v269 = vld [vmem:[%s1 + $0x2f0] sm:$0xff]
      %v270 = vld [vmem:[%s1 + $0x2f8] sm:$0xff]
      %v271 = vld [vmem:[%s1 + $0x300] sm:$0xff]
      %v272 = vld [vmem:[%s1 + $0x308] sm:$0xff]
      %v273 = vld [vmem:[%s1 + $0x310] sm:$0xff]
      %v274 = vld [vmem:[%s1 + $0x318] sm:$0xff]
      %v275 = vld [vmem:[%s1 + $0x320] sm:$0xff]
      %v276 = vld [vmem:[%s1 + $0x328] sm:$0xff]
      %v277 = vld [vmem:[%s1 + $0x330] sm:$0xff]
      %v278 = vld [vmem:[%s1 + $0x338] sm:$0xff]
      %v279 = vld [vmem:[%s1 + $0x340] sm:$0xff]
      %v280 = vld [vmem:[%s1 + $0x348] sm:$0xff]
      %v281 = vld [vmem:[%s1 + $0x350] sm:$0xff]
      %v282 = vld [vmem:[%s1 + $0x358] sm:$0xff]
      %v283 = vld [vmem:[%s1 + $0x360] sm:$0xff]
      %v284 = vld [vmem:[%s1 + $0x368] sm:$0xff]
      %v285 = vld [vmem:[%s1 + $0x370] sm:$0xff]
      %v286 = vld [vmem:[%s1 + $0x378] sm:$0xff]
      %v287 = vld [vmem:[%s1 + $0x380] sm:$0xff]
      %v288 = vld [vmem:[%s1 + $0x388] sm:$0xff]
      %v289 = vld [vmem:[%s1 + $0x390] sm:$0xff]
      %v290 = vld [vmem:[%s1 + $0x398] sm:$0xff]
      %v291 = vld [vmem:[%s1 + $0x3a0] sm:$0xff]
      %v292 = vld [vmem:[%s1 + $0x3a8] sm:$0xff]
      %v293 = vld [vmem:[%s1 + $0x3b0] sm:$0xff]
      %v294 = vld [vmem:[%s1 + $0x3b8] sm:$0xff]
      %v295 = vld [vmem:[%s1 + $0x3c0] sm:$0xff]
      %v296 = vld [vmem:[%s1 + $0x3c8] sm:$0xff]
      %v297 = vld [vmem:[%s1 + $0x3d0] sm:$0xff]
      %v298 = vld [vmem:[%s1 + $0x3d8] sm:$0xff]
      %v299 = vld [vmem:[%s1 + $0x3e0] sm:$0xff]
      %v300 = vld [vmem:[%s1 + $0x3e8] sm:$0xff]
      %v301 = vld [vmem:[%s1 + $0x3f0] sm:$0xff]
      %v302 = vld [vmem:[%s1 + $0x3f8] sm:$0xff]
      %v303 = vld [vmem:[%s165] sm:$0x6]
      %v304 = vld [vmem:[%s165 + $0x8] sm:$0x6]
      %v305 = vld [vmem:[%s165 + $0x10] sm:$0x6]
      %v306 = vld [vmem:[%s165 + $0x18] sm:$0x6]
      %s307 = scalar_lea.vmem %s1, 1024
      %v308 = vld [vmem:[%s307] sm:$0xff]
      %v309 = vld [vmem:[%s307 + $0x8] sm:$0xff]
      %v310 = vld [vmem:[%s307 + $0x10] sm:$0xff]
      %v311 = vld [vmem:[%s307 + $0x18] sm:$0xff]
      %v312 = vld [vmem:[%s307 + $0x20] sm:$0xff]
      %v313 = vld [vmem:[%s307 + $0x28] sm:$0xff]
      %v314 = vld [vmem:[%s307 + $0x30] sm:$0xff]
      %v315 = vld [vmem:[%s307 + $0x38] sm:$0xff]
      %v316 = vld [vmem:[%s307 + $0x40] sm:$0xff]
      %v317 = vld [vmem:[%s307 + $0x48] sm:$0xff]
      %v318 = vld [vmem:[%s307 + $0x50] sm:$0xff]
      %v319 = vld [vmem:[%s307 + $0x58] sm:$0xff]
      %v320 = vld [vmem:[%s307 + $0x60] sm:$0xff]
      %v321 = vld [vmem:[%s307 + $0x68] sm:$0xff]
      %v322 = vld [vmem:[%s307 + $0x70] sm:$0xff]
      %v323 = vld [vmem:[%s307 + $0x78] sm:$0xff]
      %v324 = vld [vmem:[%s307 + $0x80] sm:$0xff]
      %v325 = vld [vmem:[%s307 + $0x88] sm:$0xff]
      %v326 = vld [vmem:[%s307 + $0x90] sm:$0xff]
      %v327 = vld [vmem:[%s307 + $0x98] sm:$0xff]
      %v328 = vld [vmem:[%s307 + $0xa0] sm:$0xff]
      %v329 = vld [vmem:[%s307 + $0xa8] sm:$0xff]
      %v330 = vld [vmem:[%s307 + $0xb0] sm:$0xff]
      %v331 = vld [vmem:[%s307 + $0xb8] sm:$0xff]
      %v332 = vld [vmem:[%s307 + $0xc0] sm:$0xff]
      %v333 = vld [vmem:[%s307 + $0xc8] sm:$0xff]
      %v334 = vld [vmem:[%s307 + $0xd0] sm:$0xff]
      %v335 = vld [vmem:[%s307 + $0xd8] sm:$0xff]
      %v336 = vld [vmem:[%s307 + $0xe0] sm:$0xff]
      %v337 = vld [vmem:[%s307 + $0xe8] sm:$0xff]
      %v338 = vld [vmem:[%s307 + $0xf0] sm:$0xff]
      %v339 = vld [vmem:[%s307 + $0xf8] sm:$0xff]
      %v340 = vld [vmem:[%s307 + $0x100] sm:$0xff]
      %v341 = vld [vmem:[%s307 + $0x108] sm:$0xff]
      %v342 = vld [vmem:[%s307 + $0x110] sm:$0xff]
      %v343 = vld [vmem:[%s307 + $0x118] sm:$0xff]
      %v344 = vld [vmem:[%s307 + $0x120] sm:$0xff]
      %v345 = vld [vmem:[%s307 + $0x128] sm:$0xff]
      %v346 = vld [vmem:[%s307 + $0x130] sm:$0xff]
      %v347 = vld [vmem:[%s307 + $0x138] sm:$0xff]
      %v348 = vld [vmem:[%s307 + $0x140] sm:$0xff]
      %v349 = vld [vmem:[%s307 + $0x148] sm:$0xff]
      %v350 = vld [vmem:[%s307 + $0x150] sm:$0xff]
      %v351 = vld [vmem:[%s307 + $0x158] sm:$0xff]
      %v352 = vld [vmem:[%s307 + $0x160] sm:$0xff]
      %v353 = vld [vmem:[%s307 + $0x168] sm:$0xff]
      %v354 = vld [vmem:[%s307 + $0x170] sm:$0xff]
      %v355 = vld [vmem:[%s307 + $0x178] sm:$0xff]
      %v356 = vld [vmem:[%s307 + $0x180] sm:$0xff]
      %v357 = vld [vmem:[%s307 + $0x188] sm:$0xff]
      %v358 = vld [vmem:[%s307 + $0x190] sm:$0xff]
      %v359 = vld [vmem:[%s307 + $0x198] sm:$0xff]
      %v360 = vld [vmem:[%s307 + $0x1a0] sm:$0xff]
      %v361 = vld [vmem:[%s307 + $0x1a8] sm:$0xff]
      %v362 = vld [vmem:[%s307 + $0x1b0] sm:$0xff]
      %v363 = vld [vmem:[%s307 + $0x1b8] sm:$0xff]
      %v364 = vld [vmem:[%s307 + $0x1c0] sm:$0xff]
      %v365 = vld [vmem:[%s307 + $0x1c8] sm:$0xff]
      %v366 = vld [vmem:[%s307 + $0x1d0] sm:$0xff]
      %v367 = vld [vmem:[%s307 + $0x1d8] sm:$0xff]
      %v368 = vld [vmem:[%s307 + $0x1e0] sm:$0xff]
      %v369 = vld [vmem:[%s307 + $0x1e8] sm:$0xff]
      %v370 = vld [vmem:[%s307 + $0x1f0] sm:$0xff]
      %v371 = vld [vmem:[%s307 + $0x1f8] sm:$0xff]
      %v372 = vld [vmem:[%s307 + $0x200] sm:$0xff]
      %v373 = vld [vmem:[%s307 + $0x208] sm:$0xff]
      %v374 = vld [vmem:[%s307 + $0x210] sm:$0xff]
      %v375 = vld [vmem:[%s307 + $0x218] sm:$0xff]
      %v376 = vld [vmem:[%s307 + $0x220] sm:$0xff]
      %v377 = vld [vmem:[%s307 + $0x228] sm:$0xff]
      %v378 = vld [vmem:[%s307 + $0x230] sm:$0xff]
      %v379 = vld [vmem:[%s307 + $0x238] sm:$0xff]
      %v380 = vld [vmem:[%s307 + $0x240] sm:$0xff]
      %v381 = vld [vmem:[%s307 + $0x248] sm:$0xff]
      %v382 = vld [vmem:[%s307 + $0x250] sm:$0xff]
      %v383 = vld [vmem:[%s307 + $0x258] sm:$0xff]
      %v384 = vld [vmem:[%s307 + $0x260] sm:$0xff]
      %v385 = vld [vmem:[%s307 + $0x268] sm:$0xff]
      %v386 = vld [vmem:[%s307 + $0x270] sm:$0xff]
      %v387 = vld [vmem:[%s307 + $0x278] sm:$0xff]
      %v388 = vld [vmem:[%s307 + $0x280] sm:$0xff]
      %v389 = vld [vmem:[%s307 + $0x288] sm:$0xff]
      %v390 = vld [vmem:[%s307 + $0x290] sm:$0xff]
      %v391 = vld [vmem:[%s307 + $0x298] sm:$0xff]
      %v392 = vld [vmem:[%s307 + $0x2a0] sm:$0xff]
      %v393 = vld [vmem:[%s307 + $0x2a8] sm:$0xff]
      %v394 = vld [vmem:[%s307 + $0x2b0] sm:$0xff]
      %v395 = vld [vmem:[%s307 + $0x2b8] sm:$0xff]
      %v396 = vld [vmem:[%s307 + $0x2c0] sm:$0xff]
      %v397 = vld [vmem:[%s307 + $0x2c8] sm:$0xff]
      %v398 = vld [vmem:[%s307 + $0x2d0] sm:$0xff]
      %v399 = vld [vmem:[%s307 + $0x2d8] sm:$0xff]
      %v400 = vld [vmem:[%s307 + $0x2e0] sm:$0xff]
      %v401 = vld [vmem:[%s307 + $0x2e8] sm:$0xff]
      %v402 = vld [vmem:[%s307 + $0x2f0] sm:$0xff]
      %v403 = vld [vmem:[%s307 + $0x2f8] sm:$0xff]
      %v404 = vld [vmem:[%s307 + $0x300] sm:$0xff]
      %v405 = vld [vmem:[%s307 + $0x308] sm:$0xff]
      %v406 = vld [vmem:[%s307 + $0x310] sm:$0xff]
      %v407 = vld [vmem:[%s307 + $0x318] sm:$0xff]
      %v408 = vld [vmem:[%s307 + $0x320] sm:$0xff]
      %v409 = vld [vmem:[%s307 + $0x328] sm:$0xff]
      %v410 = vld [vmem:[%s307 + $0x330] sm:$0xff]
      %v411 = vld [vmem:[%s307 + $0x338] sm:$0xff]
      %v412 = vld [vmem:[%s307 + $0x340] sm:$0xff]
      %v413 = vld [vmem:[%s307 + $0x348] sm:$0xff]
      %v414 = vld [vmem:[%s307 + $0x350] sm:$0xff]
      %v415 = vld [vmem:[%s307 + $0x358] sm:$0xff]
      %v416 = vld [vmem:[%s307 + $0x360] sm:$0xff]
      %v417 = vld [vmem:[%s307 + $0x368] sm:$0xff]
      %v418 = vld [vmem:[%s307 + $0x370] sm:$0xff]
      %v419 = vld [vmem:[%s307 + $0x378] sm:$0xff]
      %v420 = vld [vmem:[%s307 + $0x380] sm:$0xff]
      %v421 = vld [vmem:[%s307 + $0x388] sm:$0xff]
      %v422 = vld [vmem:[%s307 + $0x390] sm:$0xff]
      %v423 = vld [vmem:[%s307 + $0x398] sm:$0xff]
      %v424 = vld [vmem:[%s307 + $0x3a0] sm:$0xff]
      %v425 = vld [vmem:[%s307 + $0x3a8] sm:$0xff]
      %v426 = vld [vmem:[%s307 + $0x3b0] sm:$0xff]
      %v427 = vld [vmem:[%s307 + $0x3b8] sm:$0xff]
      %v428 = vld [vmem:[%s307 + $0x3c0] sm:$0xff]
      %v429 = vld [vmem:[%s307 + $0x3c8] sm:$0xff]
      %v430 = vld [vmem:[%s307 + $0x3d0] sm:$0xff]
      %v431 = vld [vmem:[%s307 + $0x3d8] sm:$0xff]
      %v432 = vld [vmem:[%s307 + $0x3e0] sm:$0xff]
      %v433 = vld [vmem:[%s307 + $0x3e8] sm:$0xff]
      %v434 = vld [vmem:[%s307 + $0x3f0] sm:$0xff]
      %v435 = vld [vmem:[%s307 + $0x3f8] sm:$0xff]
      %v440 = vrot.slane %v303, 1
      %v441 = vrot.slane %v304, 1
      %v442 = vrot.slane %v305, 1
      %v443 = vrot.slane %v306, 1
      %448 = vmatprep.subr.mxu0 %v339
      %449 = vmatpush1.msra.mxu0 %v338
      %450 = vmatprep.subr.mxu0 %v337
      %451 = vmatpush1.msra.mxu0 %v336
      %452 = vmatprep.subr.mxu0 %v335
      %453 = vmatpush1.msra.mxu0 %v334
      %454 = vmatprep.subr.mxu0 %v333
      %455 = vmatpush1.msra.mxu0 %v332
      %456 = vmatprep.subr.mxu0 %v331
      %457 = vmatpush1.msra.mxu0 %v330
      %458 = vmatprep.subr.mxu0 %v329
      %459 = vmatpush1.msra.mxu0 %v328
      %460 = vmatprep.subr.mxu0 %v327
      %461 = vmatpush1.msra.mxu0 %v326
      %462 = vmatprep.subr.mxu0 %v325
      %463 = vmatpush1.msra.mxu0 %v324
      %464 = vmatprep.subr.mxu0 %v323
      %465 = vmatpush1.msra.mxu0 %v322
      %466 = vmatprep.subr.mxu0 %v321
      %467 = vmatpush1.msra.mxu0 %v320
      %468 = vmatprep.subr.mxu0 %v319
      %469 = vmatpush1.msra.mxu0 %v318
      %470 = vmatprep.subr.mxu0 %v317
      %471 = vmatpush1.msra.mxu0 %v316
      %472 = vmatprep.subr.mxu0 %v315
      %473 = vmatpush1.msra.mxu0 %v314
      %474 = vmatprep.subr.mxu0 %v313
      %475 = vmatpush1.msra.mxu0 %v312
      %476 = vmatprep.subr.mxu0 %v311
      %477 = vmatpush1.msra.mxu0 %v310
      %478 = vmatprep.subr.mxu0 %v309
      %479 = vmatpush1.msra.mxu0 %v308
      %480 = vmatprep.subr.mxu0 %v371
      %481 = vmatpush2.msra.mxu0 %v370
      %482 = vmatprep.subr.mxu0 %v369
      %483 = vmatpush2.msra.mxu0 %v368
      %484 = vmatprep.subr.mxu0 %v367
      %485 = vmatpush2.msra.mxu0 %v366
      %486 = vmatprep.subr.mxu0 %v365
      %487 = vmatpush2.msra.mxu0 %v364
      %488 = vmatprep.subr.mxu0 %v363
      %489 = vmatpush2.msra.mxu0 %v362
      %490 = vmatprep.subr.mxu0 %v361
      %491 = vmatpush2.msra.mxu0 %v360
      %492 = vmatprep.subr.mxu0 %v359
      %493 = vmatpush2.msra.mxu0 %v358
      %494 = vmatprep.subr.mxu0 %v357
      %495 = vmatpush2.msra.mxu0 %v356
      %496 = vmatprep.subr.mxu0 %v355
      %497 = vmatpush2.msra.mxu0 %v354
      %498 = vmatprep.subr.mxu0 %v353
      %499 = vmatpush2.msra.mxu0 %v352
      %500 = vmatprep.subr.mxu0 %v351
      %501 = vmatpush2.msra.mxu0 %v350
      %502 = vmatprep.subr.mxu0 %v349
      %503 = vmatpush2.msra.mxu0 %v348
      %504 = vmatprep.subr.mxu0 %v347
      %505 = vmatpush2.msra.mxu0 %v346
      %506 = vmatprep.subr.mxu0 %v345
      %507 = vmatpush2.msra.mxu0 %v344
      %508 = vmatprep.subr.mxu0 %v343
      %509 = vmatpush2.msra.mxu0 %v342
      %510 = vmatprep.subr.mxu0 %v341
      %511 = vmatpush2.msra.mxu0 %v340
      %512 = vmatprep.mubr.f32.mxu0 %v441
      %513 = vmatmul.mubr.f32.gmra.mxu0 %v440
      %v514 = vpop.f32.mrf.mxu0
      %v515 = vadd.f32 0.0, %v514
      %v516 = vpop.f32.mrf.mxu0
      %v517 = vadd.f32 0.0, %v516
      %518 = vdwg.mxu0
      %519 = vmatprep.subr.mxu0 %v403
      %520 = vmatpush1.msra.mxu0 %v402
      %521 = vmatprep.subr.mxu0 %v401
      %522 = vmatpush1.msra.mxu0 %v400
      %523 = vmatprep.subr.mxu0 %v399
      %524 = vmatpush1.msra.mxu0 %v398
      %525 = vmatprep.subr.mxu0 %v397
      %526 = vmatpush1.msra.mxu0 %v396
      %527 = vmatprep.subr.mxu0 %v395
      %528 = vmatpush1.msra.mxu0 %v394
      %529 = vmatprep.subr.mxu0 %v393
      %530 = vmatpush1.msra.mxu0 %v392
      %531 = vmatprep.subr.mxu0 %v391
      %532 = vmatpush1.msra.mxu0 %v390
      %533 = vmatprep.subr.mxu0 %v389
      %534 = vmatpush1.msra.mxu0 %v388
      %535 = vmatprep.subr.mxu0 %v387
      %536 = vmatpush1.msra.mxu0 %v386
      %537 = vmatprep.subr.mxu0 %v385
      %538 = vmatpush1.msra.mxu0 %v384
      %539 = vmatprep.subr.mxu0 %v383
      %540 = vmatpush1.msra.mxu0 %v382
      %541 = vmatprep.subr.mxu0 %v381
      %542 = vmatpush1.msra.mxu0 %v380
      %543 = vmatprep.subr.mxu0 %v379
      %544 = vmatpush1.msra.mxu0 %v378
      %545 = vmatprep.subr.mxu0 %v377
      %546 = vmatpush1.msra.mxu0 %v376
      %547 = vmatprep.subr.mxu0 %v375
      %548 = vmatpush1.msra.mxu0 %v374
      %549 = vmatprep.subr.mxu0 %v373
      %550 = vmatpush1.msra.mxu0 %v372
      %551 = vmatprep.subr.mxu0 %v435
      %552 = vmatpush2.msra.mxu0 %v434
      %553 = vmatprep.subr.mxu0 %v433
      %554 = vmatpush2.msra.mxu0 %v432
      %555 = vmatprep.subr.mxu0 %v431
      %556 = vmatpush2.msra.mxu0 %v430
      %557 = vmatprep.subr.mxu0 %v429
      %558 = vmatpush2.msra.mxu0 %v428
      %559 = vmatprep.subr.mxu0 %v427
      %560 = vmatpush2.msra.mxu0 %v426
      %561 = vmatprep.subr.mxu0 %v425
      %562 = vmatpush2.msra.mxu0 %v424
      %563 = vmatprep.subr.mxu0 %v423
      %564 = vmatpush2.msra.mxu0 %v422
      %565 = vmatprep.subr.mxu0 %v421
      %566 = vmatpush2.msra.mxu0 %v420
      %567 = vmatprep.subr.mxu0 %v419
      %568 = vmatpush2.msra.mxu0 %v418
      %569 = vmatprep.subr.mxu0 %v417
      %570 = vmatpush2.msra.mxu0 %v416
      %571 = vmatprep.subr.mxu0 %v415
      %572 = vmatpush2.msra.mxu0 %v414
      %573 = vmatprep.subr.mxu0 %v413
      %574 = vmatpush2.msra.mxu0 %v412
      %575 = vmatprep.subr.mxu0 %v411
      %576 = vmatpush2.msra.mxu0 %v410
      %577 = vmatprep.subr.mxu0 %v409
      %578 = vmatpush2.msra.mxu0 %v408
      %579 = vmatprep.subr.mxu0 %v407
      %580 = vmatpush2.msra.mxu0 %v406
      %581 = vmatprep.subr.mxu0 %v405
      %582 = vmatpush2.msra.mxu0 %v404
      %583 = vmatprep.mubr.f32.mxu0 %v443
      %584 = vmatmul.mubr.f32.gmra.mxu0 %v442
      %v585 = vpop.f32.mrf.mxu0
      %v586 = vadd.f32 %v515, %v585
      %v587 = vpop.f32.mrf.mxu0
      %v588 = vadd.f32 %v517, %v587
      %589 = vdwg.mxu0
      %590 = vmatprep.subr.mxu0 %v206
      %591 = vmatpush1.msra.mxu0 %v205
      %592 = vmatprep.subr.mxu0 %v204
      %593 = vmatpush1.msra.mxu0 %v203
      %594 = vmatprep.subr.mxu0 %v202
      %595 = vmatpush1.msra.mxu0 %v201
      %596 = vmatprep.subr.mxu0 %v200
      %597 = vmatpush1.msra.mxu0 %v199
      %598 = vmatprep.subr.mxu0 %v198
      %599 = vmatpush1.msra.mxu0 %v197
      %600 = vmatprep.subr.mxu0 %v196
      %601 = vmatpush1.msra.mxu0 %v195
      %602 = vmatprep.subr.mxu0 %v194
      %603 = vmatpush1.msra.mxu0 %v193
      %604 = vmatprep.subr.mxu0 %v192
      %605 = vmatpush1.msra.mxu0 %v191
      %606 = vmatprep.subr.mxu0 %v190
      %607 = vmatpush1.msra.mxu0 %v189
      %608 = vmatprep.subr.mxu0 %v188
      %609 = vmatpush1.msra.mxu0 %v187
      %610 = vmatprep.subr.mxu0 %v186
      %611 = vmatpush1.msra.mxu0 %v185
      %612 = vmatprep.subr.mxu0 %v184
      %613 = vmatpush1.msra.mxu0 %v183
      %614 = vmatprep.subr.mxu0 %v182
      %615 = vmatpush1.msra.mxu0 %v181
      %616 = vmatprep.subr.mxu0 %v180
      %617 = vmatpush1.msra.mxu0 %v179
      %618 = vmatprep.subr.mxu0 %v178
      %619 = vmatpush1.msra.mxu0 %v177
      %620 = vmatprep.subr.mxu0 %v176
      %621 = vmatpush1.msra.mxu0 %v175
      %622 = vmatprep.subr.mxu0 %v238
      %623 = vmatpush2.msra.mxu0 %v237
      %624 = vmatprep.subr.mxu0 %v236
      %625 = vmatpush2.msra.mxu0 %v235
      %626 = vmatprep.subr.mxu0 %v234
      %627 = vmatpush2.msra.mxu0 %v233
      %628 = vmatprep.subr.mxu0 %v232
      %629 = vmatpush2.msra.mxu0 %v231
      %630 = vmatprep.subr.mxu0 %v230
      %631 = vmatpush2.msra.mxu0 %v229
      %632 = vmatprep.subr.mxu0 %v228
      %633 = vmatpush2.msra.mxu0 %v227
      %634 = vmatprep.subr.mxu0 %v226
      %635 = vmatpush2.msra.mxu0 %v225
      %636 = vmatprep.subr.mxu0 %v224
      %637 = vmatpush2.msra.mxu0 %v223
      %638 = vmatprep.subr.mxu0 %v222
      %639 = vmatpush2.msra.mxu0 %v221
      %640 = vmatprep.subr.mxu0 %v220
      %641 = vmatpush2.msra.mxu0 %v219
      %642 = vmatprep.subr.mxu0 %v218
      %643 = vmatpush2.msra.mxu0 %v217
      %644 = vmatprep.subr.mxu0 %v216
      %645 = vmatpush2.msra.mxu0 %v215
      %646 = vmatprep.subr.mxu0 %v214
      %647 = vmatpush2.msra.mxu0 %v213
      %648 = vmatprep.subr.mxu0 %v212
      %649 = vmatpush2.msra.mxu0 %v211
      %650 = vmatprep.subr.mxu0 %v210
      %651 = vmatpush2.msra.mxu0 %v209
      %652 = vmatprep.subr.mxu0 %v208
      %653 = vmatpush2.msra.mxu0 %v207
      %654 = vmatprep.mubr.f32.mxu0 %v172
      %655 = vmatmul.mubr.f32.gmra.mxu0 %v171
      %v656 = vpop.f32.mrf.mxu0
      %v657 = vadd.f32 %v586, %v656
      %v658 = vpop.f32.mrf.mxu0
      %v659 = vadd.f32 %v588, %v658
      %660 = vdwg.mxu0
      %661 = vmatprep.subr.mxu0 %v270
      %662 = vmatpush1.msra.mxu0 %v269
      %663 = vmatprep.subr.mxu0 %v268
      %664 = vmatpush1.msra.mxu0 %v267
      %665 = vmatprep.subr.mxu0 %v266
      %666 = vmatpush1.msra.mxu0 %v265
      %667 = vmatprep.subr.mxu0 %v264
      %668 = vmatpush1.msra.mxu0 %v263
      %669 = vmatprep.subr.mxu0 %v262
      %670 = vmatpush1.msra.mxu0 %v261
      %671 = vmatprep.subr.mxu0 %v260
      %672 = vmatpush1.msra.mxu0 %v259
      %673 = vmatprep.subr.mxu0 %v258
      %674 = vmatpush1.msra.mxu0 %v257
      %675 = vmatprep.subr.mxu0 %v256
      %676 = vmatpush1.msra.mxu0 %v255
      %677 = vmatprep.subr.mxu0 %v254
      %678 = vmatpush1.msra.mxu0 %v253
      %679 = vmatprep.subr.mxu0 %v252
      %680 = vmatpush1.msra.mxu0 %v251
      %681 = vmatprep.subr.mxu0 %v250
      %682 = vmatpush1.msra.mxu0 %v249
      %683 = vmatprep.subr.mxu0 %v248
      %684 = vmatpush1.msra.mxu0 %v247
      %685 = vmatprep.subr.mxu0 %v246
      %686 = vmatpush1.msra.mxu0 %v245
      %687 = vmatprep.subr.mxu0 %v244
      %688 = vmatpush1.msra.mxu0 %v243
      %689 = vmatprep.subr.mxu0 %v242
      %690 = vmatpush1.msra.mxu0 %v241
      %691 = vmatprep.subr.mxu0 %v240
      %692 = vmatpush1.msra.mxu0 %v239
      %693 = vmatprep.subr.mxu0 %v302
      %694 = vmatpush2.msra.mxu0 %v301
      %695 = vmatprep.subr.mxu0 %v300
      %696 = vmatpush2.msra.mxu0 %v299
      %697 = vmatprep.subr.mxu0 %v298
      %698 = vmatpush2.msra.mxu0 %v297
      %699 = vmatprep.subr.mxu0 %v296
      %700 = vmatpush2.msra.mxu0 %v295
      %701 = vmatprep.subr.mxu0 %v294
      %702 = vmatpush2.msra.mxu0 %v293
      %703 = vmatprep.subr.mxu0 %v292
      %704 = vmatpush2.msra.mxu0 %v291
      %705 = vmatprep.subr.mxu0 %v290
      %706 = vmatpush2.msra.mxu0 %v289
      %707 = vmatprep.subr.mxu0 %v288
      %708 = vmatpush2.msra.mxu0 %v287
      %709 = vmatprep.subr.mxu0 %v286
      %710 = vmatpush2.msra.mxu0 %v285
      %711 = vmatprep.subr.mxu0 %v284
      %712 = vmatpush2.msra.mxu0 %v283
      %713 = vmatprep.subr.mxu0 %v282
      %714 = vmatpush2.msra.mxu0 %v281
      %715 = vmatprep.subr.mxu0 %v280
      %716 = vmatpush2.msra.mxu0 %v279
      %717 = vmatprep.subr.mxu0 %v278
      %718 = vmatpush2.msra.mxu0 %v277
      %719 = vmatprep.subr.mxu0 %v276
      %720 = vmatpush2.msra.mxu0 %v275
      %721 = vmatprep.subr.mxu0 %v274
      %722 = vmatpush2.msra.mxu0 %v273
      %723 = vmatprep.subr.mxu0 %v272
      %724 = vmatpush2.msra.mxu0 %v271
      %725 = vmatprep.mubr.f32.mxu0 %v174
      %726 = vmatmul.mubr.f32.gmra.mxu0 %v173
      %v727 = vpop.f32.mrf.mxu0
      %v728 = vadd.f32 %v657, %v727
      %v729 = vpop.f32.mrf.mxu0
      %v730 = vadd.f32 %v659, %v729
      %731 = vdwg.mxu0
      %v732 = vld [vmem:[%s165] sm:$0xc]
      %v733 = vld [vmem:[%s165 + $0x8] sm:$0xc]
      %v734 = vld [vmem:[%s165 + $0x10] sm:$0xc]
      %v735 = vld [vmem:[%s165 + $0x18] sm:$0xc]
      %s736 = scalar_lea.vmem %s1, 2048
      %v737 = vld [vmem:[%s736] sm:$0xff]
      %v738 = vld [vmem:[%s736 + $0x8] sm:$0xff]
      %v739 = vld [vmem:[%s736 + $0x10] sm:$0xff]
      %v740 = vld [vmem:[%s736 + $0x18] sm:$0xff]
      %v741 = vld [vmem:[%s736 + $0x20] sm:$0xff]
      %v742 = vld [vmem:[%s736 + $0x28] sm:$0xff]
      %v743 = vld [vmem:[%s736 + $0x30] sm:$0xff]
      %v744 = vld [vmem:[%s736 + $0x38] sm:$0xff]
      %v745 = vld [vmem:[%s736 + $0x40] sm:$0xff]
      %v746 = vld [vmem:[%s736 + $0x48] sm:$0xff]
      %v747 = vld [vmem:[%s736 + $0x50] sm:$0xff]
      %v748 = vld [vmem:[%s736 + $0x58] sm:$0xff]
      %v749 = vld [vmem:[%s736 + $0x60] sm:$0xff]
      %v750 = vld [vmem:[%s736 + $0x68] sm:$0xff]
      %v751 = vld [vmem:[%s736 + $0x70] sm:$0xff]
      %v752 = vld [vmem:[%s736 + $0x78] sm:$0xff]
      %v753 = vld [vmem:[%s736 + $0x80] sm:$0xff]
      %v754 = vld [vmem:[%s736 + $0x88] sm:$0xff]
      %v755 = vld [vmem:[%s736 + $0x90] sm:$0xff]
      %v756 = vld [vmem:[%s736 + $0x98] sm:$0xff]
      %v757 = vld [vmem:[%s736 + $0xa0] sm:$0xff]
      %v758 = vld [vmem:[%s736 + $0xa8] sm:$0xff]
      %v759 = vld [vmem:[%s736 + $0xb0] sm:$0xff]
      %v760 = vld [vmem:[%s736 + $0xb8] sm:$0xff]
      %v761 = vld [vmem:[%s736 + $0xc0] sm:$0xff]
      %v762 = vld [vmem:[%s736 + $0xc8] sm:$0xff]
      %v763 = vld [vmem:[%s736 + $0xd0] sm:$0xff]
      %v764 = vld [vmem:[%s736 + $0xd8] sm:$0xff]
      %v765 = vld [vmem:[%s736 + $0xe0] sm:$0xff]
      %v766 = vld [vmem:[%s736 + $0xe8] sm:$0xff]
      %v767 = vld [vmem:[%s736 + $0xf0] sm:$0xff]
      %v768 = vld [vmem:[%s736 + $0xf8] sm:$0xff]
      %v769 = vld [vmem:[%s736 + $0x100] sm:$0xff]
      %v770 = vld [vmem:[%s736 + $0x108] sm:$0xff]
      %v771 = vld [vmem:[%s736 + $0x110] sm:$0xff]
      %v772 = vld [vmem:[%s736 + $0x118] sm:$0xff]
      %v773 = vld [vmem:[%s736 + $0x120] sm:$0xff]
      %v774 = vld [vmem:[%s736 + $0x128] sm:$0xff]
      %v775 = vld [vmem:[%s736 + $0x130] sm:$0xff]
      %v776 = vld [vmem:[%s736 + $0x138] sm:$0xff]
      %v777 = vld [vmem:[%s736 + $0x140] sm:$0xff]
      %v778 = vld [vmem:[%s736 + $0x148] sm:$0xff]
      %v779 = vld [vmem:[%s736 + $0x150] sm:$0xff]
      %v780 = vld [vmem:[%s736 + $0x158] sm:$0xff]
      %v781 = vld [vmem:[%s736 + $0x160] sm:$0xff]
      %v782 = vld [vmem:[%s736 + $0x168] sm:$0xff]
      %v783 = vld [vmem:[%s736 + $0x170] sm:$0xff]
      %v784 = vld [vmem:[%s736 + $0x178] sm:$0xff]
      %v785 = vld [vmem:[%s736 + $0x180] sm:$0xff]
      %v786 = vld [vmem:[%s736 + $0x188] sm:$0xff]
      %v787 = vld [vmem:[%s736 + $0x190] sm:$0xff]
      %v788 = vld [vmem:[%s736 + $0x198] sm:$0xff]
      %v789 = vld [vmem:[%s736 + $0x1a0] sm:$0xff]
      %v790 = vld [vmem:[%s736 + $0x1a8] sm:$0xff]
      %v791 = vld [vmem:[%s736 + $0x1b0] sm:$0xff]
      %v792 = vld [vmem:[%s736 + $0x1b8] sm:$0xff]
      %v793 = vld [vmem:[%s736 + $0x1c0] sm:$0xff]
      %v794 = vld [vmem:[%s736 + $0x1c8] sm:$0xff]
      %v795 = vld [vmem:[%s736 + $0x1d0] sm:$0xff]
      %v796 = vld [vmem:[%s736 + $0x1d8] sm:$0xff]
      %v797 = vld [vmem:[%s736 + $0x1e0] sm:$0xff]
      %v798 = vld [vmem:[%s736 + $0x1e8] sm:$0xff]
      %v799 = vld [vmem:[%s736 + $0x1f0] sm:$0xff]
      %v800 = vld [vmem:[%s736 + $0x1f8] sm:$0xff]
      %v801 = vld [vmem:[%s736 + $0x200] sm:$0xff]
      %v802 = vld [vmem:[%s736 + $0x208] sm:$0xff]
      %v803 = vld [vmem:[%s736 + $0x210] sm:$0xff]
      %v804 = vld [vmem:[%s736 + $0x218] sm:$0xff]
      %v805 = vld [vmem:[%s736 + $0x220] sm:$0xff]
      %v806 = vld [vmem:[%s736 + $0x228] sm:$0xff]
      %v807 = vld [vmem:[%s736 + $0x230] sm:$0xff]
      %v808 = vld [vmem:[%s736 + $0x238] sm:$0xff]
      %v809 = vld [vmem:[%s736 + $0x240] sm:$0xff]
      %v810 = vld [vmem:[%s736 + $0x248] sm:$0xff]
      %v811 = vld [vmem:[%s736 + $0x250] sm:$0xff]
      %v812 = vld [vmem:[%s736 + $0x258] sm:$0xff]
      %v813 = vld [vmem:[%s736 + $0x260] sm:$0xff]
      %v814 = vld [vmem:[%s736 + $0x268] sm:$0xff]
      %v815 = vld [vmem:[%s736 + $0x270] sm:$0xff]
      %v816 = vld [vmem:[%s736 + $0x278] sm:$0xff]
      %v817 = vld [vmem:[%s736 + $0x280] sm:$0xff]
      %v818 = vld [vmem:[%s736 + $0x288] sm:$0xff]
      %v819 = vld [vmem:[%s736 + $0x290] sm:$0xff]
      %v820 = vld [vmem:[%s736 + $0x298] sm:$0xff]
      %v821 = vld [vmem:[%s736 + $0x2a0] sm:$0xff]
      %v822 = vld [vmem:[%s736 + $0x2a8] sm:$0xff]
      %v823 = vld [vmem:[%s736 + $0x2b0] sm:$0xff]
      %v824 = vld [vmem:[%s736 + $0x2b8] sm:$0xff]
      %v825 = vld [vmem:[%s736 + $0x2c0] sm:$0xff]
      %v826 = vld [vmem:[%s736 + $0x2c8] sm:$0xff]
      %v827 = vld [vmem:[%s736 + $0x2d0] sm:$0xff]
      %v828 = vld [vmem:[%s736 + $0x2d8] sm:$0xff]
      %v829 = vld [vmem:[%s736 + $0x2e0] sm:$0xff]
      %v830 = vld [vmem:[%s736 + $0x2e8] sm:$0xff]
      %v831 = vld [vmem:[%s736 + $0x2f0] sm:$0xff]
      %v832 = vld [vmem:[%s736 + $0x2f8] sm:$0xff]
      %v833 = vld [vmem:[%s736 + $0x300] sm:$0xff]
      %v834 = vld [vmem:[%s736 + $0x308] sm:$0xff]
      %v835 = vld [vmem:[%s736 + $0x310] sm:$0xff]
      %v836 = vld [vmem:[%s736 + $0x318] sm:$0xff]
      %v837 = vld [vmem:[%s736 + $0x320] sm:$0xff]
      %v838 = vld [vmem:[%s736 + $0x328] sm:$0xff]
      %v839 = vld [vmem:[%s736 + $0x330] sm:$0xff]
      %v840 = vld [vmem:[%s736 + $0x338] sm:$0xff]
      %v841 = vld [vmem:[%s736 + $0x340] sm:$0xff]
      %v842 = vld [vmem:[%s736 + $0x348] sm:$0xff]
      %v843 = vld [vmem:[%s736 + $0x350] sm:$0xff]
      %v844 = vld [vmem:[%s736 + $0x358] sm:$0xff]
      %v845 = vld [vmem:[%s736 + $0x360] sm:$0xff]
      %v846 = vld [vmem:[%s736 + $0x368] sm:$0xff]
      %v847 = vld [vmem:[%s736 + $0x370] sm:$0xff]
      %v848 = vld [vmem:[%s736 + $0x378] sm:$0xff]
      %v849 = vld [vmem:[%s736 + $0x380] sm:$0xff]
      %v850 = vld [vmem:[%s736 + $0x388] sm:$0xff]
      %v851 = vld [vmem:[%s736 + $0x390] sm:$0xff]
      %v852 = vld [vmem:[%s736 + $0x398] sm:$0xff]
      %v853 = vld [vmem:[%s736 + $0x3a0] sm:$0xff]
      %v854 = vld [vmem:[%s736 + $0x3a8] sm:$0xff]
      %v855 = vld [vmem:[%s736 + $0x3b0] sm:$0xff]
      %v856 = vld [vmem:[%s736 + $0x3b8] sm:$0xff]
      %v857 = vld [vmem:[%s736 + $0x3c0] sm:$0xff]
      %v858 = vld [vmem:[%s736 + $0x3c8] sm:$0xff]
      %v859 = vld [vmem:[%s736 + $0x3d0] sm:$0xff]
      %v860 = vld [vmem:[%s736 + $0x3d8] sm:$0xff]
      %v861 = vld [vmem:[%s736 + $0x3e0] sm:$0xff]
      %v862 = vld [vmem:[%s736 + $0x3e8] sm:$0xff]
      %v863 = vld [vmem:[%s736 + $0x3f0] sm:$0xff]
      %v864 = vld [vmem:[%s736 + $0x3f8] sm:$0xff]
      %v869 = vrot.slane %v732, 2
      %v870 = vrot.slane %v733, 2
      %v871 = vrot.slane %v734, 2
      %v872 = vrot.slane %v735, 2
      %877 = vmatprep.subr.mxu0 %v768
      %878 = vmatpush1.msra.mxu0 %v767
      %879 = vmatprep.subr.mxu0 %v766
      %880 = vmatpush1.msra.mxu0 %v765
      %881 = vmatprep.subr.mxu0 %v764
      %882 = vmatpush1.msra.mxu0 %v763
      %883 = vmatprep.subr.mxu0 %v762
      %884 = vmatpush1.msra.mxu0 %v761
      %885 = vmatprep.subr.mxu0 %v760
      %886 = vmatpush1.msra.mxu0 %v759
      %887 = vmatprep.subr.mxu0 %v758
      %888 = vmatpush1.msra.mxu0 %v757
      %889 = vmatprep.subr.mxu0 %v756
      %890 = vmatpush1.msra.mxu0 %v755
      %891 = vmatprep.subr.mxu0 %v754
      %892 = vmatpush1.msra.mxu0 %v753
      %893 = vmatprep.subr.mxu0 %v752
      %894 = vmatpush1.msra.mxu0 %v751
      %895 = vmatprep.subr.mxu0 %v750
      %896 = vmatpush1.msra.mxu0 %v749
      %897 = vmatprep.subr.mxu0 %v748
      %898 = vmatpush1.msra.mxu0 %v747
      %899 = vmatprep.subr.mxu0 %v746
      %900 = vmatpush1.msra.mxu0 %v745
      %901 = vmatprep.subr.mxu0 %v744
      %902 = vmatpush1.msra.mxu0 %v743
      %903 = vmatprep.subr.mxu0 %v742
      %904 = vmatpush1.msra.mxu0 %v741
      %905 = vmatprep.subr.mxu0 %v740
      %906 = vmatpush1.msra.mxu0 %v739
      %907 = vmatprep.subr.mxu0 %v738
      %908 = vmatpush1.msra.mxu0 %v737
      %909 = vmatprep.subr.mxu0 %v800
      %910 = vmatpush2.msra.mxu0 %v799
      %911 = vmatprep.subr.mxu0 %v798
      %912 = vmatpush2.msra.mxu0 %v797
      %913 = vmatprep.subr.mxu0 %v796
      %914 = vmatpush2.msra.mxu0 %v795
      %915 = vmatprep.subr.mxu0 %v794
      %916 = vmatpush2.msra.mxu0 %v793
      %917 = vmatprep.subr.mxu0 %v792
      %918 = vmatpush2.msra.mxu0 %v791
      %919 = vmatprep.subr.mxu0 %v790
      %920 = vmatpush2.msra.mxu0 %v789
      %921 = vmatprep.subr.mxu0 %v788
      %922 = vmatpush2.msra.mxu0 %v787
      %923 = vmatprep.subr.mxu0 %v786
      %924 = vmatpush2.msra.mxu0 %v785
      %925 = vmatprep.subr.mxu0 %v784
      %926 = vmatpush2.msra.mxu0 %v783
      %927 = vmatprep.subr.mxu0 %v782
      %928 = vmatpush2.msra.mxu0 %v781
      %929 = vmatprep.subr.mxu0 %v780
      %930 = vmatpush2.msra.mxu0 %v779
      %931 = vmatprep.subr.mxu0 %v778
      %932 = vmatpush2.msra.mxu0 %v777
      %933 = vmatprep.subr.mxu0 %v776
      %934 = vmatpush2.msra.mxu0 %v775
      %935 = vmatprep.subr.mxu0 %v774
      %936 = vmatpush2.msra.mxu0 %v773
      %937 = vmatprep.subr.mxu0 %v772
      %938 = vmatpush2.msra.mxu0 %v771
      %939 = vmatprep.subr.mxu0 %v770
      %940 = vmatpush2.msra.mxu0 %v769
      %941 = vmatprep.mubr.f32.mxu0 %v870
      %942 = vmatmul.mubr.f32.gmra.mxu0 %v869
      %v943 = vpop.f32.mrf.mxu0
      %v944 = vadd.f32 0.0, %v943
      %v945 = vpop.f32.mrf.mxu0
      %v946 = vadd.f32 0.0, %v945
      %947 = vdwg.mxu0
      %948 = vmatprep.subr.mxu0 %v832
      %949 = vmatpush1.msra.mxu0 %v831
      %950 = vmatprep.subr.mxu0 %v830
      %951 = vmatpush1.msra.mxu0 %v829
      %952 = vmatprep.subr.mxu0 %v828
      %953 = vmatpush1.msra.mxu0 %v827
      %954 = vmatprep.subr.mxu0 %v826
      %955 = vmatpush1.msra.mxu0 %v825
      %956 = vmatprep.subr.mxu0 %v824
      %957 = vmatpush1.msra.mxu0 %v823
      %958 = vmatprep.subr.mxu0 %v822
      %959 = vmatpush1.msra.mxu0 %v821
      %960 = vmatprep.subr.mxu0 %v820
      %961 = vmatpush1.msra.mxu0 %v819
      %962 = vmatprep.subr.mxu0 %v818
      %963 = vmatpush1.msra.mxu0 %v817
      %964 = vmatprep.subr.mxu0 %v816
      %965 = vmatpush1.msra.mxu0 %v815
      %966 = vmatprep.subr.mxu0 %v814
      %967 = vmatpush1.msra.mxu0 %v813
      %968 = vmatprep.subr.mxu0 %v812
      %969 = vmatpush1.msra.mxu0 %v811
      %970 = vmatprep.subr.mxu0 %v810
      %971 = vmatpush1.msra.mxu0 %v809
      %972 = vmatprep.subr.mxu0 %v808
      %973 = vmatpush1.msra.mxu0 %v807
      %974 = vmatprep.subr.mxu0 %v806
      %975 = vmatpush1.msra.mxu0 %v805
      %976 = vmatprep.subr.mxu0 %v804
      %977 = vmatpush1.msra.mxu0 %v803
      %978 = vmatprep.subr.mxu0 %v802
      %979 = vmatpush1.msra.mxu0 %v801
      %980 = vmatprep.subr.mxu0 %v864
      %981 = vmatpush2.msra.mxu0 %v863
      %982 = vmatprep.subr.mxu0 %v862
      %983 = vmatpush2.msra.mxu0 %v861
      %984 = vmatprep.subr.mxu0 %v860
      %985 = vmatpush2.msra.mxu0 %v859
      %986 = vmatprep.subr.mxu0 %v858
      %987 = vmatpush2.msra.mxu0 %v857
      %988 = vmatprep.subr.mxu0 %v856
      %989 = vmatpush2.msra.mxu0 %v855
      %990 = vmatprep.subr.mxu0 %v854
      %991 = vmatpush2.msra.mxu0 %v853
      %992 = vmatprep.subr.mxu0 %v852
      %993 = vmatpush2.msra.mxu0 %v851
      %994 = vmatprep.subr.mxu0 %v850
      %995 = vmatpush2.msra.mxu0 %v849
      %996 = vmatprep.subr.mxu0 %v848
      %997 = vmatpush2.msra.mxu0 %v847
      %998 = vmatprep.subr.mxu0 %v846
      %999 = vmatpush2.msra.mxu0 %v845
      %1000 = vmatprep.subr.mxu0 %v844
      %1001 = vmatpush2.msra.mxu0 %v843
      %1002 = vmatprep.subr.mxu0 %v842
      %1003 = vmatpush2.msra.mxu0 %v841
      %1004 = vmatprep.subr.mxu0 %v840
      %1005 = vmatpush2.msra.mxu0 %v839
      %1006 = vmatprep.subr.mxu0 %v838
      %1007 = vmatpush2.msra.mxu0 %v837
      %1008 = vmatprep.subr.mxu0 %v836
      %1009 = vmatpush2.msra.mxu0 %v835
      %1010 = vmatprep.subr.mxu0 %v834
      %1011 = vmatpush2.msra.mxu0 %v833
      %1012 = vmatprep.mubr.f32.mxu0 %v872
      %1013 = vmatmul.mubr.f32.gmra.mxu0 %v871
      %v1014 = vpop.f32.mrf.mxu0
      %v1015 = vadd.f32 %v944, %v1014
      %v1016 = vpop.f32.mrf.mxu0
      %v1017 = vadd.f32 %v946, %v1016
      %1018 = vdwg.mxu0
      %v1019 = vadd.f32 %v728, %v1015
      %v1020 = vadd.f32 %v730, %v1017
      %v1021 = vld [vmem:[%s165] sm:$0x18]
      %v1022 = vld [vmem:[%s165 + $0x8] sm:$0x18]
      %v1023 = vld [vmem:[%s165 + $0x10] sm:$0x18]
      %v1024 = vld [vmem:[%s165 + $0x18] sm:$0x18]
      %s1025 = scalar_lea.vmem %s1, 3072
      %v1026 = vld [vmem:[%s1025] sm:$0xff]
      %v1027 = vld [vmem:[%s1025 + $0x8] sm:$0xff]
      %v1028 = vld [vmem:[%s1025 + $0x10] sm:$0xff]
      %v1029 = vld [vmem:[%s1025 + $0x18] sm:$0xff]
      %v1030 = vld [vmem:[%s1025 + $0x20] sm:$0xff]
      %v1031 = vld [vmem:[%s1025 + $0x28] sm:$0xff]
      %v1032 = vld [vmem:[%s1025 + $0x30] sm:$0xff]
      %v1033 = vld [vmem:[%s1025 + $0x38] sm:$0xff]
      %v1034 = vld [vmem:[%s1025 + $0x40] sm:$0xff]
      %v1035 = vld [vmem:[%s1025 + $0x48] sm:$0xff]
      %v1036 = vld [vmem:[%s1025 + $0x50] sm:$0xff]
      %v1037 = vld [vmem:[%s1025 + $0x58] sm:$0xff]
      %v1038 = vld [vmem:[%s1025 + $0x60] sm:$0xff]
      %v1039 = vld [vmem:[%s1025 + $0x68] sm:$0xff]
      %v1040 = vld [vmem:[%s1025 + $0x70] sm:$0xff]
      %v1041 = vld [vmem:[%s1025 + $0x78] sm:$0xff]
      %v1042 = vld [vmem:[%s1025 + $0x80] sm:$0xff]
      %v1043 = vld [vmem:[%s1025 + $0x88] sm:$0xff]
      %v1044 = vld [vmem:[%s1025 + $0x90] sm:$0xff]
      %v1045 = vld [vmem:[%s1025 + $0x98] sm:$0xff]
      %v1046 = vld [vmem:[%s1025 + $0xa0] sm:$0xff]
      %v1047 = vld [vmem:[%s1025 + $0xa8] sm:$0xff]
      %v1048 = vld [vmem:[%s1025 + $0xb0] sm:$0xff]
      %v1049 = vld [vmem:[%s1025 + $0xb8] sm:$0xff]
      %v1050 = vld [vmem:[%s1025 + $0xc0] sm:$0xff]
      %v1051 = vld [vmem:[%s1025 + $0xc8] sm:$0xff]
      %v1052 = vld [vmem:[%s1025 + $0xd0] sm:$0xff]
      %v1053 = vld [vmem:[%s1025 + $0xd8] sm:$0xff]
      %v1054 = vld [vmem:[%s1025 + $0xe0] sm:$0xff]
      %v1055 = vld [vmem:[%s1025 + $0xe8] sm:$0xff]
      %v1056 = vld [vmem:[%s1025 + $0xf0] sm:$0xff]
      %v1057 = vld [vmem:[%s1025 + $0xf8] sm:$0xff]
      %v1058 = vld [vmem:[%s1025 + $0x100] sm:$0xff]
      %v1059 = vld [vmem:[%s1025 + $0x108] sm:$0xff]
      %v1060 = vld [vmem:[%s1025 + $0x110] sm:$0xff]
      %v1061 = vld [vmem:[%s1025 + $0x118] sm:$0xff]
      %v1062 = vld [vmem:[%s1025 + $0x120] sm:$0xff]
      %v1063 = vld [vmem:[%s1025 + $0x128] sm:$0xff]
      %v1064 = vld [vmem:[%s1025 + $0x130] sm:$0xff]
      %v1065 = vld [vmem:[%s1025 + $0x138] sm:$0xff]
      %v1066 = vld [vmem:[%s1025 + $0x140] sm:$0xff]
      %v1067 = vld [vmem:[%s1025 + $0x148] sm:$0xff]
      %v1068 = vld [vmem:[%s1025 + $0x150] sm:$0xff]
      %v1069 = vld [vmem:[%s1025 + $0x158] sm:$0xff]
      %v1070 = vld [vmem:[%s1025 + $0x160] sm:$0xff]
      %v1071 = vld [vmem:[%s1025 + $0x168] sm:$0xff]
      %v1072 = vld [vmem:[%s1025 + $0x170] sm:$0xff]
      %v1073 = vld [vmem:[%s1025 + $0x178] sm:$0xff]
      %v1074 = vld [vmem:[%s1025 + $0x180] sm:$0xff]
      %v1075 = vld [vmem:[%s1025 + $0x188] sm:$0xff]
      %v1076 = vld [vmem:[%s1025 + $0x190] sm:$0xff]
      %v1077 = vld [vmem:[%s1025 + $0x198] sm:$0xff]
      %v1078 = vld [vmem:[%s1025 + $0x1a0] sm:$0xff]
      %v1079 = vld [vmem:[%s1025 + $0x1a8] sm:$0xff]
      %v1080 = vld [vmem:[%s1025 + $0x1b0] sm:$0xff]
      %v1081 = vld [vmem:[%s1025 + $0x1b8] sm:$0xff]
      %v1082 = vld [vmem:[%s1025 + $0x1c0] sm:$0xff]
      %v1083 = vld [vmem:[%s1025 + $0x1c8] sm:$0xff]
      %v1084 = vld [vmem:[%s1025 + $0x1d0] sm:$0xff]
      %v1085 = vld [vmem:[%s1025 + $0x1d8] sm:$0xff]
      %v1086 = vld [vmem:[%s1025 + $0x1e0] sm:$0xff]
      %v1087 = vld [vmem:[%s1025 + $0x1e8] sm:$0xff]
      %v1088 = vld [vmem:[%s1025 + $0x1f0] sm:$0xff]
      %v1089 = vld [vmem:[%s1025 + $0x1f8] sm:$0xff]
      %v1090 = vld [vmem:[%s1025 + $0x200] sm:$0xff]
      %v1091 = vld [vmem:[%s1025 + $0x208] sm:$0xff]
      %v1092 = vld [vmem:[%s1025 + $0x210] sm:$0xff]
      %v1093 = vld [vmem:[%s1025 + $0x218] sm:$0xff]
      %v1094 = vld [vmem:[%s1025 + $0x220] sm:$0xff]
      %v1095 = vld [vmem:[%s1025 + $0x228] sm:$0xff]
      %v1096 = vld [vmem:[%s1025 + $0x230] sm:$0xff]
      %v1097 = vld [vmem:[%s1025 + $0x238] sm:$0xff]
      %v1098 = vld [vmem:[%s1025 + $0x240] sm:$0xff]
      %v1099 = vld [vmem:[%s1025 + $0x248] sm:$0xff]
      %v1100 = vld [vmem:[%s1025 + $0x250] sm:$0xff]
      %v1101 = vld [vmem:[%s1025 + $0x258] sm:$0xff]
      %v1102 = vld [vmem:[%s1025 + $0x260] sm:$0xff]
      %v1103 = vld [vmem:[%s1025 + $0x268] sm:$0xff]
      %v1104 = vld [vmem:[%s1025 + $0x270] sm:$0xff]
      %v1105 = vld [vmem:[%s1025 + $0x278] sm:$0xff]
      %v1106 = vld [vmem:[%s1025 + $0x280] sm:$0xff]
      %v1107 = vld [vmem:[%s1025 + $0x288] sm:$0xff]
      %v1108 = vld [vmem:[%s1025 + $0x290] sm:$0xff]
      %v1109 = vld [vmem:[%s1025 + $0x298] sm:$0xff]
      %v1110 = vld [vmem:[%s1025 + $0x2a0] sm:$0xff]
      %v1111 = vld [vmem:[%s1025 + $0x2a8] sm:$0xff]
      %v1112 = vld [vmem:[%s1025 + $0x2b0] sm:$0xff]
      %v1113 = vld [vmem:[%s1025 + $0x2b8] sm:$0xff]
      %v1114 = vld [vmem:[%s1025 + $0x2c0] sm:$0xff]
      %v1115 = vld [vmem:[%s1025 + $0x2c8] sm:$0xff]
      %v1116 = vld [vmem:[%s1025 + $0x2d0] sm:$0xff]
      %v1117 = vld [vmem:[%s1025 + $0x2d8] sm:$0xff]
      %v1118 = vld [vmem:[%s1025 + $0x2e0] sm:$0xff]
      %v1119 = vld [vmem:[%s1025 + $0x2e8] sm:$0xff]
      %v1120 = vld [vmem:[%s1025 + $0x2f0] sm:$0xff]
      %v1121 = vld [vmem:[%s1025 + $0x2f8] sm:$0xff]
      %v1122 = vld [vmem:[%s1025 + $0x300] sm:$0xff]
      %v1123 = vld [vmem:[%s1025 + $0x308] sm:$0xff]
      %v1124 = vld [vmem:[%s1025 + $0x310] sm:$0xff]
      %v1125 = vld [vmem:[%s1025 + $0x318] sm:$0xff]
      %v1126 = vld [vmem:[%s1025 + $0x320] sm:$0xff]
      %v1127 = vld [vmem:[%s1025 + $0x328] sm:$0xff]
      %v1128 = vld [vmem:[%s1025 + $0x330] sm:$0xff]
      %v1129 = vld [vmem:[%s1025 + $0x338] sm:$0xff]
      %v1130 = vld [vmem:[%s1025 + $0x340] sm:$0xff]
      %v1131 = vld [vmem:[%s1025 + $0x348] sm:$0xff]
      %v1132 = vld [vmem:[%s1025 + $0x350] sm:$0xff]
      %v1133 = vld [vmem:[%s1025 + $0x358] sm:$0xff]
      %v1134 = vld [vmem:[%s1025 + $0x360] sm:$0xff]
      %v1135 = vld [vmem:[%s1025 + $0x368] sm:$0xff]
      %v1136 = vld [vmem:[%s1025 + $0x370] sm:$0xff]
      %v1137 = vld [vmem:[%s1025 + $0x378] sm:$0xff]
      %v1138 = vld [vmem:[%s1025 + $0x380] sm:$0xff]
      %v1139 = vld [vmem:[%s1025 + $0x388] sm:$0xff]
      %v1140 = vld [vmem:[%s1025 + $0x390] sm:$0xff]
      %v1141 = vld [vmem:[%s1025 + $0x398] sm:$0xff]
      %v1142 = vld [vmem:[%s1025 + $0x3a0] sm:$0xff]
      %v1143 = vld [vmem:[%s1025 + $0x3a8] sm:$0xff]
      %v1144 = vld [vmem:[%s1025 + $0x3b0] sm:$0xff]
      %v1145 = vld [vmem:[%s1025 + $0x3b8] sm:$0xff]
      %v1146 = vld [vmem:[%s1025 + $0x3c0] sm:$0xff]
      %v1147 = vld [vmem:[%s1025 + $0x3c8] sm:$0xff]
      %v1148 = vld [vmem:[%s1025 + $0x3d0] sm:$0xff]
      %v1149 = vld [vmem:[%s1025 + $0x3d8] sm:$0xff]
      %v1150 = vld [vmem:[%s1025 + $0x3e0] sm:$0xff]
      %v1151 = vld [vmem:[%s1025 + $0x3e8] sm:$0xff]
      %v1152 = vld [vmem:[%s1025 + $0x3f0] sm:$0xff]
      %v1153 = vld [vmem:[%s1025 + $0x3f8] sm:$0xff]
      %v1158 = vrot.slane %v1021, 3
      %v1159 = vrot.slane %v1022, 3
      %v1160 = vrot.slane %v1023, 3
      %v1161 = vrot.slane %v1024, 3
      %1166 = vmatprep.subr.mxu0 %v1057
      %1167 = vmatpush1.msra.mxu0 %v1056
      %1168 = vmatprep.subr.mxu0 %v1055
      %1169 = vmatpush1.msra.mxu0 %v1054
      %1170 = vmatprep.subr.mxu0 %v1053
      %1171 = vmatpush1.msra.mxu0 %v1052
      %1172 = vmatprep.subr.mxu0 %v1051
      %1173 = vmatpush1.msra.mxu0 %v1050
      %1174 = vmatprep.subr.mxu0 %v1049
      %1175 = vmatpush1.msra.mxu0 %v1048
      %1176 = vmatprep.subr.mxu0 %v1047
      %1177 = vmatpush1.msra.mxu0 %v1046
      %1178 = vmatprep.subr.mxu0 %v1045
      %1179 = vmatpush1.msra.mxu0 %v1044
      %1180 = vmatprep.subr.mxu0 %v1043
      %1181 = vmatpush1.msra.mxu0 %v1042
      %1182 = vmatprep.subr.mxu0 %v1041
      %1183 = vmatpush1.msra.mxu0 %v1040
      %1184 = vmatprep.subr.mxu0 %v1039
      %1185 = vmatpush1.msra.mxu0 %v1038
      %1186 = vmatprep.subr.mxu0 %v1037
      %1187 = vmatpush1.msra.mxu0 %v1036
      %1188 = vmatprep.subr.mxu0 %v1035
      %1189 = vmatpush1.msra.mxu0 %v1034
      %1190 = vmatprep.subr.mxu0 %v1033
      %1191 = vmatpush1.msra.mxu0 %v1032
      %1192 = vmatprep.subr.mxu0 %v1031
      %1193 = vmatpush1.msra.mxu0 %v1030
      %1194 = vmatprep.subr.mxu0 %v1029
      %1195 = vmatpush1.msra.mxu0 %v1028
      %1196 = vmatprep.subr.mxu0 %v1027
      %1197 = vmatpush1.msra.mxu0 %v1026
      %1198 = vmatprep.subr.mxu0 %v1089
      %1199 = vmatpush2.msra.mxu0 %v1088
      %1200 = vmatprep.subr.mxu0 %v1087
      %1201 = vmatpush2.msra.mxu0 %v1086
      %1202 = vmatprep.subr.mxu0 %v1085
      %1203 = vmatpush2.msra.mxu0 %v1084
      %1204 = vmatprep.subr.mxu0 %v1083
      %1205 = vmatpush2.msra.mxu0 %v1082
      %1206 = vmatprep.subr.mxu0 %v1081
      %1207 = vmatpush2.msra.mxu0 %v1080
      %1208 = vmatprep.subr.mxu0 %v1079
      %1209 = vmatpush2.msra.mxu0 %v1078
      %1210 = vmatprep.subr.mxu0 %v1077
      %1211 = vmatpush2.msra.mxu0 %v1076
      %1212 = vmatprep.subr.mxu0 %v1075
      %1213 = vmatpush2.msra.mxu0 %v1074
      %1214 = vmatprep.subr.mxu0 %v1073
      %1215 = vmatpush2.msra.mxu0 %v1072
      %1216 = vmatprep.subr.mxu0 %v1071
      %1217 = vmatpush2.msra.mxu0 %v1070
      %1218 = vmatprep.subr.mxu0 %v1069
      %1219 = vmatpush2.msra.mxu0 %v1068
      %1220 = vmatprep.subr.mxu0 %v1067
      %1221 = vmatpush2.msra.mxu0 %v1066
      %1222 = vmatprep.subr.mxu0 %v1065
      %1223 = vmatpush2.msra.mxu0 %v1064
      %1224 = vmatprep.subr.mxu0 %v1063
      %1225 = vmatpush2.msra.mxu0 %v1062
      %1226 = vmatprep.subr.mxu0 %v1061
      %1227 = vmatpush2.msra.mxu0 %v1060
      %1228 = vmatprep.subr.mxu0 %v1059
      %1229 = vmatpush2.msra.mxu0 %v1058
      %1230 = vmatprep.mubr.f32.mxu0 %v1159
      %1231 = vmatmul.mubr.f32.gmra.mxu0 %v1158
      %v1232 = vpop.f32.mrf.mxu0
      %v1233 = vadd.f32 0.0, %v1232
      %v1234 = vpop.f32.mrf.mxu0
      %v1235 = vadd.f32 0.0, %v1234
      %1236 = vdwg.mxu0
      %1237 = vmatprep.subr.mxu0 %v1121
      %1238 = vmatpush1.msra.mxu0 %v1120
      %1239 = vmatprep.subr.mxu0 %v1119
      %1240 = vmatpush1.msra.mxu0 %v1118
      %1241 = vmatprep.subr.mxu0 %v1117
      %1242 = vmatpush1.msra.mxu0 %v1116
      %1243 = vmatprep.subr.mxu0 %v1115
      %1244 = vmatpush1.msra.mxu0 %v1114
      %1245 = vmatprep.subr.mxu0 %v1113
      %1246 = vmatpush1.msra.mxu0 %v1112
      %1247 = vmatprep.subr.mxu0 %v1111
      %1248 = vmatpush1.msra.mxu0 %v1110
      %1249 = vmatprep.subr.mxu0 %v1109
      %1250 = vmatpush1.msra.mxu0 %v1108
      %1251 = vmatprep.subr.mxu0 %v1107
      %1252 = vmatpush1.msra.mxu0 %v1106
      %1253 = vmatprep.subr.mxu0 %v1105
      %1254 = vmatpush1.msra.mxu0 %v1104
      %1255 = vmatprep.subr.mxu0 %v1103
      %1256 = vmatpush1.msra.mxu0 %v1102
      %1257 = vmatprep.subr.mxu0 %v1101
      %1258 = vmatpush1.msra.mxu0 %v1100
      %1259 = vmatprep.subr.mxu0 %v1099
      %1260 = vmatpush1.msra.mxu0 %v1098
      %1261 = vmatprep.subr.mxu0 %v1097
      %1262 = vmatpush1.msra.mxu0 %v1096
      %1263 = vmatprep.subr.mxu0 %v1095
      %1264 = vmatpush1.msra.mxu0 %v1094
      %1265 = vmatprep.subr.mxu0 %v1093
      %1266 = vmatpush1.msra.mxu0 %v1092
      %1267 = vmatprep.subr.mxu0 %v1091
      %1268 = vmatpush1.msra.mxu0 %v1090
      %1269 = vmatprep.subr.mxu0 %v1153
      %1270 = vmatpush2.msra.mxu0 %v1152
      %1271 = vmatprep.subr.mxu0 %v1151
      %1272 = vmatpush2.msra.mxu0 %v1150
      %1273 = vmatprep.subr.mxu0 %v1149
      %1274 = vmatpush2.msra.mxu0 %v1148
      %1275 = vmatprep.subr.mxu0 %v1147
      %1276 = vmatpush2.msra.mxu0 %v1146
      %1277 = vmatprep.subr.mxu0 %v1145
      %1278 = vmatpush2.msra.mxu0 %v1144
      %1279 = vmatprep.subr.mxu0 %v1143
      %1280 = vmatpush2.msra.mxu0 %v1142
      %1281 = vmatprep.subr.mxu0 %v1141
      %1282 = vmatpush2.msra.mxu0 %v1140
      %1283 = vmatprep.subr.mxu0 %v1139
      %1284 = vmatpush2.msra.mxu0 %v1138
      %1285 = vmatprep.subr.mxu0 %v1137
      %1286 = vmatpush2.msra.mxu0 %v1136
      %1287 = vmatprep.subr.mxu0 %v1135
      %1288 = vmatpush2.msra.mxu0 %v1134
      %1289 = vmatprep.subr.mxu0 %v1133
      %1290 = vmatpush2.msra.mxu0 %v1132
      %1291 = vmatprep.subr.mxu0 %v1131
      %1292 = vmatpush2.msra.mxu0 %v1130
      %1293 = vmatprep.subr.mxu0 %v1129
      %1294 = vmatpush2.msra.mxu0 %v1128
      %1295 = vmatprep.subr.mxu0 %v1127
      %1296 = vmatpush2.msra.mxu0 %v1126
      %1297 = vmatprep.subr.mxu0 %v1125
      %1298 = vmatpush2.msra.mxu0 %v1124
      %1299 = vmatprep.subr.mxu0 %v1123
      %1300 = vmatpush2.msra.mxu0 %v1122
      %1301 = vmatprep.mubr.f32.mxu0 %v1161
      %1302 = vmatmul.mubr.f32.gmra.mxu0 %v1160
      %v1303 = vpop.f32.mrf.mxu0
      %v1304 = vadd.f32 %v1233, %v1303
      %v1305 = vpop.f32.mrf.mxu0
      %v1306 = vadd.f32 %v1235, %v1305
      %1307 = vdwg.mxu0
      %v1308 = vadd.f32 %v1019, %v1304
      %v1309 = vadd.f32 %v1020, %v1306
      %v1310 = vld [vmem:[%s2] sm:$0x3]
      %v1312 = vlaneseq
      %v1313 = vshrl.u32 %v1312, 7
      %v1314 = vsub.s32 0, %v1313
      %v1315 = vrot.slane %v1310, %v1314
      %v1316 = vlaneseq
      %v1317 = vshrl.u32 %v1316, 7
      %v1318 = vsub.s32 1, %v1317
      %v1319 = vrot.slane %v1310, %v1318
      %v1322 = vadd.f32 %v1308, %v1315
      %v1323 = vadd.f32 %v1309, %v1319
      %v1324 = vmax.f32 %v1322, 0.0
      %v1325 = vmax.f32 %v1323, 0.0
      %v1328 = vcombine.low %v1324, %v1325
      %v1330 = vunpack.c.l.s4 1983009808
      %v1331 = vunpack.c.0.s8 %v1330
      %v1332 = vlaneseq
      %v1333 = vshrl.u32 %v1332, 7
      %v1334 = vsub.s32 %v1331, %v1333
      %v1335 = vrot.slane %v1328, %v1334
      %1337 = vst [vmem:[%s170] sm:$0xf] %v1335
      %p1338 = scmp.lt.s32.totalorder %s14, 1
      %s1339 = scalar_select %p1338, %s14, 1
      %s1340 = smul.addr %s1339, 2
      %s1341 = smul.addr %s1340, 2
      %s1342 = scalar_lea.vmem %s3, %s1341
      // Predicated region
      $region33: #{encoder_forward.9} parent=31 // pred_check
        %p1343 = pneg %p100
      $region34: #{encoder_forward.9} parent=31 // pred_check_branch
        %1345 = sbr.rel (%p1343) target = $region36
      $region35: #{encoder_forward.9} parent=31 // pred_region
        _
      $region36: #{encoder_forward.9} parent=31 // pred_fallthru
        _
    $region32: #{encoder_forward.9} parent=5 // pred_fallthru
      _
    %p1346 = scmp.le.s32.totalorder 2, %s9
    // Predicated region
    $region37: #{encoder_forward.9} parent=5 // pred_check
      %p1347 = pneg %p1346
    $region38: #{encoder_forward.9} parent=5 // pred_check_branch
      %1349 = sbr.rel (%p1347) target = $region40
    $region39: #{encoder_forward.9} parent=5 // pred_region
      %s1350 = ssub.s32 %s9, 2
      // Predicated region
      $region41: #{encoder_forward.9} parent=39 // pred_check
        %p1351 = pneg %p106
      $region42: #{encoder_forward.9} parent=39 // pred_check_branch
        %1353 = sbr.rel (%p1351) target = $region44
      $region43: #{encoder_forward.9} parent=39 // pred_region
        %p1354 = scmp.lt.s32.totalorder %s15, 1
        %s1355 = scalar_select %p1354, %s15, 1
        %s1356 = smul.addr %s1355, 2
        %s1357 = smul.addr %s1356, 2
        %s1358 = scalar_lea.vmem %s3, %s1357
      $region44: #{encoder_forward.9} parent=39 // pred_fallthru
        _
    $region40: #{encoder_forward.9} parent=5 // pred_fallthru
      _
  $region6: #{encoder_forward.9} parent=0 // loop_footer
    %s13 = sadd.s32 1, %s9
  $region7: #{encoder_forward.9} parent=0 // loop_footer_branch
    %8 = sbr.rel target = $region3
  $region8: #{encoder_forward.9} parent=0 // loop_exit
    _

</llo_original>
